<compile_context>
chip_gen: v7x
topology: tpu7x:2x2x1
jax: 0.10.0
libtpu: 0.0.40
codegen_flags: <defaults>
</compile_context>

<pallas_src>
import jax
import jax.numpy as jnp
from jax.experimental import pallas as pl
from jax.experimental.pallas import tpu as pltpu


# ---------------------------------------------------------------------------
# Pallas kernels
# ---------------------------------------------------------------------------

def _conv_bn_relu_pool_kernel(p_ref, w_ref, s_ref, b_ref, o_ref):
    """Fused im2col-conv + BN affine + ReLU + 2x2 maxpool.

    p_ref: (4, Mt, K)  4 pooling-window-offset planes of im2col patches
    w_ref: (K, N)      conv weight reshaped (kh*kw*Cin, Cout)
    s_ref: (1, N)      folded BN scale
    b_ref: (1, N)      folded BN bias (conv bias included)
    o_ref: (Mt, N)     pooled output rows
    """
    w = w_ref[...]
    s = s_ref[...]
    b = b_ref[...]
    n_planes, mt, k = p_ref.shape
    n = w_ref.shape[1]

    if mt % 8 == 0:
        # Single MXU sequence: stack the 4 window-offset planes along M so the
        # RHS (conv weight) is loaded into the MXU once instead of 4 times.
        # Collapsing / re-splitting the major dim is tile-aligned (Mt % 8 == 0)
        # so these reshapes are layout no-ops.
        lhs = p_ref[...].reshape(n_planes * mt, k)
        y = jnp.dot(lhs, w, preferred_element_type=jnp.float32)      # (4*Mt, N)
        y = jnp.maximum(y * s + b, 0.0)                               # BN + ReLU
        y = y.reshape(n_planes, mt, n)
        o_ref[...] = jnp.max(y, axis=0).astype(o_ref.dtype)           # 2x2 maxpool
    else:
        # Fallback (unaligned tile == full array): 4 separate plane matmuls.
        def plane(i):
            z = jnp.dot(p_ref[i], w, preferred_element_type=jnp.float32)
            return jnp.maximum(z * s + b, 0.0)

        m01 = jnp.maximum(plane(0), plane(1))
        m23 = jnp.maximum(plane(2), plane(3))
        o_ref[...] = jnp.maximum(m01, m23).astype(o_ref.dtype)


def _head_kernel(p_ref, pm_ref, wc_ref, sc_ref, bc_ref,
                 w1_ref, b1_ref, w2_ref, b2_ref, o_ref):
    """Fused conv3 + BN + ReLU + global avg pool + FC1 + ReLU + FC2.

    p_ref : (B*S, K)   im2col patches of the last conv (rows are batch-major)
    pm_ref: (B, B*S)   pooling matrix, pm[b, b*S + s] = 1/S
    wc_ref: (K, C)     conv3 weight; sc/bc: (1, C) folded BN scale/bias
    w1_ref: (C, H1), b1_ref: (1, H1)   first FC
    w2_ref: (H1, F), b2_ref: (1, F)    second FC
    o_ref : (B, F)
    """
    z = jnp.dot(p_ref[...], wc_ref[...], preferred_element_type=jnp.float32)
    y = jnp.maximum(z * sc_ref[...] + bc_ref[...], 0.0)                   # (B*S, C)
    pooled = jnp.dot(pm_ref[...], y, preferred_element_type=jnp.float32)  # (B, C)
    h = jnp.maximum(
        jnp.dot(pooled, w1_ref[...], preferred_element_type=jnp.float32) + b1_ref[...],
        0.0)
    out = jnp.dot(h, w2_ref[...], preferred_element_type=jnp.float32) + b2_ref[...]
    o_ref[...] = out.astype(o_ref.dtype)


# ---------------------------------------------------------------------------
# Wrappers (layout plumbing in plain JAX, compute in Pallas)
# ---------------------------------------------------------------------------

def _im2col(x_nhwc, ksize, stride, pad):
    """Return (patches (B, Ho, Wo, ksize*ksize*Cin), Ho, Wo)."""
    B, H, W, C = x_nhwc.shape
    xp = jnp.pad(x_nhwc, ((0, 0), (pad, pad), (pad, pad), (0, 0)))
    Ho = (H + 2 * pad - ksize) // stride + 1
    Wo = (W + 2 * pad - ksize) // stride + 1
    cols = []
    for ki in range(ksize):
        for kj in range(ksize):
            sl = jax.lax.slice(
                xp,
                (0, ki, kj, 0),
                (B, ki + (Ho - 1) * stride + 1, kj + (Wo - 1) * stride + 1, C),
                (1, stride, stride, 1))
            cols.append(sl)                                  # (B, Ho, Wo, C)
    patches = jnp.concatenate(cols, axis=-1)                 # (B, Ho, Wo, K)
    return patches, Ho, Wo


def _pick_tile(m, cap=512):
    """Largest tile <= cap that divides m and is a multiple of 8 (else full m)."""
    if m <= cap:
        return m
    for t in range(cap - (cap % 8), 7, -8):
        if m % t == 0:
            return t
    return m


def _fold_bn(conv_bias, gamma, beta, mean, var, eps=1e-5):
    # Eval-mode BatchNorm folded into per-channel scale/bias (inference semantics).
    scale = gamma / jnp.sqrt(var + eps)
    bias = beta + scale * (conv_bias - mean)
    return scale, bias


def _conv_bn_relu_pool(x_nhwc, w_hwio, scale, bias):
    """One frontend stage: Conv3x3(s2,p1) + BN + ReLU + MaxPool2, fully fused."""
    B, H, W, Cin = x_nhwc.shape
    kh, kw, _, Cout = w_hwio.shape
    patches, Ho, Wo = _im2col(x_nhwc, kh, stride=2, pad=1)   # (B, Ho, Wo, K)
    assert Ho % 2 == 0 and Wo % 2 == 0, "2x2 maxpool needs even conv output"
    Hp, Wp = Ho // 2, Wo // 2
    K = kh * kw * Cin
    Mq = B * Hp * Wp

    # 4 pooling-window-offset planes: plane (di,dj) holds the conv patch of
    # position (2i+di, 2j+dj) for pooled output row (b, i, j) (row-major).
    planes = jnp.stack(
        [patches[:, di::2, dj::2, :].reshape(Mq, K)
         for di in (0, 1) for dj in (0, 1)], axis=0)         # (4, Mq, K)

    w2d = w_hwio.reshape(K, Cout)
    s2d = scale.reshape(1, Cout).astype(jnp.float32)
    b2d = bias.reshape(1, Cout).astype(jnp.float32)

    Mt = _pick_tile(Mq)
    out = pl.pallas_call(
        _conv_bn_relu_pool_kernel,
        out_shape=jax.ShapeDtypeStruct((Mq, Cout), x_nhwc.dtype),
        grid=(Mq // Mt,),
        in_specs=[
            pl.BlockSpec((4, Mt, K), lambda i: (0, i, 0)),
            pl.BlockSpec((K, Cout), lambda i: (0, 0)),
            pl.BlockSpec((1, Cout), lambda i: (0, 0)),
            pl.BlockSpec((1, Cout), lambda i: (0, 0)),
        ],
        out_specs=pl.BlockSpec((Mt, Cout), lambda i: (i, 0)),
        compiler_params=pltpu.CompilerParams(
            dimension_semantics=("parallel",)),
    )(planes, w2d, s2d, b2d)
    return out.reshape(B, Hp, Wp, Cout)


def _head(x_nhwc, w_hwio, scale, bias, fc1_w, fc1_b, fc2_w, fc2_b):
    """Conv3 + BN + ReLU + AdaptiveAvgPool(1) + Flatten + FC1 + ReLU + FC2."""
    B, H, W, Cin = x_nhwc.shape
    kh, kw, _, C3 = w_hwio.shape
    patches, Ho, Wo = _im2col(x_nhwc, kh, stride=2, pad=1)   # (B, Ho, Wo, K)
    S = Ho * Wo
    K = kh * kw * Cin
    p2d = patches.reshape(B * S, K)                          # batch-major rows

    # Global average pool as a tiny matmul: pooled[b] = (1/S) * sum_s rows[b*S+s].
    pm = jnp.repeat(jnp.eye(B, dtype=jnp.float32), S, axis=1) / float(S)  # (B, B*S)

    feat = fc2_w.shape[1]
    out = pl.pallas_call(
        _head_kernel,
        out_shape=jax.ShapeDtypeStruct((B, feat), x_nhwc.dtype),
    )(p2d, pm, w_hwio.reshape(K, C3),
      scale.reshape(1, C3).astype(jnp.float32),
      bias.reshape(1, C3).astype(jnp.float32),
      fc1_w, fc1_b.reshape(1, -1), fc2_w, fc2_b.reshape(1, -1))
    return out


def simple_snn_forward(x_nchw, c1, c2, c3, fc1_w, fc1_b, fc2_w, fc2_b):
    """x_nchw: (B, Cin, H, W) float32 -> (B, feature_dim)."""
    x = jnp.transpose(x_nchw, (0, 2, 3, 1))                  # NHWC: channels on lanes
    s1, b1 = _fold_bn(c1['cb'], c1['gamma'], c1['beta'], c1['mean'], c1['var'])
    s2, b2 = _fold_bn(c2['cb'], c2['gamma'], c2['beta'], c2['mean'], c2['var'])
    s3, b3 = _fold_bn(c3['cb'], c3['gamma'], c3['beta'], c3['mean'], c3['var'])

    x = _conv_bn_relu_pool(x, c1['w'], s1, b1)               # (B, H/4,  W/4,  32)
    x = _conv_bn_relu_pool(x, c2['w'], s2, b2)               # (B, H/16, W/16, 64)
    return _head(x, c3['w'], s3, b3, fc1_w, fc1_b, fc2_w, fc2_b)


# ---------------------------------------------------------------------------
# Pure-JAX reference (eval-mode BN), for correctness checking
# ---------------------------------------------------------------------------

def _reference_forward(x_nchw, c1, c2, c3, fc1_w, fc1_b, fc2_w, fc2_b):
    hi = jax.lax.Precision.HIGHEST
    x = jnp.transpose(x_nchw, (0, 2, 3, 1))

    def conv_bn_relu(x, c):
        y = jax.lax.conv_general_dilated(
            x, c['w'], (2, 2), ((1, 1), (1, 1)),
            dimension_numbers=("NHWC", "HWIO", "NHWC"), precision=hi) + c['cb']
        y = (y - c['mean']) / jnp.sqrt(c['var'] + 1e-5) * c['gamma'] + c['beta']
        return jnp.maximum(y, 0.0)

    def maxpool2(x):
        return jax.lax.reduce_window(x, -jnp.inf, jax.lax.max,
                                     (1, 2, 2, 1), (1, 2, 2, 1), "VALID")

    x = maxpool2(conv_bn_relu(x, c1))
    x = maxpool2(conv_bn_relu(x, c2))
    x = conv_bn_relu(x, c3)
    x = jnp.mean(x, axis=(1, 2))                             # (B, 128)
    x = jnp.maximum(jnp.dot(x, fc1_w, precision=hi) + fc1_b, 0.0)
    return jnp.dot(x, fc2_w, precision=hi) + fc2_b


# ---------------------------------------------------------------------------

if __name__ == "__main__":
    B, Cin, H, W = 2, 3, 64, 64
    feature_dim = 768

    key = jax.random.PRNGKey(0)
    keys = iter(jax.random.split(key, 32))
    nk = lambda: next(keys)

    x = jax.random.normal(nk(), (B, Cin, H, W), dtype=jnp.float32)

    def make_conv(cin, cout):
        w = jax.random.normal(nk(), (3, 3, cin, cout), jnp.float32) * (2.0 / (9 * cin)) ** 0.5
        cb = 0.1 * jax.random.normal(nk(), (cout,), jnp.float32)
        gamma = 1.0 + 0.1 * jax.random.normal(nk(), (cout,), jnp.float32)
        beta = 0.1 * jax.random.normal(nk(), (cout,), jnp.float32)
        mean = 0.1 * jax.random.normal(nk(), (cout,), jnp.float32)
        var = jax.random.uniform(nk(), (cout,), jnp.float32, minval=0.5, maxval=1.5)
        return dict(w=w, cb=cb, gamma=gamma, beta=beta, mean=mean, var=var)

    c1 = make_conv(Cin, 32)
    c2 = make_conv(32, 64)
    c3 = make_conv(64, 128)

    fc1_w = jax.random.normal(nk(), (128, 256), jnp.float32) * (2.0 / 128) ** 0.5
    fc1_b = 0.1 * jax.random.normal(nk(), (256,), jnp.float32)
    fc2_w = jax.random.normal(nk(), (256, feature_dim), jnp.float32) * (1.0 / 256) ** 0.5
    fc2_b = 0.1 * jax.random.normal(nk(), (feature_dim,), jnp.float32)

    out = simple_snn_forward(x, c1, c2, c3, fc1_w, fc1_b, fc2_w, fc2_b)
    out = jax.block_until_ready(out)

    ref = _reference_forward(x, c1, c2, c3, fc1_w, fc1_b, fc2_w, fc2_b)

    assert out.shape == (B, feature_dim)
    max_err = float(jnp.max(jnp.abs(out - ref)))
    assert jnp.allclose(out, ref, atol=2e-3, rtol=2e-3), f"mismatch vs reference: {max_err}"

    print("KERNEL_OK")
</pallas_src>

<mosaic_0001>
module attributes {stable_mosaic.version = 11 : i64} {
  func.func @_conv_bn_relu_pool_kernel(%arg0: i32, %arg1: memref<4x512x27xf32, #tpu.memory_space<vmem>>, %arg2: memref<27x32xf32, #tpu.memory_space<vmem>>, %arg3: memref<1x32xf32, #tpu.memory_space<vmem>>, %arg4: memref<1x32xf32, #tpu.memory_space<vmem>>, %arg5: memref<512x32xf32, #tpu.memory_space<vmem>>) attributes {dimension_semantics = [#tpu.dimension_semantics<parallel>], iteration_bounds = array<i64: 1>, scalar_prefetch = 0 : i64, scratch_operands = 0 : i64, tpu.core_type = #tpu.core_type<tc>, window_params = [{transform_indices = @transform_0, window_bounds = array<i64: 4, 512, 27>}, {pipeline_mode = #tpu.pipeline_mode<synchronous>, transform_indices = @transform_1, window_bounds = array<i64: 27, 32>}, {pipeline_mode = #tpu.pipeline_mode<synchronous>, transform_indices = @transform_2, window_bounds = array<i64: 1, 32>}, {pipeline_mode = #tpu.pipeline_mode<synchronous>, transform_indices = @transform_3, window_bounds = array<i64: 1, 32>}, {transform_indices = @transform_4, window_bounds = array<i64: 512, 32>}]} {
    %c0 = arith.constant 0 : index
    %c0_0 = arith.constant 0 : index
    %0 = vector.load %arg2[%c0, %c0_0] : memref<27x32xf32, #tpu.memory_space<vmem>>, vector<27x32xf32>
    %c0_1 = arith.constant 0 : index
    %c0_2 = arith.constant 0 : index
    %1 = vector.load %arg3[%c0_1, %c0_2] : memref<1x32xf32, #tpu.memory_space<vmem>>, vector<1x32xf32>
    %c0_3 = arith.constant 0 : index
    %c0_4 = arith.constant 0 : index
    %2 = vector.load %arg4[%c0_3, %c0_4] : memref<1x32xf32, #tpu.memory_space<vmem>>, vector<1x32xf32>
    %c0_5 = arith.constant 0 : index
    %c0_6 = arith.constant 0 : index
    %c0_7 = arith.constant 0 : index
    %3 = vector.load %arg1[%c0_5, %c0_6, %c0_7] : memref<4x512x27xf32, #tpu.memory_space<vmem>>, vector<4x512x27xf32>
    %4 = vector.shape_cast %3 : vector<4x512x27xf32> to vector<2048x27xf32>
    %cst = arith.constant dense<0.000000e+00> : vector<2048x32xf32>
    %5 = tpu.matmul %4, %0, %cst {dimension_numbers = #tpu.dot_dimension_numbers<[1], [0], [0], [1], [0, 0, 1, 1], [], []>} : vector<2048x27xf32>, vector<27x32xf32>, vector<2048x32xf32> -> vector<2048x32xf32>
    %6 = vector.broadcast %1 : vector<1x32xf32> to vector<2048x32xf32>
    %7 = arith.mulf %5, %6 : vector<2048x32xf32>
    %8 = vector.broadcast %2 : vector<1x32xf32> to vector<2048x32xf32>
    %9 = arith.addf %7, %8 : vector<2048x32xf32>
    %cst_8 = arith.constant 0.000000e+00 : f32
    %10 = vector.broadcast %cst_8 : f32 to vector<2048x32xf32>
    %11 = arith.maximumf %9, %10 : vector<2048x32xf32>
    %12 = vector.shape_cast %11 : vector<2048x32xf32> to vector<4x512x32xf32>
    %cst_9 = arith.constant dense<0xFF800000> : vector<512x32xf32>
    %13 = vector.multi_reduction <maximumf>, %12, %cst_9 [0] : vector<4x512x32xf32> to vector<512x32xf32>
    %c0_10 = arith.constant 0 : index
    %c0_11 = arith.constant 0 : index
    %14 = vector.load %arg5[%c0_10, %c0_11] : memref<512x32xf32, #tpu.memory_space<vmem>>, vector<512x32xf32>
    tpu.vector_store %arg5[%c0_10, %c0_11], %13 {strides = array<i32>} : memref<512x32xf32, #tpu.memory_space<vmem>>, vector<512x32xf32>,
    return
  }
  func.func @transform_0(%arg0: i32) -> (i32, i32, i32) {
    %c0_i32 = arith.constant 0 : i32
    %c0_i32_0 = arith.constant 0 : i32
    %c0_i32_1 = arith.constant 0 : i32
    return %c0_i32, %arg0, %c0_i32_0 : i32, i32, i32
  }
  func.func @transform_1(%arg0: i32) -> (i32, i32) {
    %c0_i32 = arith.constant 0 : i32
    %c0_i32_0 = arith.constant 0 : i32
    %c0_i32_1 = arith.constant 0 : i32
    return %c0_i32, %c0_i32_0 : i32, i32
  }
  func.func @transform_2(%arg0: i32) -> (i32, i32) {
    %c0_i32 = arith.constant 0 : i32
    %c0_i32_0 = arith.constant 0 : i32
    %c0_i32_1 = arith.constant 0 : i32
    return %c0_i32, %c0_i32_0 : i32, i32
  }
  func.func @transform_3(%arg0: i32) -> (i32, i32) {
    %c0_i32 = arith.constant 0 : i32
    %c0_i32_0 = arith.constant 0 : i32
    %c0_i32_1 = arith.constant 0 : i32
    return %c0_i32, %c0_i32_0 : i32, i32
  }
  func.func @transform_4(%arg0: i32) -> (i32, i32) {
    %c0_i32 = arith.constant 0 : i32
    %c0_i32_0 = arith.constant 0 : i32
    return %arg0, %c0_i32 : i32, i32
  }
}

</mosaic_0001>

<llo_original>
// kernel: tpu_custom_call.1
$region0: #{tpu_custom_call.1}
  #allocation0 [shape = 'u32[]', space=smem, size = 0x4, offset = 0x4, fixed_abs, tag = 'smem constant byte address 0x4 - core index']
  #allocation1 [shape = 'u32[144,128]{1,0:T(1,128)}', space=vmem, size = 0x12000, scoped, tag = 'internal scratch']
  %s0 = inlined_call_operand.vmem [shape: f32[4,512,27], index: 0, kind: input, shape index: {}]
  %s1 = inlined_call_operand.vmem [shape: f32[27,32], index: 1, kind: input, shape index: {}]
  %s2 = inlined_call_operand.vmem [shape: f32[1,32], index: 2, kind: input, shape index: {}]
  %s3 = inlined_call_operand.vmem [shape: f32[1,32], index: 3, kind: input, shape index: {}]
  %s4 = inlined_call_operand.vmem [shape: f32[512,32], index: 4, kind: output, shape index: {}]
  %s5 = sld [smem:[#allocation0]]
  $region26: #{tpu_custom_call.1} parent=0
    _
  %s7 = ssub.s32 1, %s5
  %s8 = scalar_select 0, %s7, %s5
  // Predicated region
  $region2: #{tpu_custom_call.1} parent=0 // pred_check
    _
  $region3: #{tpu_custom_call.1} parent=0 // pred_check_branch
    %10 = sbr.rel (0) target = $region5
  $region4: #{tpu_custom_call.1} parent=0 // pred_region
    _
  $region5: #{tpu_custom_call.1} parent=0 // pred_fallthru
    _
  // Predicated region
  $region6: #{tpu_custom_call.1} parent=0 // pred_check
    _
  $region7: #{tpu_custom_call.1} parent=0 // pred_check_branch
    %12 = sbr.rel (0) target = $region9
  $region8: #{tpu_custom_call.1} parent=0 // pred_region
    _
  $region9: #{tpu_custom_call.1} parent=0 // pred_fallthru
    _
  // Predicated region
  $region10: #{tpu_custom_call.1} parent=0 // pred_check
    _
  $region11: #{tpu_custom_call.1} parent=0 // pred_check_branch
    %14 = sbr.rel (0) target = $region13
  $region12: #{tpu_custom_call.1} parent=0 // pred_region
    _
  $region13: #{tpu_custom_call.1} parent=0 // pred_fallthru
    _
  // Predicated region
  $region14: #{tpu_custom_call.1} parent=0 // pred_check
    _
  $region15: #{tpu_custom_call.1} parent=0 // pred_check_branch
    %16 = sbr.rel (0) target = $region17
  $region16: #{tpu_custom_call.1} parent=0 // pred_region
    _
  $region17: #{tpu_custom_call.1} parent=0 // pred_fallthru
    _
  %v17 = vld [vmem:[%s1] sm:$0xff]
  %v18 = vld [vmem:[%s1 + $0x8] sm:$0xff]
  %v19 = vld [vmem:[%s1 + $0x10] sm:$0xff]
  %v20 = vld [vmem:[%s1 + $0x18] sm:$0x7]
  %v21 = vld [vmem:[%s2] sm:$0x1]
  %v22 = vld [vmem:[%s3] sm:$0x1]
  %v23 = vld [vmem:[%s0] sm:$0xff]
  %v24 = vld [vmem:[%s0 + $0x8] sm:$0xff]
  %v25 = vld [vmem:[%s0 + $0x10] sm:$0xff]
  %v26 = vld [vmem:[%s0 + $0x18] sm:$0xff]
  %v27 = vld [vmem:[%s0 + $0x20] sm:$0xff]
  %v28 = vld [vmem:[%s0 + $0x28] sm:$0xff]
  %v29 = vld [vmem:[%s0 + $0x30] sm:$0xff]
  %v30 = vld [vmem:[%s0 + $0x38] sm:$0xff]
  %v31 = vld [vmem:[%s0 + $0x40] sm:$0xff]
  %v32 = vld [vmem:[%s0 + $0x48] sm:$0xff]
  %v33 = vld [vmem:[%s0 + $0x50] sm:$0xff]
  %v34 = vld [vmem:[%s0 + $0x58] sm:$0xff]
  %v35 = vld [vmem:[%s0 + $0x60] sm:$0xff]
  %v36 = vld [vmem:[%s0 + $0x68] sm:$0xff]
  %v37 = vld [vmem:[%s0 + $0x70] sm:$0xff]
  %v38 = vld [vmem:[%s0 + $0x78] sm:$0xff]
  %v39 = vld [vmem:[%s0 + $0x80] sm:$0xff]
  %v40 = vld [vmem:[%s0 + $0x88] sm:$0xff]
  %v41 = vld [vmem:[%s0 + $0x90] sm:$0xff]
  %v42 = vld [vmem:[%s0 + $0x98] sm:$0xff]
  %v43 = vld [vmem:[%s0 + $0xa0] sm:$0xff]
  %v44 = vld [vmem:[%s0 + $0xa8] sm:$0xff]
  %v45 = vld [vmem:[%s0 + $0xb0] sm:$0xff]
  %v46 = vld [vmem:[%s0 + $0xb8] sm:$0xff]
  %v47 = vld [vmem:[%s0 + $0xc0] sm:$0xff]
  %v48 = vld [vmem:[%s0 + $0xc8] sm:$0xff]
  %v49 = vld [vmem:[%s0 + $0xd0] sm:$0xff]
  %v50 = vld [vmem:[%s0 + $0xd8] sm:$0xff]
  %v51 = vld [vmem:[%s0 + $0xe0] sm:$0xff]
  %v52 = vld [vmem:[%s0 + $0xe8] sm:$0xff]
  %v53 = vld [vmem:[%s0 + $0xf0] sm:$0xff]
  %v54 = vld [vmem:[%s0 + $0xf8] sm:$0xff]
  %v55 = vld [vmem:[%s0 + $0x100] sm:$0xff]
  %v56 = vld [vmem:[%s0 + $0x108] sm:$0xff]
  %v57 = vld [vmem:[%s0 + $0x110] sm:$0xff]
  %v58 = vld [vmem:[%s0 + $0x118] sm:$0xff]
  %v59 = vld [vmem:[%s0 + $0x120] sm:$0xff]
  %v60 = vld [vmem:[%s0 + $0x128] sm:$0xff]
  %v61 = vld [vmem:[%s0 + $0x130] sm:$0xff]
  %v62 = vld [vmem:[%s0 + $0x138] sm:$0xff]
  %v63 = vld [vmem:[%s0 + $0x140] sm:$0xff]
  %v64 = vld [vmem:[%s0 + $0x148] sm:$0xff]
  %v65 = vld [vmem:[%s0 + $0x150] sm:$0xff]
  %v66 = vld [vmem:[%s0 + $0x158] sm:$0xff]
  %v67 = vld [vmem:[%s0 + $0x160] sm:$0xff]
  %v68 = vld [vmem:[%s0 + $0x168] sm:$0xff]
  %v69 = vld [vmem:[%s0 + $0x170] sm:$0xff]
  %v70 = vld [vmem:[%s0 + $0x178] sm:$0xff]
  %v71 = vld [vmem:[%s0 + $0x180] sm:$0xff]
  %v72 = vld [vmem:[%s0 + $0x188] sm:$0xff]
  %v73 = vld [vmem:[%s0 + $0x190] sm:$0xff]
  %v74 = vld [vmem:[%s0 + $0x198] sm:$0xff]
  %v75 = vld [vmem:[%s0 + $0x1a0] sm:$0xff]
  %v76 = vld [vmem:[%s0 + $0x1a8] sm:$0xff]
  %v77 = vld [vmem:[%s0 + $0x1b0] sm:$0xff]
  %v78 = vld [vmem:[%s0 + $0x1b8] sm:$0xff]
  %v79 = vld [vmem:[%s0 + $0x1c0] sm:$0xff]
  %v80 = vld [vmem:[%s0 + $0x1c8] sm:$0xff]
  %v81 = vld [vmem:[%s0 + $0x1d0] sm:$0xff]
  %v82 = vld [vmem:[%s0 + $0x1d8] sm:$0xff]
  %v83 = vld [vmem:[%s0 + $0x1e0] sm:$0xff]
  %v84 = vld [vmem:[%s0 + $0x1e8] sm:$0xff]
  %v85 = vld [vmem:[%s0 + $0x1f0] sm:$0xff]
  %v86 = vld [vmem:[%s0 + $0x1f8] sm:$0xff]
  %v87 = vld [vmem:[%s0 + $0x200] sm:$0xff]
  %v88 = vld [vmem:[%s0 + $0x208] sm:$0xff]
  %v89 = vld [vmem:[%s0 + $0x210] sm:$0xff]
  %v90 = vld [vmem:[%s0 + $0x218] sm:$0xff]
  %v91 = vld [vmem:[%s0 + $0x220] sm:$0xff]
  %v92 = vld [vmem:[%s0 + $0x228] sm:$0xff]
  %v93 = vld [vmem:[%s0 + $0x230] sm:$0xff]
  %v94 = vld [vmem:[%s0 + $0x238] sm:$0xff]
  %v95 = vld [vmem:[%s0 + $0x240] sm:$0xff]
  %v96 = vld [vmem:[%s0 + $0x248] sm:$0xff]
  %v97 = vld [vmem:[%s0 + $0x250] sm:$0xff]
  %v98 = vld [vmem:[%s0 + $0x258] sm:$0xff]
  %v99 = vld [vmem:[%s0 + $0x260] sm:$0xff]
  %v100 = vld [vmem:[%s0 + $0x268] sm:$0xff]
  %v101 = vld [vmem:[%s0 + $0x270] sm:$0xff]
  %v102 = vld [vmem:[%s0 + $0x278] sm:$0xff]
  %v103 = vld [vmem:[%s0 + $0x280] sm:$0xff]
  %v104 = vld [vmem:[%s0 + $0x288] sm:$0xff]
  %v105 = vld [vmem:[%s0 + $0x290] sm:$0xff]
  %v106 = vld [vmem:[%s0 + $0x298] sm:$0xff]
  %v107 = vld [vmem:[%s0 + $0x2a0] sm:$0xff]
  %v108 = vld [vmem:[%s0 + $0x2a8] sm:$0xff]
  %v109 = vld [vmem:[%s0 + $0x2b0] sm:$0xff]
  %v110 = vld [vmem:[%s0 + $0x2b8] sm:$0xff]
  %v111 = vld [vmem:[%s0 + $0x2c0] sm:$0xff]
  %v112 = vld [vmem:[%s0 + $0x2c8] sm:$0xff]
  %v113 = vld [vmem:[%s0 + $0x2d0] sm:$0xff]
  %v114 = vld [vmem:[%s0 + $0x2d8] sm:$0xff]
  %v115 = vld [vmem:[%s0 + $0x2e0] sm:$0xff]
  %v116 = vld [vmem:[%s0 + $0x2e8] sm:$0xff]
  %v117 = vld [vmem:[%s0 + $0x2f0] sm:$0xff]
  %v118 = vld [vmem:[%s0 + $0x2f8] sm:$0xff]
  %v119 = vld [vmem:[%s0 + $0x300] sm:$0xff]
  %v120 = vld [vmem:[%s0 + $0x308] sm:$0xff]
  %v121 = vld [vmem:[%s0 + $0x310] sm:$0xff]
  %v122 = vld [vmem:[%s0 + $0x318] sm:$0xff]
  %v123 = vld [vmem:[%s0 + $0x320] sm:$0xff]
  %v124 = vld [vmem:[%s0 + $0x328] sm:$0xff]
  %v125 = vld [vmem:[%s0 + $0x330] sm:$0xff]
  %v126 = vld [vmem:[%s0 + $0x338] sm:$0xff]
  %v127 = vld [vmem:[%s0 + $0x340] sm:$0xff]
  %v128 = vld [vmem:[%s0 + $0x348] sm:$0xff]
  %v129 = vld [vmem:[%s0 + $0x350] sm:$0xff]
  %v130 = vld [vmem:[%s0 + $0x358] sm:$0xff]
  %v131 = vld [vmem:[%s0 + $0x360] sm:$0xff]
  %v132 = vld [vmem:[%s0 + $0x368] sm:$0xff]
  %v133 = vld [vmem:[%s0 + $0x370] sm:$0xff]
  %v134 = vld [vmem:[%s0 + $0x378] sm:$0xff]
  %v135 = vld [vmem:[%s0 + $0x380] sm:$0xff]
  %v136 = vld [vmem:[%s0 + $0x388] sm:$0xff]
  %v137 = vld [vmem:[%s0 + $0x390] sm:$0xff]
  %v138 = vld [vmem:[%s0 + $0x398] sm:$0xff]
  %v139 = vld [vmem:[%s0 + $0x3a0] sm:$0xff]
  %v140 = vld [vmem:[%s0 + $0x3a8] sm:$0xff]
  %v141 = vld [vmem:[%s0 + $0x3b0] sm:$0xff]
  %v142 = vld [vmem:[%s0 + $0x3b8] sm:$0xff]
  %v143 = vld [vmem:[%s0 + $0x3c0] sm:$0xff]
  %v144 = vld [vmem:[%s0 + $0x3c8] sm:$0xff]
  %v145 = vld [vmem:[%s0 + $0x3d0] sm:$0xff]
  %v146 = vld [vmem:[%s0 + $0x3d8] sm:$0xff]
  %v147 = vld [vmem:[%s0 + $0x3e0] sm:$0xff]
  %v148 = vld [vmem:[%s0 + $0x3e8] sm:$0xff]
  %v149 = vld [vmem:[%s0 + $0x3f0] sm:$0xff]
  %v150 = vld [vmem:[%s0 + $0x3f8] sm:$0xff]
  %v151 = vld [vmem:[%s0 + $0x400] sm:$0xff]
  %v152 = vld [vmem:[%s0 + $0x408] sm:$0xff]
  %v153 = vld [vmem:[%s0 + $0x410] sm:$0xff]
  %v154 = vld [vmem:[%s0 + $0x418] sm:$0xff]
  %v155 = vld [vmem:[%s0 + $0x420] sm:$0xff]
  %v156 = vld [vmem:[%s0 + $0x428] sm:$0xff]
  %v157 = vld [vmem:[%s0 + $0x430] sm:$0xff]
  %v158 = vld [vmem:[%s0 + $0x438] sm:$0xff]
  %v159 = vld [vmem:[%s0 + $0x440] sm:$0xff]
  %v160 = vld [vmem:[%s0 + $0x448] sm:$0xff]
  %v161 = vld [vmem:[%s0 + $0x450] sm:$0xff]
  %v162 = vld [vmem:[%s0 + $0x458] sm:$0xff]
  %v163 = vld [vmem:[%s0 + $0x460] sm:$0xff]
  %v164 = vld [vmem:[%s0 + $0x468] sm:$0xff]
  %v165 = vld [vmem:[%s0 + $0x470] sm:$0xff]
  %v166 = vld [vmem:[%s0 + $0x478] sm:$0xff]
  %v167 = vld [vmem:[%s0 + $0x480] sm:$0xff]
  %v168 = vld [vmem:[%s0 + $0x488] sm:$0xff]
  %v169 = vld [vmem:[%s0 + $0x490] sm:$0xff]
  %v170 = vld [vmem:[%s0 + $0x498] sm:$0xff]
  %v171 = vld [vmem:[%s0 + $0x4a0] sm:$0xff]
  %v172 = vld [vmem:[%s0 + $0x4a8] sm:$0xff]
  %v173 = vld [vmem:[%s0 + $0x4b0] sm:$0xff]
  %v174 = vld [vmem:[%s0 + $0x4b8] sm:$0xff]
  %v175 = vld [vmem:[%s0 + $0x4c0] sm:$0xff]
  %v176 = vld [vmem:[%s0 + $0x4c8] sm:$0xff]
  %v177 = vld [vmem:[%s0 + $0x4d0] sm:$0xff]
  %v178 = vld [vmem:[%s0 + $0x4d8] sm:$0xff]
  %v179 = vld [vmem:[%s0 + $0x4e0] sm:$0xff]
  %v180 = vld [vmem:[%s0 + $0x4e8] sm:$0xff]
  %v181 = vld [vmem:[%s0 + $0x4f0] sm:$0xff]
  %v182 = vld [vmem:[%s0 + $0x4f8] sm:$0xff]
  %v183 = vld [vmem:[%s0 + $0x500] sm:$0xff]
  %v184 = vld [vmem:[%s0 + $0x508] sm:$0xff]
  %v185 = vld [vmem:[%s0 + $0x510] sm:$0xff]
  %v186 = vld [vmem:[%s0 + $0x518] sm:$0xff]
  %v187 = vld [vmem:[%s0 + $0x520] sm:$0xff]
  %v188 = vld [vmem:[%s0 + $0x528] sm:$0xff]
  %v189 = vld [vmem:[%s0 + $0x530] sm:$0xff]
  %v190 = vld [vmem:[%s0 + $0x538] sm:$0xff]
  %v191 = vld [vmem:[%s0 + $0x540] sm:$0xff]
  %v192 = vld [vmem:[%s0 + $0x548] sm:$0xff]
  %v193 = vld [vmem:[%s0 + $0x550] sm:$0xff]
  %v194 = vld [vmem:[%s0 + $0x558] sm:$0xff]
  %v195 = vld [vmem:[%s0 + $0x560] sm:$0xff]
  %v196 = vld [vmem:[%s0 + $0x568] sm:$0xff]
  %v197 = vld [vmem:[%s0 + $0x570] sm:$0xff]
  %v198 = vld [vmem:[%s0 + $0x578] sm:$0xff]
  %v199 = vld [vmem:[%s0 + $0x580] sm:$0xff]
  %v200 = vld [vmem:[%s0 + $0x588] sm:$0xff]
  %v201 = vld [vmem:[%s0 + $0x590] sm:$0xff]
  %v202 = vld [vmem:[%s0 + $0x598] sm:$0xff]
  %v203 = vld [vmem:[%s0 + $0x5a0] sm:$0xff]
  %v204 = vld [vmem:[%s0 + $0x5a8] sm:$0xff]
  %v205 = vld [vmem:[%s0 + $0x5b0] sm:$0xff]
  %v206 = vld [vmem:[%s0 + $0x5b8] sm:$0xff]
  %v207 = vld [vmem:[%s0 + $0x5c0] sm:$0xff]
  %v208 = vld [vmem:[%s0 + $0x5c8] sm:$0xff]
  %v209 = vld [vmem:[%s0 + $0x5d0] sm:$0xff]
  %v210 = vld [vmem:[%s0 + $0x5d8] sm:$0xff]
  %v211 = vld [vmem:[%s0 + $0x5e0] sm:$0xff]
  %v212 = vld [vmem:[%s0 + $0x5e8] sm:$0xff]
  %v213 = vld [vmem:[%s0 + $0x5f0] sm:$0xff]
  %v214 = vld [vmem:[%s0 + $0x5f8] sm:$0xff]
  %v215 = vld [vmem:[%s0 + $0x600] sm:$0xff]
  %v216 = vld [vmem:[%s0 + $0x608] sm:$0xff]
  %v217 = vld [vmem:[%s0 + $0x610] sm:$0xff]
  %v218 = vld [vmem:[%s0 + $0x618] sm:$0xff]
  %v219 = vld [vmem:[%s0 + $0x620] sm:$0xff]
  %v220 = vld [vmem:[%s0 + $0x628] sm:$0xff]
  %v221 = vld [vmem:[%s0 + $0x630] sm:$0xff]
  %v222 = vld [vmem:[%s0 + $0x638] sm:$0xff]
  %v223 = vld [vmem:[%s0 + $0x640] sm:$0xff]
  %v224 = vld [vmem:[%s0 + $0x648] sm:$0xff]
  %v225 = vld [vmem:[%s0 + $0x650] sm:$0xff]
  %v226 = vld [vmem:[%s0 + $0x658] sm:$0xff]
  %v227 = vld [vmem:[%s0 + $0x660] sm:$0xff]
  %v228 = vld [vmem:[%s0 + $0x668] sm:$0xff]
  %v229 = vld [vmem:[%s0 + $0x670] sm:$0xff]
  %v230 = vld [vmem:[%s0 + $0x678] sm:$0xff]
  %v231 = vld [vmem:[%s0 + $0x680] sm:$0xff]
  %v232 = vld [vmem:[%s0 + $0x688] sm:$0xff]
  %v233 = vld [vmem:[%s0 + $0x690] sm:$0xff]
  %v234 = vld [vmem:[%s0 + $0x698] sm:$0xff]
  %v235 = vld [vmem:[%s0 + $0x6a0] sm:$0xff]
  %v236 = vld [vmem:[%s0 + $0x6a8] sm:$0xff]
  %v237 = vld [vmem:[%s0 + $0x6b0] sm:$0xff]
  %v238 = vld [vmem:[%s0 + $0x6b8] sm:$0xff]
  %v239 = vld [vmem:[%s0 + $0x6c0] sm:$0xff]
  %v240 = vld [vmem:[%s0 + $0x6c8] sm:$0xff]
  %v241 = vld [vmem:[%s0 + $0x6d0] sm:$0xff]
  %v242 = vld [vmem:[%s0 + $0x6d8] sm:$0xff]
  %v243 = vld [vmem:[%s0 + $0x6e0] sm:$0xff]
  %v244 = vld [vmem:[%s0 + $0x6e8] sm:$0xff]
  %v245 = vld [vmem:[%s0 + $0x6f0] sm:$0xff]
  %v246 = vld [vmem:[%s0 + $0x6f8] sm:$0xff]
  %v247 = vld [vmem:[%s0 + $0x700] sm:$0xff]
  %v248 = vld [vmem:[%s0 + $0x708] sm:$0xff]
  %v249 = vld [vmem:[%s0 + $0x710] sm:$0xff]
  %v250 = vld [vmem:[%s0 + $0x718] sm:$0xff]
  %v251 = vld [vmem:[%s0 + $0x720] sm:$0xff]
  %v252 = vld [vmem:[%s0 + $0x728] sm:$0xff]
  %v253 = vld [vmem:[%s0 + $0x730] sm:$0xff]
  %v254 = vld [vmem:[%s0 + $0x738] sm:$0xff]
  %v255 = vld [vmem:[%s0 + $0x740] sm:$0xff]
  %v256 = vld [vmem:[%s0 + $0x748] sm:$0xff]
  %v257 = vld [vmem:[%s0 + $0x750] sm:$0xff]
  %v258 = vld [vmem:[%s0 + $0x758] sm:$0xff]
  %v259 = vld [vmem:[%s0 + $0x760] sm:$0xff]
  %v260 = vld [vmem:[%s0 + $0x768] sm:$0xff]
  %v261 = vld [vmem:[%s0 + $0x770] sm:$0xff]
  %v262 = vld [vmem:[%s0 + $0x778] sm:$0xff]
  %v263 = vld [vmem:[%s0 + $0x780] sm:$0xff]
  %v264 = vld [vmem:[%s0 + $0x788] sm:$0xff]
  %v265 = vld [vmem:[%s0 + $0x790] sm:$0xff]
  %v266 = vld [vmem:[%s0 + $0x798] sm:$0xff]
  %v267 = vld [vmem:[%s0 + $0x7a0] sm:$0xff]
  %v268 = vld [vmem:[%s0 + $0x7a8] sm:$0xff]
  %v269 = vld [vmem:[%s0 + $0x7b0] sm:$0xff]
  %v270 = vld [vmem:[%s0 + $0x7b8] sm:$0xff]
  %v271 = vld [vmem:[%s0 + $0x7c0] sm:$0xff]
  %v272 = vld [vmem:[%s0 + $0x7c8] sm:$0xff]
  %v273 = vld [vmem:[%s0 + $0x7d0] sm:$0xff]
  %v274 = vld [vmem:[%s0 + $0x7d8] sm:$0xff]
  %v275 = vld [vmem:[%s0 + $0x7e0] sm:$0xff]
  %v276 = vld [vmem:[%s0 + $0x7e8] sm:$0xff]
  %v277 = vld [vmem:[%s0 + $0x7f0] sm:$0xff]
  %v278 = vld [vmem:[%s0 + $0x7f8] sm:$0xff]
  %vm279 = vcmask 220160
  %v281 = vsel %vm279, %v23, 0
  %v284 = vsel %vm279, %v24, 0
  %v287 = vsel %vm279, %v25, 0
  %v290 = vsel %vm279, %v26, 0
  %v293 = vsel %vm279, %v27, 0
  %v296 = vsel %vm279, %v28, 0
  %v299 = vsel %vm279, %v29, 0
  %v302 = vsel %vm279, %v30, 0
  %v305 = vsel %vm279, %v31, 0
  %v308 = vsel %vm279, %v32, 0
  %v311 = vsel %vm279, %v33, 0
  %v314 = vsel %vm279, %v34, 0
  %v317 = vsel %vm279, %v35, 0
  %v320 = vsel %vm279, %v36, 0
  %v323 = vsel %vm279, %v37, 0
  %v326 = vsel %vm279, %v38, 0
  %v329 = vsel %vm279, %v39, 0
  %v332 = vsel %vm279, %v40, 0
  %v335 = vsel %vm279, %v41, 0
  %v338 = vsel %vm279, %v42, 0
  %v341 = vsel %vm279, %v43, 0
  %v344 = vsel %vm279, %v44, 0
  %v347 = vsel %vm279, %v45, 0
  %v350 = vsel %vm279, %v46, 0
  %v353 = vsel %vm279, %v47, 0
  %v356 = vsel %vm279, %v48, 0
  %v359 = vsel %vm279, %v49, 0
  %v362 = vsel %vm279, %v50, 0
  %v365 = vsel %vm279, %v51, 0
  %v368 = vsel %vm279, %v52, 0
  %v371 = vsel %vm279, %v53, 0
  %v374 = vsel %vm279, %v54, 0
  %v377 = vsel %vm279, %v55, 0
  %v380 = vsel %vm279, %v56, 0
  %v383 = vsel %vm279, %v57, 0
  %v386 = vsel %vm279, %v58, 0
  %v389 = vsel %vm279, %v59, 0
  %v392 = vsel %vm279, %v60, 0
  %v395 = vsel %vm279, %v61, 0
  %v398 = vsel %vm279, %v62, 0
  %v401 = vsel %vm279, %v63, 0
  %v404 = vsel %vm279, %v64, 0
  %v407 = vsel %vm279, %v65, 0
  %v410 = vsel %vm279, %v66, 0
  %v413 = vsel %vm279, %v67, 0
  %v416 = vsel %vm279, %v68, 0
  %v419 = vsel %vm279, %v69, 0
  %v422 = vsel %vm279, %v70, 0
  %v425 = vsel %vm279, %v71, 0
  %v428 = vsel %vm279, %v72, 0
  %v431 = vsel %vm279, %v73, 0
  %v434 = vsel %vm279, %v74, 0
  %v437 = vsel %vm279, %v75, 0
  %v440 = vsel %vm279, %v76, 0
  %v443 = vsel %vm279, %v77, 0
  %v446 = vsel %vm279, %v78, 0
  %v449 = vsel %vm279, %v79, 0
  %v452 = vsel %vm279, %v80, 0
  %v455 = vsel %vm279, %v81, 0
  %v458 = vsel %vm279, %v82, 0
  %v461 = vsel %vm279, %v83, 0
  %v464 = vsel %vm279, %v84, 0
  %v467 = vsel %vm279, %v85, 0
  %v470 = vsel %vm279, %v86, 0
  %v473 = vsel %vm279, %v87, 0
  %v476 = vsel %vm279, %v88, 0
  %v479 = vsel %vm279, %v89, 0
  %v482 = vsel %vm279, %v90, 0
  %v485 = vsel %vm279, %v91, 0
  %v488 = vsel %vm279, %v92, 0
  %v491 = vsel %vm279, %v93, 0
  %v494 = vsel %vm279, %v94, 0
  %v497 = vsel %vm279, %v95, 0
  %v500 = vsel %vm279, %v96, 0
  %v503 = vsel %vm279, %v97, 0
  %v506 = vsel %vm279, %v98, 0
  %v509 = vsel %vm279, %v99, 0
  %v512 = vsel %vm279, %v100, 0
  %v515 = vsel %vm279, %v101, 0
  %v518 = vsel %vm279, %v102, 0
  %v521 = vsel %vm279, %v103, 0
  %v524 = vsel %vm279, %v104, 0
  %v527 = vsel %vm279, %v105, 0
  %v530 = vsel %vm279, %v106, 0
  %v533 = vsel %vm279, %v107, 0
  %v536 = vsel %vm279, %v108, 0
  %v539 = vsel %vm279, %v109, 0
  %v542 = vsel %vm279, %v110, 0
  %v545 = vsel %vm279, %v111, 0
  %v548 = vsel %vm279, %v112, 0
  %v551 = vsel %vm279, %v113, 0
  %v554 = vsel %vm279, %v114, 0
  %v557 = vsel %vm279, %v115, 0
  %v560 = vsel %vm279, %v116, 0
  %v563 = vsel %vm279, %v117, 0
  %v566 = vsel %vm279, %v118, 0
  %v569 = vsel %vm279, %v119, 0
  %v572 = vsel %vm279, %v120, 0
  %v575 = vsel %vm279, %v121, 0
  %v578 = vsel %vm279, %v122, 0
  %v581 = vsel %vm279, %v123, 0
  %v584 = vsel %vm279, %v124, 0
  %v587 = vsel %vm279, %v125, 0
  %v590 = vsel %vm279, %v126, 0
  %v593 = vsel %vm279, %v127, 0
  %v596 = vsel %vm279, %v128, 0
  %v599 = vsel %vm279, %v129, 0
  %v602 = vsel %vm279, %v130, 0
  %v605 = vsel %vm279, %v131, 0
  %v608 = vsel %vm279, %v132, 0
  %v611 = vsel %vm279, %v133, 0
  %v614 = vsel %vm279, %v134, 0
  %v617 = vsel %vm279, %v135, 0
  %v620 = vsel %vm279, %v136, 0
  %v623 = vsel %vm279, %v137, 0
  %v626 = vsel %vm279, %v138, 0
  %v629 = vsel %vm279, %v139, 0
  %v632 = vsel %vm279, %v140, 0
  %v635 = vsel %vm279, %v141, 0
  %v638 = vsel %vm279, %v142, 0
  %v641 = vsel %vm279, %v143, 0
  %v644 = vsel %vm279, %v144, 0
  %v647 = vsel %vm279, %v145, 0
  %v650 = vsel %vm279, %v146, 0
  %v653 = vsel %vm279, %v147, 0
  %v656 = vsel %vm279, %v148, 0
  %v659 = vsel %vm279, %v149, 0
  %v662 = vsel %vm279, %v150, 0
  %v665 = vsel %vm279, %v151, 0
  %v668 = vsel %vm279, %v152, 0
  %v671 = vsel %vm279, %v153, 0
  %v674 = vsel %vm279, %v154, 0
  %v677 = vsel %vm279, %v155, 0
  %v680 = vsel %vm279, %v156, 0
  %v683 = vsel %vm279, %v157, 0
  %v686 = vsel %vm279, %v158, 0
  %v689 = vsel %vm279, %v159, 0
  %v692 = vsel %vm279, %v160, 0
  %v695 = vsel %vm279, %v161, 0
  %v698 = vsel %vm279, %v162, 0
  %v701 = vsel %vm279, %v163, 0
  %v704 = vsel %vm279, %v164, 0
  %v707 = vsel %vm279, %v165, 0
  %v710 = vsel %vm279, %v166, 0
  %v713 = vsel %vm279, %v167, 0
  %v716 = vsel %vm279, %v168, 0
  %v719 = vsel %vm279, %v169, 0
  %v722 = vsel %vm279, %v170, 0
  %v725 = vsel %vm279, %v171, 0
  %v728 = vsel %vm279, %v172, 0
  %v731 = vsel %vm279, %v173, 0
  %v734 = vsel %vm279, %v174, 0
  %v737 = vsel %vm279, %v175, 0
  %v740 = vsel %vm279, %v176, 0
  %v743 = vsel %vm279, %v177, 0
  %v746 = vsel %vm279, %v178, 0
  %v749 = vsel %vm279, %v179, 0
  %v752 = vsel %vm279, %v180, 0
  %v755 = vsel %vm279, %v181, 0
  %v758 = vsel %vm279, %v182, 0
  %v761 = vsel %vm279, %v183, 0
  %v764 = vsel %vm279, %v184, 0
  %v767 = vsel %vm279, %v185, 0
  %v770 = vsel %vm279, %v186, 0
  %v773 = vsel %vm279, %v187, 0
  %v776 = vsel %vm279, %v188, 0
  %v779 = vsel %vm279, %v189, 0
  %v782 = vsel %vm279, %v190, 0
  %v785 = vsel %vm279, %v191, 0
  %v788 = vsel %vm279, %v192, 0
  %v791 = vsel %vm279, %v193, 0
  %v794 = vsel %vm279, %v194, 0
  %v797 = vsel %vm279, %v195, 0
  %v800 = vsel %vm279, %v196, 0
  %v803 = vsel %vm279, %v197, 0
  %v806 = vsel %vm279, %v198, 0
  %v809 = vsel %vm279, %v199, 0
  %v812 = vsel %vm279, %v200, 0
  %v815 = vsel %vm279, %v201, 0
  %v818 = vsel %vm279, %v202, 0
  %v821 = vsel %vm279, %v203, 0
  %v824 = vsel %vm279, %v204, 0
  %v827 = vsel %vm279, %v205, 0
  %v830 = vsel %vm279, %v206, 0
  %v833 = vsel %vm279, %v207, 0
  %v836 = vsel %vm279, %v208, 0
  %v839 = vsel %vm279, %v209, 0
  %v842 = vsel %vm279, %v210, 0
  %v845 = vsel %vm279, %v211, 0
  %v848 = vsel %vm279, %v212, 0
  %v851 = vsel %vm279, %v213, 0
  %v854 = vsel %vm279, %v214, 0
  %v857 = vsel %vm279, %v215, 0
  %v860 = vsel %vm279, %v216, 0
  %v863 = vsel %vm279, %v217, 0
  %v866 = vsel %vm279, %v218, 0
  %v869 = vsel %vm279, %v219, 0
  %v872 = vsel %vm279, %v220, 0
  %v875 = vsel %vm279, %v221, 0
  %v878 = vsel %vm279, %v222, 0
  %v881 = vsel %vm279, %v223, 0
  %v884 = vsel %vm279, %v224, 0
  %v887 = vsel %vm279, %v225, 0
  %v890 = vsel %vm279, %v226, 0
  %v893 = vsel %vm279, %v227, 0
  %v896 = vsel %vm279, %v228, 0
  %v899 = vsel %vm279, %v229, 0
  %v902 = vsel %vm279, %v230, 0
  %v905 = vsel %vm279, %v231, 0
  %v908 = vsel %vm279, %v232, 0
  %v911 = vsel %vm279, %v233, 0
  %v914 = vsel %vm279, %v234, 0
  %v917 = vsel %vm279, %v235, 0
  %v920 = vsel %vm279, %v236, 0
  %v923 = vsel %vm279, %v237, 0
  %v926 = vsel %vm279, %v238, 0
  %v929 = vsel %vm279, %v239, 0
  %v932 = vsel %vm279, %v240, 0
  %v935 = vsel %vm279, %v241, 0
  %v938 = vsel %vm279, %v242, 0
  %v941 = vsel %vm279, %v243, 0
  %v944 = vsel %vm279, %v244, 0
  %v947 = vsel %vm279, %v245, 0
  %v950 = vsel %vm279, %v246, 0
  %v953 = vsel %vm279, %v247, 0
  %v956 = vsel %vm279, %v248, 0
  %v959 = vsel %vm279, %v249, 0
  %v962 = vsel %vm279, %v250, 0
  %v965 = vsel %vm279, %v251, 0
  %v968 = vsel %vm279, %v252, 0
  %v971 = vsel %vm279, %v253, 0
  %v974 = vsel %vm279, %v254, 0
  %v977 = vsel %vm279, %v255, 0
  %v980 = vsel %vm279, %v256, 0
  %v983 = vsel %vm279, %v257, 0
  %v986 = vsel %vm279, %v258, 0
  %v989 = vsel %vm279, %v259, 0
  %v992 = vsel %vm279, %v260, 0
  %v995 = vsel %vm279, %v261, 0
  %v998 = vsel %vm279, %v262, 0
  %v1001 = vsel %vm279, %v263, 0
  %v1004 = vsel %vm279, %v264, 0
  %v1007 = vsel %vm279, %v265, 0
  %v1010 = vsel %vm279, %v266, 0
  %v1013 = vsel %vm279, %v267, 0
  %v1016 = vsel %vm279, %v268, 0
  %v1019 = vsel %vm279, %v269, 0
  %v1022 = vsel %vm279, %v270, 0
  %v1025 = vsel %vm279, %v271, 0
  %v1028 = vsel %vm279, %v272, 0
  %v1031 = vsel %vm279, %v273, 0
  %v1034 = vsel %vm279, %v274, 0
  %v1037 = vsel %vm279, %v275, 0
  %v1040 = vsel %vm279, %v276, 0
  %v1043 = vsel %vm279, %v277, 0
  %v1046 = vsel %vm279, %v278, 0
  %vm1048 = vcmask 1042432
  %v1050 = vsel %vm1048, %v20, 0
  %1052 = vmatprep.subr.mxu0 0.0
  %1053 = vmatpush1.msra.mxu0 %v17
  %1054 = vmatprep.subr.mxu0 0.0
  %1055 = vmatpush1.msra.mxu0 %v18
  %1056 = vmatprep.subr.mxu0 0.0
  %1057 = vmatpush1.msra.mxu0 %v19
  %1058 = vmatprep.subr.mxu0 0.0
  %1059 = vmatpush1.msra.mxu0 %v1050
  %1060 = vmatprep.subr.mxu0 0.0
  %1061 = vmatpush1.msra.mxu0 0.0
  %1062 = vmatprep.subr.mxu0 0.0
  %1063 = vmatpush1.msra.mxu0 0.0
  %1064 = vmatprep.subr.mxu0 0.0
  %1065 = vmatpush1.msra.mxu0 0.0
  %1066 = vmatprep.subr.mxu0 0.0
  %1067 = vmatpush1.msra.mxu0 0.0
  %1068 = vmatprep.subr.mxu0 0.0
  %1069 = vmatpush1.msra.mxu0 0.0
  %1070 = vmatprep.subr.mxu0 0.0
  %1071 = vmatpush1.msra.mxu0 0.0
  %1072 = vmatprep.subr.mxu0 0.0
  %1073 = vmatpush1.msra.mxu0 0.0
  %1074 = vmatprep.subr.mxu0 0.0
  %1075 = vmatpush1.msra.mxu0 0.0
  %1076 = vmatprep.subr.mxu0 0.0
  %1077 = vmatpush1.msra.mxu0 0.0
  %1078 = vmatprep.subr.mxu0 0.0
  %1079 = vmatpush1.msra.mxu0 0.0
  %1080 = vmatprep.subr.mxu0 0.0
  %1081 = vmatpush1.msra.mxu0 0.0
  %1082 = vmatprep.subr.mxu0 0.0
  %1083 = vmatpush1.msra.mxu0 0.0
  %1084 = vmatprep.subr.mxu0 0.0
  %1085 = vmatpush1.msra.mxu0 0.0
  %1086 = vmatprep.subr.mxu0 0.0
  %1087 = vmatpush1.msra.mxu0 0.0
  %1088 = vmatprep.subr.mxu0 0.0
  %1089 = vmatpush1.msra.mxu0 0.0
  %1090 = vmatprep.subr.mxu0 0.0
  %1091 = vmatpush1.msra.mxu0 0.0
  %1092 = vmatprep.subr.mxu0 0.0
  %1093 = vmatpush1.msra.mxu0 0.0
  %1094 = vmatprep.subr.mxu0 0.0
  %1095 = vmatpush1.msra.mxu0 0.0
  %1096 = vmatprep.subr.mxu0 0.0
  %1097 = vmatpush1.msra.mxu0 0.0
  %1098 = vmatprep.subr.mxu0 0.0
  %1099 = vmatpush1.msra.mxu0 0.0
  %1100 = vmatprep.subr.mxu0 0.0
  %1101 = vmatpush1.msra.mxu0 0.0
  %1102 = vmatprep.subr.mxu0 0.0
  %1103 = vmatpush1.msra.mxu0 0.0
  %1104 = vmatprep.subr.mxu0 0.0
  %1105 = vmatpush1.msra.mxu0 0.0
  %1106 = vmatprep.subr.mxu0 0.0
  %1107 = vmatpush1.msra.mxu0 0.0
  %1108 = vmatprep.subr.mxu0 0.0
  %1109 = vmatpush1.msra.mxu0 0.0
  %1110 = vmatprep.subr.mxu0 0.0
  %1111 = vmatpush1.msra.mxu0 0.0
  %1112 = vmatprep.subr.mxu0 0.0
  %1113 = vmatpush1.msra.mxu0 0.0
  %1114 = vmatprep.subr.mxu0 0.0
  %1115 = vmatpush1.msra.mxu0 0.0
  %1116 = vmatprep.mubr.f32.mxu0 0.0
  %1117 = vmatmul.mubr.f32.gmra.mrb[0].mxu0 %v281
  %v1118 = vpop.f32.mrb[0].mxu0
  %v1119 = vadd.f32 0.0, %v1118
  %v1120 = vpop.f32.mrb[0].mxu0
  %1121 = vmatprep.mubr.f32.mxu0 0.0
  %1122 = vmatmul.mubr.f32.gmra.mrb[0].mxu0 %v284
  %v1123 = vpop.f32.mrb[0].mxu0
  %v1124 = vadd.f32 0.0, %v1123
  %v1125 = vpop.f32.mrb[0].mxu0
  %1126 = vmatprep.mubr.f32.mxu0 0.0
  %1127 = vmatmul.mubr.f32.gmra.mrb[0].mxu0 %v287
  %v1128 = vpop.f32.mrb[0].mxu0
  %v1129 = vadd.f32 0.0, %v1128
  %v1130 = vpop.f32.mrb[0].mxu0
  %1131 = vmatprep.mubr.f32.mxu0 0.0
  %1132 = vmatmul.mubr.f32.gmra.mrb[0].mxu0 %v290
  %v1133 = vpop.f32.mrb[0].mxu0
  %v1134 = vadd.f32 0.0, %v1133
  %v1135 = vpop.f32.mrb[0].mxu0
  %1136 = vmatprep.mubr.f32.mxu0 0.0
  %1137 = vmatmul.mubr.f32.gmra.mrb[0].mxu0 %v293
  %v1138 = vpop.f32.mrb[0].mxu0
  %v1139 = vadd.f32 0.0, %v1138
  %v1140 = vpop.f32.mrb[0].mxu0
  %1141 = vmatprep.mubr.f32.mxu0 0.0
  %1142 = vmatmul.mubr.f32.gmra.mrb[0].mxu0 %v296
  %v1143 = vpop.f32.mrb[0].mxu0
  %v1144 = vadd.f32 0.0, %v1143
  %v1145 = vpop.f32.mrb[0].mxu0
  %1146 = vmatprep.mubr.f32.mxu0 0.0
  %1147 = vmatmul.mubr.f32.gmra.mrb[0].mxu0 %v299
  %v1148 = vpop.f32.mrb[0].mxu0
  %v1149 = vadd.f32 0.0, %v1148
  %v1150 = vpop.f32.mrb[0].mxu0
  %1151 = vmatprep.mubr.f32.mxu0 0.0
  %1152 = vmatmul.mubr.f32.gmra.mrb[0].mxu0 %v302
  %v1153 = vpop.f32.mrb[0].mxu0
  %v1154 = vadd.f32 0.0, %v1153
  %v1155 = vpop.f32.mrb[0].mxu0
  %1156 = vmatprep.mubr.f32.mxu0 0.0
  %1157 = vmatmul.mubr.f32.gmra.mrb[0].mxu0 %v305
  %v1158 = vpop.f32.mrb[0].mxu0
  %v1159 = vadd.f32 0.0, %v1158
  %v1160 = vpop.f32.mrb[0].mxu0
  %1161 = vmatprep.mubr.f32.mxu0 0.0
  %1162 = vmatmul.mubr.f32.gmra.mrb[0].mxu0 %v308
  %v1163 = vpop.f32.mrb[0].mxu0
  %v1164 = vadd.f32 0.0, %v1163
  %v1165 = vpop.f32.mrb[0].mxu0
  %1166 = vmatprep.mubr.f32.mxu0 0.0
  %1167 = vmatmul.mubr.f32.gmra.mrb[0].mxu0 %v311
  %v1168 = vpop.f32.mrb[0].mxu0
  %v1169 = vadd.f32 0.0, %v1168
  %v1170 = vpop.f32.mrb[0].mxu0
  %1171 = vmatprep.mubr.f32.mxu0 0.0
  %1172 = vmatmul.mubr.f32.gmra.mrb[0].mxu0 %v314
  %v1173 = vpop.f32.mrb[0].mxu0
  %v1174 = vadd.f32 0.0, %v1173
  %v1175 = vpop.f32.mrb[0].mxu0
  %1176 = vmatprep.mubr.f32.mxu0 0.0
  %1177 = vmatmul.mubr.f32.gmra.mrb[0].mxu0 %v317
  %v1178 = vpop.f32.mrb[0].mxu0
  %v1179 = vadd.f32 0.0, %v1178
  %v1180 = vpop.f32.mrb[0].mxu0
  %1181 = vmatprep.mubr.f32.mxu0 0.0
  %1182 = vmatmul.mubr.f32.gmra.mrb[0].mxu0 %v320
  %v1183 = vpop.f32.mrb[0].mxu0
  %v1184 = vadd.f32 0.0, %v1183
  %v1185 = vpop.f32.mrb[0].mxu0
  %1186 = vmatprep.mubr.f32.mxu0 0.0
  %1187 = vmatmul.mubr.f32.gmra.mrb[0].mxu0 %v323
  %v1188 = vpop.f32.mrb[0].mxu0
  %v1189 = vadd.f32 0.0, %v1188
  %v1190 = vpop.f32.mrb[0].mxu0
  %1191 = vmatprep.mubr.f32.mxu0 0.0
  %1192 = vmatmul.mubr.f32.gmra.mrb[0].mxu0 %v326
  %v1193 = vpop.f32.mrb[0].mxu0
  %v1194 = vadd.f32 0.0, %v1193
  %v1195 = vpop.f32.mrb[0].mxu0
  %1196 = vmatprep.mubr.f32.mxu0 0.0
  %1197 = vmatmul.mubr.f32.gmra.mrb[0].mxu0 %v329
  %v1198 = vpop.f32.mrb[0].mxu0
  %v1199 = vadd.f32 0.0, %v1198
  %v1200 = vpop.f32.mrb[0].mxu0
  %1201 = vmatprep.mubr.f32.mxu0 0.0
  %1202 = vmatmul.mubr.f32.gmra.mrb[0].mxu0 %v332
  %v1203 = vpop.f32.mrb[0].mxu0
  %v1204 = vadd.f32 0.0, %v1203
  %v1205 = vpop.f32.mrb[0].mxu0
  %1206 = vmatprep.mubr.f32.mxu0 0.0
  %1207 = vmatmul.mubr.f32.gmra.mrb[0].mxu0 %v335
  %v1208 = vpop.f32.mrb[0].mxu0
  %v1209 = vadd.f32 0.0, %v1208
  %v1210 = vpop.f32.mrb[0].mxu0
  %1211 = vmatprep.mubr.f32.mxu0 0.0
  %1212 = vmatmul.mubr.f32.gmra.mrb[0].mxu0 %v338
  %v1213 = vpop.f32.mrb[0].mxu0
  %v1214 = vadd.f32 0.0, %v1213
  %v1215 = vpop.f32.mrb[0].mxu0
  %1216 = vmatprep.mubr.f32.mxu0 0.0
  %1217 = vmatmul.mubr.f32.gmra.mrb[0].mxu0 %v341
  %v1218 = vpop.f32.mrb[0].mxu0
  %v1219 = vadd.f32 0.0, %v1218
  %v1220 = vpop.f32.mrb[0].mxu0
  %1221 = vmatprep.mubr.f32.mxu0 0.0
  %1222 = vmatmul.mubr.f32.gmra.mrb[0].mxu0 %v344
  %v1223 = vpop.f32.mrb[0].mxu0
  %v1224 = vadd.f32 0.0, %v1223
  %v1225 = vpop.f32.mrb[0].mxu0
  %1226 = vmatprep.mubr.f32.mxu0 0.0
  %1227 = vmatmul.mubr.f32.gmra.mrb[0].mxu0 %v347
  %v1228 = vpop.f32.mrb[0].mxu0
  %v1229 = vadd.f32 0.0, %v1228
  %v1230 = vpop.f32.mrb[0].mxu0
  %1231 = vmatprep.mubr.f32.mxu0 0.0
  %1232 = vmatmul.mubr.f32.gmra.mrb[0].mxu0 %v350
  %v1233 = vpop.f32.mrb[0].mxu0
  %v1234 = vadd.f32 0.0, %v1233
  %v1235 = vpop.f32.mrb[0].mxu0
  %1236 = vmatprep.mubr.f32.mxu0 0.0
  %1237 = vmatmul.mubr.f32.gmra.mrb[0].mxu0 %v353
  %v1238 = vpop.f32.mrb[0].mxu0
  %v1239 = vadd.f32 0.0, %v1238
  %v1240 = vpop.f32.mrb[0].mxu0
  %1241 = vmatprep.mubr.f32.mxu0 0.0
  %1242 = vmatmul.mubr.f32.gmra.mrb[0].mxu0 %v356
  %v1243 = vpop.f32.mrb[0].mxu0
  %v1244 = vadd.f32 0.0, %v1243
  %v1245 = vpop.f32.mrb[0].mxu0
  %1246 = vmatprep.mubr.f32.mxu0 0.0
  %1247 = vmatmul.mubr.f32.gmra.mrb[0].mxu0 %v359
  %v1248 = vpop.f32.mrb[0].mxu0
  %v1249 = vadd.f32 0.0, %v1248
  %v1250 = vpop.f32.mrb[0].mxu0
  %1251 = vmatprep.mubr.f32.mxu0 0.0
  %1252 = vmatmul.mubr.f32.gmra.mrb[0].mxu0 %v362
  %v1253 = vpop.f32.mrb[0].mxu0
  %v1254 = vadd.f32 0.0, %v1253
  %v1255 = vpop.f32.mrb[0].mxu0
  %1256 = vmatprep.mubr.f32.mxu0 0.0
  %1257 = vmatmul.mubr.f32.gmra.mrb[0].mxu0 %v365
  %v1258 = vpop.f32.mrb[0].mxu0
  %v1259 = vadd.f32 0.0, %v1258
  %v1260 = vpop.f32.mrb[0].mxu0
  %1261 = vmatprep.mubr.f32.mxu0 0.0
  %1262 = vmatmul.mubr.f32.gmra.mrb[0].mxu0 %v368
  %v1263 = vpop.f32.mrb[0].mxu0
  %v1264 = vadd.f32 0.0, %v1263
  %v1265 = vpop.f32.mrb[0].mxu0
  %1266 = vmatprep.mubr.f32.mxu0 0.0
  %1267 = vmatmul.mubr.f32.gmra.mrb[0].mxu0 %v371
  %v1268 = vpop.f32.mrb[0].mxu0
  %v1269 = vadd.f32 0.0, %v1268
  %v1270 = vpop.f32.mrb[0].mxu0
  %1271 = vmatprep.mubr.f32.mxu0 0.0
  %1272 = vmatmul.mubr.f32.gmra.mrb[0].mxu0 %v374
  %v1273 = vpop.f32.mrb[0].mxu0
  %v1274 = vadd.f32 0.0, %v1273
  %v1275 = vpop.f32.mrb[0].mxu0
  %1276 = vmatprep.mubr.f32.mxu0 0.0
  %1277 = vmatmul.mubr.f32.gmra.mrb[0].mxu0 %v377
  %v1278 = vpop.f32.mrb[0].mxu0
  %v1279 = vadd.f32 0.0, %v1278
  %v1280 = vpop.f32.mrb[0].mxu0
  %1281 = vmatprep.mubr.f32.mxu0 0.0
  %1282 = vmatmul.mubr.f32.gmra.mrb[0].mxu0 %v380
  %v1283 = vpop.f32.mrb[0].mxu0
  %v1284 = vadd.f32 0.0, %v1283
  %v1285 = vpop.f32.mrb[0].mxu0
  %1286 = vmatprep.mubr.f32.mxu0 0.0
  %1287 = vmatmul.mubr.f32.gmra.mrb[0].mxu0 %v383
  %v1288 = vpop.f32.mrb[0].mxu0
  %v1289 = vadd.f32 0.0, %v1288
  %v1290 = vpop.f32.mrb[0].mxu0
  %1291 = vmatprep.mubr.f32.mxu0 0.0
  %1292 = vmatmul.mubr.f32.gmra.mrb[0].mxu0 %v386
  %v1293 = vpop.f32.mrb[0].mxu0
  %v1294 = vadd.f32 0.0, %v1293
  %v1295 = vpop.f32.mrb[0].mxu0
  %1296 = vmatprep.mubr.f32.mxu0 0.0
  %1297 = vmatmul.mubr.f32.gmra.mrb[0].mxu0 %v389
  %v1298 = vpop.f32.mrb[0].mxu0
  %v1299 = vadd.f32 0.0, %v1298
  %v1300 = vpop.f32.mrb[0].mxu0
  %1301 = vmatprep.mubr.f32.mxu0 0.0
  %1302 = vmatmul.mubr.f32.gmra.mrb[0].mxu0 %v392
  %v1303 = vpop.f32.mrb[0].mxu0
  %v1304 = vadd.f32 0.0, %v1303
  %v1305 = vpop.f32.mrb[0].mxu0
  %1306 = vmatprep.mubr.f32.mxu0 0.0
  %1307 = vmatmul.mubr.f32.gmra.mrb[0].mxu0 %v395
  %v1308 = vpop.f32.mrb[0].mxu0
  %v1309 = vadd.f32 0.0, %v1308
  %v1310 = vpop.f32.mrb[0].mxu0
  %1311 = vmatprep.mubr.f32.mxu0 0.0
  %1312 = vmatmul.mubr.f32.gmra.mrb[0].mxu0 %v398
  %v1313 = vpop.f32.mrb[0].mxu0
  %v1314 = vadd.f32 0.0, %v1313
  %v1315 = vpop.f32.mrb[0].mxu0
  %1316 = vmatprep.mubr.f32.mxu0 0.0
  %1317 = vmatmul.mubr.f32.gmra.mrb[0].mxu0 %v401
  %v1318 = vpop.f32.mrb[0].mxu0
  %v1319 = vadd.f32 0.0, %v1318
  %v1320 = vpop.f32.mrb[0].mxu0
  %1321 = vmatprep.mubr.f32.mxu0 0.0
  %1322 = vmatmul.mubr.f32.gmra.mrb[0].mxu0 %v404
  %v1323 = vpop.f32.mrb[0].mxu0
  %v1324 = vadd.f32 0.0, %v1323
  %v1325 = vpop.f32.mrb[0].mxu0
  %1326 = vmatprep.mubr.f32.mxu0 0.0
  %1327 = vmatmul.mubr.f32.gmra.mrb[0].mxu0 %v407
  %v1328 = vpop.f32.mrb[0].mxu0
  %v1329 = vadd.f32 0.0, %v1328
  %v1330 = vpop.f32.mrb[0].mxu0
  %1331 = vmatprep.mubr.f32.mxu0 0.0
  %1332 = vmatmul.mubr.f32.gmra.mrb[0].mxu0 %v410
  %v1333 = vpop.f32.mrb[0].mxu0
  %v1334 = vadd.f32 0.0, %v1333
  %v1335 = vpop.f32.mrb[0].mxu0
  %1336 = vmatprep.mubr.f32.mxu0 0.0
  %1337 = vmatmul.mubr.f32.gmra.mrb[0].mxu0 %v413
  %v1338 = vpop.f32.mrb[0].mxu0
  %v1339 = vadd.f32 0.0, %v1338
  %v1340 = vpop.f32.mrb[0].mxu0
  %1341 = vmatprep.mubr.f32.mxu0 0.0
  %1342 = vmatmul.mubr.f32.gmra.mrb[0].mxu0 %v416
  %v1343 = vpop.f32.mrb[0].mxu0
  %v1344 = vadd.f32 0.0, %v1343
  %v1345 = vpop.f32.mrb[0].mxu0
  %1346 = vmatprep.mubr.f32.mxu0 0.0
  %1347 = vmatmul.mubr.f32.gmra.mrb[0].mxu0 %v419
  %v1348 = vpop.f32.mrb[0].mxu0
  %v1349 = vadd.f32 0.0, %v1348
  %v1350 = vpop.f32.mrb[0].mxu0
  %1351 = vmatprep.mubr.f32.mxu0 0.0
  %1352 = vmatmul.mubr.f32.gmra.mrb[0].mxu0 %v422
  %v1353 = vpop.f32.mrb[0].mxu0
  %v1354 = vadd.f32 0.0, %v1353
  %v1355 = vpop.f32.mrb[0].mxu0
  %1356 = vmatprep.mubr.f32.mxu0 0.0
  %1357 = vmatmul.mubr.f32.gmra.mrb[0].mxu0 %v425
  %v1358 = vpop.f32.mrb[0].mxu0
  %v1359 = vadd.f32 0.0, %v1358
  %v1360 = vpop.f32.mrb[0].mxu0
  %1361 = vmatprep.mubr.f32.mxu0 0.0
  %1362 = vmatmul.mubr.f32.gmra.mrb[0].mxu0 %v428
  %v1363 = vpop.f32.mrb[0].mxu0
  %v1364 = vadd.f32 0.0, %v1363
  %v1365 = vpop.f32.mrb[0].mxu0
  %1366 = vmatprep.mubr.f32.mxu0 0.0
  %1367 = vmatmul.mubr.f32.gmra.mrb[0].mxu0 %v431
  %v1368 = vpop.f32.mrb[0].mxu0
  %v1369 = vadd.f32 0.0, %v1368
  %v1370 = vpop.f32.mrb[0].mxu0
  %1371 = vmatprep.mubr.f32.mxu0 0.0
  %1372 = vmatmul.mubr.f32.gmra.mrb[0].mxu0 %v434
  %v1373 = vpop.f32.mrb[0].mxu0
  %v1374 = vadd.f32 0.0, %v1373
  %v1375 = vpop.f32.mrb[0].mxu0
  %1376 = vmatprep.mubr.f32.mxu0 0.0
  %1377 = vmatmul.mubr.f32.gmra.mrb[0].mxu0 %v437
  %v1378 = vpop.f32.mrb[0].mxu0
  %v1379 = vadd.f32 0.0, %v1378
  %v1380 = vpop.f32.mrb[0].mxu0
  %1381 = vmatprep.mubr.f32.mxu0 0.0
  %1382 = vmatmul.mubr.f32.gmra.mrb[0].mxu0 %v440
  %v1383 = vpop.f32.mrb[0].mxu0
  %v1384 = vadd.f32 0.0, %v1383
  %v1385 = vpop.f32.mrb[0].mxu0
  %1386 = vmatprep.mubr.f32.mxu0 0.0
  %1387 = vmatmul.mubr.f32.gmra.mrb[0].mxu0 %v443
  %v1388 = vpop.f32.mrb[0].mxu0
  %v1389 = vadd.f32 0.0, %v1388
  %v1390 = vpop.f32.mrb[0].mxu0
  %1391 = vmatprep.mubr.f32.mxu0 0.0
  %1392 = vmatmul.mubr.f32.gmra.mrb[0].mxu0 %v446
  %v1393 = vpop.f32.mrb[0].mxu0
  %v1394 = vadd.f32 0.0, %v1393
  %v1395 = vpop.f32.mrb[0].mxu0
  %1396 = vmatprep.mubr.f32.mxu0 0.0
  %1397 = vmatmul.mubr.f32.gmra.mrb[0].mxu0 %v449
  %v1398 = vpop.f32.mrb[0].mxu0
  %v1399 = vadd.f32 0.0, %v1398
  %v1400 = vpop.f32.mrb[0].mxu0
  %1401 = vmatprep.mubr.f32.mxu0 0.0
  %1402 = vmatmul.mubr.f32.gmra.mrb[0].mxu0 %v452
  %v1403 = vpop.f32.mrb[0].mxu0
  %v1404 = vadd.f32 0.0, %v1403
  %v1405 = vpop.f32.mrb[0].mxu0
  %1406 = vmatprep.mubr.f32.mxu0 0.0
  %1407 = vmatmul.mubr.f32.gmra.mrb[0].mxu0 %v455
  %v1408 = vpop.f32.mrb[0].mxu0
  %v1409 = vadd.f32 0.0, %v1408
  %v1410 = vpop.f32.mrb[0].mxu0
  %1411 = vmatprep.mubr.f32.mxu0 0.0
  %1412 = vmatmul.mubr.f32.gmra.mrb[0].mxu0 %v458
  %v1413 = vpop.f32.mrb[0].mxu0
  %v1414 = vadd.f32 0.0, %v1413
  %v1415 = vpop.f32.mrb[0].mxu0
  %1416 = vmatprep.mubr.f32.mxu0 0.0
  %1417 = vmatmul.mubr.f32.gmra.mrb[0].mxu0 %v461
  %v1418 = vpop.f32.mrb[0].mxu0
  %v1419 = vadd.f32 0.0, %v1418
  %v1420 = vpop.f32.mrb[0].mxu0
  %1421 = vmatprep.mubr.f32.mxu0 0.0
  %1422 = vmatmul.mubr.f32.gmra.mrb[0].mxu0 %v464
  %v1423 = vpop.f32.mrb[0].mxu0
  %v1424 = vadd.f32 0.0, %v1423
  %v1425 = vpop.f32.mrb[0].mxu0
  %1426 = vmatprep.mubr.f32.mxu0 0.0
  %1427 = vmatmul.mubr.f32.gmra.mrb[0].mxu0 %v467
  %v1428 = vpop.f32.mrb[0].mxu0
  %v1429 = vadd.f32 0.0, %v1428
  %v1430 = vpop.f32.mrb[0].mxu0
  %1431 = vmatprep.mubr.f32.mxu0 0.0
  %1432 = vmatmul.mubr.f32.gmra.mrb[0].mxu0 %v470
  %v1433 = vpop.f32.mrb[0].mxu0
  %v1434 = vadd.f32 0.0, %v1433
  %v1435 = vpop.f32.mrb[0].mxu0
  %1436 = vmatprep.mubr.f32.mxu0 0.0
  %1437 = vmatmul.mubr.f32.gmra.mrb[0].mxu0 %v473
  %v1438 = vpop.f32.mrb[0].mxu0
  %v1439 = vadd.f32 0.0, %v1438
  %v1440 = vpop.f32.mrb[0].mxu0
  %1441 = vmatprep.mubr.f32.mxu0 0.0
  %1442 = vmatmul.mubr.f32.gmra.mrb[0].mxu0 %v476
  %v1443 = vpop.f32.mrb[0].mxu0
  %v1444 = vadd.f32 0.0, %v1443
  %v1445 = vpop.f32.mrb[0].mxu0
  %1446 = vmatprep.mubr.f32.mxu0 0.0
  %1447 = vmatmul.mubr.f32.gmra.mrb[0].mxu0 %v479
  %v1448 = vpop.f32.mrb[0].mxu0
  %v1449 = vadd.f32 0.0, %v1448
  %v1450 = vpop.f32.mrb[0].mxu0
  %1451 = vmatprep.mubr.f32.mxu0 0.0
  %1452 = vmatmul.mubr.f32.gmra.mrb[0].mxu0 %v482
  %v1453 = vpop.f32.mrb[0].mxu0
  %v1454 = vadd.f32 0.0, %v1453
  %v1455 = vpop.f32.mrb[0].mxu0
  %1456 = vmatprep.mubr.f32.mxu0 0.0
  %1457 = vmatmul.mubr.f32.gmra.mrb[0].mxu0 %v485
  %v1458 = vpop.f32.mrb[0].mxu0
  %v1459 = vadd.f32 0.0, %v1458
  %v1460 = vpop.f32.mrb[0].mxu0
  %1461 = vmatprep.mubr.f32.mxu0 0.0
  %1462 = vmatmul.mubr.f32.gmra.mrb[0].mxu0 %v488
  %v1463 = vpop.f32.mrb[0].mxu0
  %v1464 = vadd.f32 0.0, %v1463
  %v1465 = vpop.f32.mrb[0].mxu0
  %1466 = vmatprep.mubr.f32.mxu0 0.0
  %1467 = vmatmul.mubr.f32.gmra.mrb[0].mxu0 %v491
  %v1468 = vpop.f32.mrb[0].mxu0
  %v1469 = vadd.f32 0.0, %v1468
  %v1470 = vpop.f32.mrb[0].mxu0
  %1471 = vmatprep.mubr.f32.mxu0 0.0
  %1472 = vmatmul.mubr.f32.gmra.mrb[0].mxu0 %v494
  %v1473 = vpop.f32.mrb[0].mxu0
  %v1474 = vadd.f32 0.0, %v1473
  %v1475 = vpop.f32.mrb[0].mxu0
  %1476 = vmatprep.mubr.f32.mxu0 0.0
  %1477 = vmatmul.mubr.f32.gmra.mrb[0].mxu0 %v497
  %v1478 = vpop.f32.mrb[0].mxu0
  %v1479 = vadd.f32 0.0, %v1478
  %v1480 = vpop.f32.mrb[0].mxu0
  %1481 = vmatprep.mubr.f32.mxu0 0.0
  %1482 = vmatmul.mubr.f32.gmra.mrb[0].mxu0 %v500
  %v1483 = vpop.f32.mrb[0].mxu0
  %v1484 = vadd.f32 0.0, %v1483
  %v1485 = vpop.f32.mrb[0].mxu0
  %1486 = vmatprep.mubr.f32.mxu0 0.0
  %1487 = vmatmul.mubr.f32.gmra.mrb[0].mxu0 %v503
  %v1488 = vpop.f32.mrb[0].mxu0
  %v1489 = vadd.f32 0.0, %v1488
  %v1490 = vpop.f32.mrb[0].mxu0
  %1491 = vmatprep.mubr.f32.mxu0 0.0
  %1492 = vmatmul.mubr.f32.gmra.mrb[0].mxu0 %v506
  %v1493 = vpop.f32.mrb[0].mxu0
  %v1494 = vadd.f32 0.0, %v1493
  %v1495 = vpop.f32.mrb[0].mxu0
  %1496 = vmatprep.mubr.f32.mxu0 0.0
  %1497 = vmatmul.mubr.f32.gmra.mrb[0].mxu0 %v509
  %v1498 = vpop.f32.mrb[0].mxu0
  %v1499 = vadd.f32 0.0, %v1498
  %v1500 = vpop.f32.mrb[0].mxu0
  %1501 = vmatprep.mubr.f32.mxu0 0.0
  %1502 = vmatmul.mubr.f32.gmra.mrb[0].mxu0 %v512
  %v1503 = vpop.f32.mrb[0].mxu0
  %v1504 = vadd.f32 0.0, %v1503
  %v1505 = vpop.f32.mrb[0].mxu0
  %1506 = vmatprep.mubr.f32.mxu0 0.0
  %1507 = vmatmul.mubr.f32.gmra.mrb[0].mxu0 %v515
  %v1508 = vpop.f32.mrb[0].mxu0
  %v1509 = vadd.f32 0.0, %v1508
  %v1510 = vpop.f32.mrb[0].mxu0
  %1511 = vmatprep.mubr.f32.mxu0 0.0
  %1512 = vmatmul.mubr.f32.gmra.mrb[0].mxu0 %v518
  %v1513 = vpop.f32.mrb[0].mxu0
  %v1514 = vadd.f32 0.0, %v1513
  %v1515 = vpop.f32.mrb[0].mxu0
  %1516 = vmatprep.mubr.f32.mxu0 0.0
  %1517 = vmatmul.mubr.f32.gmra.mrb[0].mxu0 %v521
  %v1518 = vpop.f32.mrb[0].mxu0
  %v1519 = vadd.f32 0.0, %v1518
  %v1520 = vpop.f32.mrb[0].mxu0
  %1521 = vmatprep.mubr.f32.mxu0 0.0
  %1522 = vmatmul.mubr.f32.gmra.mrb[0].mxu0 %v524
  %v1523 = vpop.f32.mrb[0].mxu0
  %v1524 = vadd.f32 0.0, %v1523
  %v1525 = vpop.f32.mrb[0].mxu0
  %1526 = vmatprep.mubr.f32.mxu0 0.0
  %1527 = vmatmul.mubr.f32.gmra.mrb[0].mxu0 %v527
  %v1528 = vpop.f32.mrb[0].mxu0
  %v1529 = vadd.f32 0.0, %v1528
  %v1530 = vpop.f32.mrb[0].mxu0
  %1531 = vmatprep.mubr.f32.mxu0 0.0
  %1532 = vmatmul.mubr.f32.gmra.mrb[0].mxu0 %v530
  %v1533 = vpop.f32.mrb[0].mxu0
  %v1534 = vadd.f32 0.0, %v1533
  %v1535 = vpop.f32.mrb[0].mxu0
  %1536 = vmatprep.mubr.f32.mxu0 0.0
  %1537 = vmatmul.mubr.f32.gmra.mrb[0].mxu0 %v533
  %v1538 = vpop.f32.mrb[0].mxu0
  %v1539 = vadd.f32 0.0, %v1538
  %v1540 = vpop.f32.mrb[0].mxu0
  %1541 = vmatprep.mubr.f32.mxu0 0.0
  %1542 = vmatmul.mubr.f32.gmra.mrb[0].mxu0 %v536
  %v1543 = vpop.f32.mrb[0].mxu0
  %v1544 = vadd.f32 0.0, %v1543
  %v1545 = vpop.f32.mrb[0].mxu0
  %1546 = vmatprep.mubr.f32.mxu0 0.0
  %1547 = vmatmul.mubr.f32.gmra.mrb[0].mxu0 %v539
  %v1548 = vpop.f32.mrb[0].mxu0
  %v1549 = vadd.f32 0.0, %v1548
  %v1550 = vpop.f32.mrb[0].mxu0
  %1551 = vmatprep.mubr.f32.mxu0 0.0
  %1552 = vmatmul.mubr.f32.gmra.mrb[0].mxu0 %v542
  %v1553 = vpop.f32.mrb[0].mxu0
  %v1554 = vadd.f32 0.0, %v1553
  %v1555 = vpop.f32.mrb[0].mxu0
  %1556 = vmatprep.mubr.f32.mxu0 0.0
  %1557 = vmatmul.mubr.f32.gmra.mrb[0].mxu0 %v545
  %v1558 = vpop.f32.mrb[0].mxu0
  %v1559 = vadd.f32 0.0, %v1558
  %v1560 = vpop.f32.mrb[0].mxu0
  %1561 = vmatprep.mubr.f32.mxu0 0.0
  %1562 = vmatmul.mubr.f32.gmra.mrb[0].mxu0 %v548
  %v1563 = vpop.f32.mrb[0].mxu0
  %v1564 = vadd.f32 0.0, %v1563
  %v1565 = vpop.f32.mrb[0].mxu0
  %1566 = vmatprep.mubr.f32.mxu0 0.0
  %1567 = vmatmul.mubr.f32.gmra.mrb[0].mxu0 %v551
  %v1568 = vpop.f32.mrb[0].mxu0
  %v1569 = vadd.f32 0.0, %v1568
  %v1570 = vpop.f32.mrb[0].mxu0
  %1571 = vmatprep.mubr.f32.mxu0 0.0
  %1572 = vmatmul.mubr.f32.gmra.mrb[0].mxu0 %v554
  %v1573 = vpop.f32.mrb[0].mxu0
  %v1574 = vadd.f32 0.0, %v1573
  %v1575 = vpop.f32.mrb[0].mxu0
  %1576 = vmatprep.mubr.f32.mxu0 0.0
  %1577 = vmatmul.mubr.f32.gmra.mrb[0].mxu0 %v557
  %v1578 = vpop.f32.mrb[0].mxu0
  %v1579 = vadd.f32 0.0, %v1578
  %v1580 = vpop.f32.mrb[0].mxu0
  %1581 = vmatprep.mubr.f32.mxu0 0.0
  %1582 = vmatmul.mubr.f32.gmra.mrb[0].mxu0 %v560
  %v1583 = vpop.f32.mrb[0].mxu0
  %v1584 = vadd.f32 0.0, %v1583
  %v1585 = vpop.f32.mrb[0].mxu0
  %1586 = vmatprep.mubr.f32.mxu0 0.0
  %1587 = vmatmul.mubr.f32.gmra.mrb[0].mxu0 %v563
  %v1588 = vpop.f32.mrb[0].mxu0
  %v1589 = vadd.f32 0.0, %v1588
  %v1590 = vpop.f32.mrb[0].mxu0
  %1591 = vmatprep.mubr.f32.mxu0 0.0
  %1592 = vmatmul.mubr.f32.gmra.mrb[0].mxu0 %v566
  %v1593 = vpop.f32.mrb[0].mxu0
  %v1594 = vadd.f32 0.0, %v1593
  %v1595 = vpop.f32.mrb[0].mxu0
  %1596 = vmatprep.mubr.f32.mxu0 0.0
  %1597 = vmatmul.mubr.f32.gmra.mrb[0].mxu0 %v569
  %v1598 = vpop.f32.mrb[0].mxu0
  %v1599 = vadd.f32 0.0, %v1598
  %v1600 = vpop.f32.mrb[0].mxu0
  %1601 = vmatprep.mubr.f32.mxu0 0.0
  %1602 = vmatmul.mubr.f32.gmra.mrb[0].mxu0 %v572
  %v1603 = vpop.f32.mrb[0].mxu0
  %v1604 = vadd.f32 0.0, %v1603
  %v1605 = vpop.f32.mrb[0].mxu0
  %1606 = vmatprep.mubr.f32.mxu0 0.0
  %1607 = vmatmul.mubr.f32.gmra.mrb[0].mxu0 %v575
  %v1608 = vpop.f32.mrb[0].mxu0
  %v1609 = vadd.f32 0.0, %v1608
  %v1610 = vpop.f32.mrb[0].mxu0
  %1611 = vmatprep.mubr.f32.mxu0 0.0
  %1612 = vmatmul.mubr.f32.gmra.mrb[0].mxu0 %v578
  %v1613 = vpop.f32.mrb[0].mxu0
  %v1614 = vadd.f32 0.0, %v1613
  %v1615 = vpop.f32.mrb[0].mxu0
  %1616 = vmatprep.mubr.f32.mxu0 0.0
  %1617 = vmatmul.mubr.f32.gmra.mrb[0].mxu0 %v581
  %v1618 = vpop.f32.mrb[0].mxu0
  %v1619 = vadd.f32 0.0, %v1618
  %v1620 = vpop.f32.mrb[0].mxu0
  %1621 = vmatprep.mubr.f32.mxu0 0.0
  %1622 = vmatmul.mubr.f32.gmra.mrb[0].mxu0 %v584
  %v1623 = vpop.f32.mrb[0].mxu0
  %v1624 = vadd.f32 0.0, %v1623
  %v1625 = vpop.f32.mrb[0].mxu0
  %1626 = vmatprep.mubr.f32.mxu0 0.0
  %1627 = vmatmul.mubr.f32.gmra.mrb[0].mxu0 %v587
  %v1628 = vpop.f32.mrb[0].mxu0
  %v1629 = vadd.f32 0.0, %v1628
  %v1630 = vpop.f32.mrb[0].mxu0
  %1631 = vmatprep.mubr.f32.mxu0 0.0
  %1632 = vmatmul.mubr.f32.gmra.mrb[0].mxu0 %v590
  %v1633 = vpop.f32.mrb[0].mxu0
  %v1634 = vadd.f32 0.0, %v1633
  %v1635 = vpop.f32.mrb[0].mxu0
  %1636 = vmatprep.mubr.f32.mxu0 0.0
  %1637 = vmatmul.mubr.f32.gmra.mrb[0].mxu0 %v593
  %v1638 = vpop.f32.mrb[0].mxu0
  %v1639 = vadd.f32 0.0, %v1638
  %v1640 = vpop.f32.mrb[0].mxu0
  %1641 = vmatprep.mubr.f32.mxu0 0.0
  %1642 = vmatmul.mubr.f32.gmra.mrb[0].mxu0 %v596
  %v1643 = vpop.f32.mrb[0].mxu0
  %v1644 = vadd.f32 0.0, %v1643
  %v1645 = vpop.f32.mrb[0].mxu0
  %1646 = vmatprep.mubr.f32.mxu0 0.0
  %1647 = vmatmul.mubr.f32.gmra.mrb[0].mxu0 %v599
  %v1648 = vpop.f32.mrb[0].mxu0
  %v1649 = vadd.f32 0.0, %v1648
  %v1650 = vpop.f32.mrb[0].mxu0
  %1651 = vmatprep.mubr.f32.mxu0 0.0
  %1652 = vmatmul.mubr.f32.gmra.mrb[0].mxu0 %v602
  %v1653 = vpop.f32.mrb[0].mxu0
  %v1654 = vadd.f32 0.0, %v1653
  %v1655 = vpop.f32.mrb[0].mxu0
  %1656 = vmatprep.mubr.f32.mxu0 0.0
  %1657 = vmatmul.mubr.f32.gmra.mrb[0].mxu0 %v605
  %v1658 = vpop.f32.mrb[0].mxu0
  %v1659 = vadd.f32 0.0, %v1658
  %v1660 = vpop.f32.mrb[0].mxu0
  %1661 = vmatprep.mubr.f32.mxu0 0.0
  %1662 = vmatmul.mubr.f32.gmra.mrb[0].mxu0 %v608
  %v1663 = vpop.f32.mrb[0].mxu0
  %v1664 = vadd.f32 0.0, %v1663
  %v1665 = vpop.f32.mrb[0].mxu0
  %1666 = vmatprep.mubr.f32.mxu0 0.0
  %1667 = vmatmul.mubr.f32.gmra.mrb[0].mxu0 %v611
  %v1668 = vpop.f32.mrb[0].mxu0
  %v1669 = vadd.f32 0.0, %v1668
  %v1670 = vpop.f32.mrb[0].mxu0
  %1671 = vmatprep.mubr.f32.mxu0 0.0
  %1672 = vmatmul.mubr.f32.gmra.mrb[0].mxu0 %v614
  %v1673 = vpop.f32.mrb[0].mxu0
  %v1674 = vadd.f32 0.0, %v1673
  %v1675 = vpop.f32.mrb[0].mxu0
  %1676 = vmatprep.mubr.f32.mxu0 0.0
  %1677 = vmatmul.mubr.f32.gmra.mrb[0].mxu0 %v617
  %v1678 = vpop.f32.mrb[0].mxu0
  %v1679 = vadd.f32 0.0, %v1678
  %v1680 = vpop.f32.mrb[0].mxu0
  %1681 = vmatprep.mubr.f32.mxu0 0.0
  %1682 = vmatmul.mubr.f32.gmra.mrb[0].mxu0 %v620
  %v1683 = vpop.f32.mrb[0].mxu0
  %v1684 = vadd.f32 0.0, %v1683
  %v1685 = vpop.f32.mrb[0].mxu0
  %1686 = vmatprep.mubr.f32.mxu0 0.0
  %1687 = vmatmul.mubr.f32.gmra.mrb[0].mxu0 %v623
  %v1688 = vpop.f32.mrb[0].mxu0
  %v1689 = vadd.f32 0.0, %v1688
  %v1690 = vpop.f32.mrb[0].mxu0
  %1691 = vmatprep.mubr.f32.mxu0 0.0
  %1692 = vmatmul.mubr.f32.gmra.mrb[0].mxu0 %v626
  %v1693 = vpop.f32.mrb[0].mxu0
  %v1694 = vadd.f32 0.0, %v1693
  %v1695 = vpop.f32.mrb[0].mxu0
  %1696 = vmatprep.mubr.f32.mxu0 0.0
  %1697 = vmatmul.mubr.f32.gmra.mrb[0].mxu0 %v629
  %v1698 = vpop.f32.mrb[0].mxu0
  %v1699 = vadd.f32 0.0, %v1698
  %v1700 = vpop.f32.mrb[0].mxu0
  %1701 = vmatprep.mubr.f32.mxu0 0.0
  %1702 = vmatmul.mubr.f32.gmra.mrb[0].mxu0 %v632
  %v1703 = vpop.f32.mrb[0].mxu0
  %v1704 = vadd.f32 0.0, %v1703
  %v1705 = vpop.f32.mrb[0].mxu0
  %1706 = vmatprep.mubr.f32.mxu0 0.0
  %1707 = vmatmul.mubr.f32.gmra.mrb[0].mxu0 %v635
  %v1708 = vpop.f32.mrb[0].mxu0
  %v1709 = vadd.f32 0.0, %v1708
  %v1710 = vpop.f32.mrb[0].mxu0
  %1711 = vmatprep.mubr.f32.mxu0 0.0
  %1712 = vmatmul.mubr.f32.gmra.mrb[0].mxu0 %v638
  %v1713 = vpop.f32.mrb[0].mxu0
  %v1714 = vadd.f32 0.0, %v1713
  %v1715 = vpop.f32.mrb[0].mxu0
  %1716 = vmatprep.mubr.f32.mxu0 0.0
  %1717 = vmatmul.mubr.f32.gmra.mrb[0].mxu0 %v641
  %v1718 = vpop.f32.mrb[0].mxu0
  %v1719 = vadd.f32 0.0, %v1718
  %v1720 = vpop.f32.mrb[0].mxu0
  %1721 = vmatprep.mubr.f32.mxu0 0.0
  %1722 = vmatmul.mubr.f32.gmra.mrb[0].mxu0 %v644
  %v1723 = vpop.f32.mrb[0].mxu0
  %v1724 = vadd.f32 0.0, %v1723
  %v1725 = vpop.f32.mrb[0].mxu0
  %1726 = vmatprep.mubr.f32.mxu0 0.0
  %1727 = vmatmul.mubr.f32.gmra.mrb[0].mxu0 %v647
  %v1728 = vpop.f32.mrb[0].mxu0
  %v1729 = vadd.f32 0.0, %v1728
  %v1730 = vpop.f32.mrb[0].mxu0
  %1731 = vmatprep.mubr.f32.mxu0 0.0
  %1732 = vmatmul.mubr.f32.gmra.mrb[0].mxu0 %v650
  %v1733 = vpop.f32.mrb[0].mxu0
  %v1734 = vadd.f32 0.0, %v1733
  %v1735 = vpop.f32.mrb[0].mxu0
  %1736 = vmatprep.mubr.f32.mxu0 0.0
  %1737 = vmatmul.mubr.f32.gmra.mrb[0].mxu0 %v653
  %v1738 = vpop.f32.mrb[0].mxu0
  %v1739 = vadd.f32 0.0, %v1738
  %v1740 = vpop.f32.mrb[0].mxu0
  %1741 = vmatprep.mubr.f32.mxu0 0.0
  %1742 = vmatmul.mubr.f32.gmra.mrb[0].mxu0 %v656
  %v1743 = vpop.f32.mrb[0].mxu0
  %v1744 = vadd.f32 0.0, %v1743
  %v1745 = vpop.f32.mrb[0].mxu0
  %1746 = vmatprep.mubr.f32.mxu0 0.0
  %1747 = vmatmul.mubr.f32.gmra.mrb[0].mxu0 %v659
  %v1748 = vpop.f32.mrb[0].mxu0
  %v1749 = vadd.f32 0.0, %v1748
  %v1750 = vpop.f32.mrb[0].mxu0
  %1751 = vmatprep.mubr.f32.mxu0 0.0
  %1752 = vmatmul.mubr.f32.gmra.mrb[0].mxu0 %v662
  %v1753 = vpop.f32.mrb[0].mxu0
  %v1754 = vadd.f32 0.0, %v1753
  %v1755 = vpop.f32.mrb[0].mxu0
  %1756 = vmatprep.mubr.f32.mxu0 0.0
  %1757 = vmatmul.mubr.f32.gmra.mrb[0].mxu0 %v665
  %v1758 = vpop.f32.mrb[0].mxu0
  %v1759 = vadd.f32 0.0, %v1758
  %v1760 = vpop.f32.mrb[0].mxu0
  %1761 = vmatprep.mubr.f32.mxu0 0.0
  %1762 = vmatmul.mubr.f32.gmra.mrb[0].mxu0 %v668
  %v1763 = vpop.f32.mrb[0].mxu0
  %v1764 = vadd.f32 0.0, %v1763
  %v1765 = vpop.f32.mrb[0].mxu0
  %1766 = vmatprep.mubr.f32.mxu0 0.0
  %1767 = vmatmul.mubr.f32.gmra.mrb[0].mxu0 %v671
  %v1768 = vpop.f32.mrb[0].mxu0
  %v1769 = vadd.f32 0.0, %v1768
  %v1770 = vpop.f32.mrb[0].mxu0
  %1771 = vmatprep.mubr.f32.mxu0 0.0
  %1772 = vmatmul.mubr.f32.gmra.mrb[0].mxu0 %v674
  %v1773 = vpop.f32.mrb[0].mxu0
  %v1774 = vadd.f32 0.0, %v1773
  %v1775 = vpop.f32.mrb[0].mxu0
  %1776 = vmatprep.mubr.f32.mxu0 0.0
  %1777 = vmatmul.mubr.f32.gmra.mrb[0].mxu0 %v677
  %v1778 = vpop.f32.mrb[0].mxu0
  %v1779 = vadd.f32 0.0, %v1778
  %v1780 = vpop.f32.mrb[0].mxu0
  %1781 = vmatprep.mubr.f32.mxu0 0.0
  %1782 = vmatmul.mubr.f32.gmra.mrb[0].mxu0 %v680
  %v1783 = vpop.f32.mrb[0].mxu0
  %v1784 = vadd.f32 0.0, %v1783
  %v1785 = vpop.f32.mrb[0].mxu0
  %1786 = vmatprep.mubr.f32.mxu0 0.0
  %1787 = vmatmul.mubr.f32.gmra.mrb[0].mxu0 %v683
  %v1788 = vpop.f32.mrb[0].mxu0
  %v1789 = vadd.f32 0.0, %v1788
  %v1790 = vpop.f32.mrb[0].mxu0
  %1791 = vmatprep.mubr.f32.mxu0 0.0
  %1792 = vmatmul.mubr.f32.gmra.mrb[0].mxu0 %v686
  %v1793 = vpop.f32.mrb[0].mxu0
  %v1794 = vadd.f32 0.0, %v1793
  %v1795 = vpop.f32.mrb[0].mxu0
  %1796 = vmatprep.mubr.f32.mxu0 0.0
  %1797 = vmatmul.mubr.f32.gmra.mrb[0].mxu0 %v689
  %v1798 = vpop.f32.mrb[0].mxu0
  %v1799 = vadd.f32 0.0, %v1798
  %v1800 = vpop.f32.mrb[0].mxu0
  %1801 = vmatprep.mubr.f32.mxu0 0.0
  %1802 = vmatmul.mubr.f32.gmra.mrb[0].mxu0 %v692
  %v1803 = vpop.f32.mrb[0].mxu0
  %v1804 = vadd.f32 0.0, %v1803
  %v1805 = vpop.f32.mrb[0].mxu0
  %1806 = vmatprep.mubr.f32.mxu0 0.0
  %1807 = vmatmul.mubr.f32.gmra.mrb[0].mxu0 %v695
  %v1808 = vpop.f32.mrb[0].mxu0
  %v1809 = vadd.f32 0.0, %v1808
  %v1810 = vpop.f32.mrb[0].mxu0
  %1811 = vmatprep.mubr.f32.mxu0 0.0
  %1812 = vmatmul.mubr.f32.gmra.mrb[0].mxu0 %v698
  %v1813 = vpop.f32.mrb[0].mxu0
  %v1814 = vadd.f32 0.0, %v1813
  %v1815 = vpop.f32.mrb[0].mxu0
  %1816 = vmatprep.mubr.f32.mxu0 0.0
  %1817 = vmatmul.mubr.f32.gmra.mrb[0].mxu0 %v701
  %v1818 = vpop.f32.mrb[0].mxu0
  %v1819 = vadd.f32 0.0, %v1818
  %v1820 = vpop.f32.mrb[0].mxu0
  %1821 = vmatprep.mubr.f32.mxu0 0.0
  %1822 = vmatmul.mubr.f32.gmra.mrb[0].mxu0 %v704
  %v1823 = vpop.f32.mrb[0].mxu0
  %v1824 = vadd.f32 0.0, %v1823
  %v1825 = vpop.f32.mrb[0].mxu0
  %1826 = vmatprep.mubr.f32.mxu0 0.0
  %1827 = vmatmul.mubr.f32.gmra.mrb[0].mxu0 %v707
  %v1828 = vpop.f32.mrb[0].mxu0
  %v1829 = vadd.f32 0.0, %v1828
  %v1830 = vpop.f32.mrb[0].mxu0
  %1831 = vmatprep.mubr.f32.mxu0 0.0
  %1832 = vmatmul.mubr.f32.gmra.mrb[0].mxu0 %v710
  %v1833 = vpop.f32.mrb[0].mxu0
  %v1834 = vadd.f32 0.0, %v1833
  %v1835 = vpop.f32.mrb[0].mxu0
  %1836 = vmatprep.mubr.f32.mxu0 0.0
  %1837 = vmatmul.mubr.f32.gmra.mrb[0].mxu0 %v713
  %v1838 = vpop.f32.mrb[0].mxu0
  %v1839 = vadd.f32 0.0, %v1838
  %v1840 = vpop.f32.mrb[0].mxu0
  %1841 = vmatprep.mubr.f32.mxu0 0.0
  %1842 = vmatmul.mubr.f32.gmra.mrb[0].mxu0 %v716
  %v1843 = vpop.f32.mrb[0].mxu0
  %v1844 = vadd.f32 0.0, %v1843
  %v1845 = vpop.f32.mrb[0].mxu0
  %1846 = vmatprep.mubr.f32.mxu0 0.0
  %1847 = vmatmul.mubr.f32.gmra.mrb[0].mxu0 %v719
  %v1848 = vpop.f32.mrb[0].mxu0
  %v1849 = vadd.f32 0.0, %v1848
  %v1850 = vpop.f32.mrb[0].mxu0
  %1851 = vmatprep.mubr.f32.mxu0 0.0
  %1852 = vmatmul.mubr.f32.gmra.mrb[0].mxu0 %v722
  %v1853 = vpop.f32.mrb[0].mxu0
  %v1854 = vadd.f32 0.0, %v1853
  %v1855 = vpop.f32.mrb[0].mxu0
  %1856 = vmatprep.mubr.f32.mxu0 0.0
  %1857 = vmatmul.mubr.f32.gmra.mrb[0].mxu0 %v725
  %v1858 = vpop.f32.mrb[0].mxu0
  %v1859 = vadd.f32 0.0, %v1858
  %v1860 = vpop.f32.mrb[0].mxu0
  %1861 = vmatprep.mubr.f32.mxu0 0.0
  %1862 = vmatmul.mubr.f32.gmra.mrb[0].mxu0 %v728
  %v1863 = vpop.f32.mrb[0].mxu0
  %v1864 = vadd.f32 0.0, %v1863
  %v1865 = vpop.f32.mrb[0].mxu0
  %1866 = vmatprep.mubr.f32.mxu0 0.0
  %1867 = vmatmul.mubr.f32.gmra.mrb[0].mxu0 %v731
  %v1868 = vpop.f32.mrb[0].mxu0
  %v1869 = vadd.f32 0.0, %v1868
  %v1870 = vpop.f32.mrb[0].mxu0
  %1871 = vmatprep.mubr.f32.mxu0 0.0
  %1872 = vmatmul.mubr.f32.gmra.mrb[0].mxu0 %v734
  %v1873 = vpop.f32.mrb[0].mxu0
  %v1874 = vadd.f32 0.0, %v1873
  %v1875 = vpop.f32.mrb[0].mxu0
  %1876 = vmatprep.mubr.f32.mxu0 0.0
  %1877 = vmatmul.mubr.f32.gmra.mrb[0].mxu0 %v737
  %v1878 = vpop.f32.mrb[0].mxu0
  %v1879 = vadd.f32 0.0, %v1878
  %v1880 = vpop.f32.mrb[0].mxu0
  %1881 = vmatprep.mubr.f32.mxu0 0.0
  %1882 = vmatmul.mubr.f32.gmra.mrb[0].mxu0 %v740
  %v1883 = vpop.f32.mrb[0].mxu0
  %v1884 = vadd.f32 0.0, %v1883
  %v1885 = vpop.f32.mrb[0].mxu0
  %1886 = vmatprep.mubr.f32.mxu0 0.0
  %1887 = vmatmul.mubr.f32.gmra.mrb[0].mxu0 %v743
  %v1888 = vpop.f32.mrb[0].mxu0
  %v1889 = vadd.f32 0.0, %v1888
  %v1890 = vpop.f32.mrb[0].mxu0
  %1891 = vmatprep.mubr.f32.mxu0 0.0
  %1892 = vmatmul.mubr.f32.gmra.mrb[0].mxu0 %v746
  %v1893 = vpop.f32.mrb[0].mxu0
  %v1894 = vadd.f32 0.0, %v1893
  %v1895 = vpop.f32.mrb[0].mxu0
  %1896 = vmatprep.mubr.f32.mxu0 0.0
  %1897 = vmatmul.mubr.f32.gmra.mrb[0].mxu0 %v749
  %v1898 = vpop.f32.mrb[0].mxu0
  %v1899 = vadd.f32 0.0, %v1898
  %v1900 = vpop.f32.mrb[0].mxu0
  %1901 = vmatprep.mubr.f32.mxu0 0.0
  %1902 = vmatmul.mubr.f32.gmra.mrb[0].mxu0 %v752
  %v1903 = vpop.f32.mrb[0].mxu0
  %v1904 = vadd.f32 0.0, %v1903
  %v1905 = vpop.f32.mrb[0].mxu0
  %1906 = vmatprep.mubr.f32.mxu0 0.0
  %1907 = vmatmul.mubr.f32.gmra.mrb[0].mxu0 %v755
  %v1908 = vpop.f32.mrb[0].mxu0
  %v1909 = vadd.f32 0.0, %v1908
  %v1910 = vpop.f32.mrb[0].mxu0
  %1911 = vmatprep.mubr.f32.mxu0 0.0
  %1912 = vmatmul.mubr.f32.gmra.mrb[0].mxu0 %v758
  %v1913 = vpop.f32.mrb[0].mxu0
  %v1914 = vadd.f32 0.0, %v1913
  %v1915 = vpop.f32.mrb[0].mxu0
  %1916 = vmatprep.mubr.f32.mxu0 0.0
  %1917 = vmatmul.mubr.f32.gmra.mrb[0].mxu0 %v761
  %v1918 = vpop.f32.mrb[0].mxu0
  %v1919 = vadd.f32 0.0, %v1918
  %v1920 = vpop.f32.mrb[0].mxu0
  %1921 = vmatprep.mubr.f32.mxu0 0.0
  %1922 = vmatmul.mubr.f32.gmra.mrb[0].mxu0 %v764
  %v1923 = vpop.f32.mrb[0].mxu0
  %v1924 = vadd.f32 0.0, %v1923
  %v1925 = vpop.f32.mrb[0].mxu0
  %1926 = vmatprep.mubr.f32.mxu0 0.0
  %1927 = vmatmul.mubr.f32.gmra.mrb[0].mxu0 %v767
  %v1928 = vpop.f32.mrb[0].mxu0
  %v1929 = vadd.f32 0.0, %v1928
  %v1930 = vpop.f32.mrb[0].mxu0
  %1931 = vmatprep.mubr.f32.mxu0 0.0
  %1932 = vmatmul.mubr.f32.gmra.mrb[0].mxu0 %v770
  %v1933 = vpop.f32.mrb[0].mxu0
  %v1934 = vadd.f32 0.0, %v1933
  %v1935 = vpop.f32.mrb[0].mxu0
  %1936 = vmatprep.mubr.f32.mxu0 0.0
  %1937 = vmatmul.mubr.f32.gmra.mrb[0].mxu0 %v773
  %v1938 = vpop.f32.mrb[0].mxu0
  %v1939 = vadd.f32 0.0, %v1938
  %v1940 = vpop.f32.mrb[0].mxu0
  %1941 = vmatprep.mubr.f32.mxu0 0.0
  %1942 = vmatmul.mubr.f32.gmra.mrb[0].mxu0 %v776
  %v1943 = vpop.f32.mrb[0].mxu0
  %v1944 = vadd.f32 0.0, %v1943
  %v1945 = vpop.f32.mrb[0].mxu0
  %1946 = vmatprep.mubr.f32.mxu0 0.0
  %1947 = vmatmul.mubr.f32.gmra.mrb[0].mxu0 %v779
  %v1948 = vpop.f32.mrb[0].mxu0
  %v1949 = vadd.f32 0.0, %v1948
  %v1950 = vpop.f32.mrb[0].mxu0
  %1951 = vmatprep.mubr.f32.mxu0 0.0
  %1952 = vmatmul.mubr.f32.gmra.mrb[0].mxu0 %v782
  %v1953 = vpop.f32.mrb[0].mxu0
  %v1954 = vadd.f32 0.0, %v1953
  %v1955 = vpop.f32.mrb[0].mxu0
  %1956 = vmatprep.mubr.f32.mxu0 0.0
  %1957 = vmatmul.mubr.f32.gmra.mrb[0].mxu0 %v785
  %v1958 = vpop.f32.mrb[0].mxu0
  %v1959 = vadd.f32 0.0, %v1958
  %v1960 = vpop.f32.mrb[0].mxu0
  %1961 = vmatprep.mubr.f32.mxu0 0.0
  %1962 = vmatmul.mubr.f32.gmra.mrb[0].mxu0 %v788
  %v1963 = vpop.f32.mrb[0].mxu0
  %v1964 = vadd.f32 0.0, %v1963
  %v1965 = vpop.f32.mrb[0].mxu0
  %1966 = vmatprep.mubr.f32.mxu0 0.0
  %1967 = vmatmul.mubr.f32.gmra.mrb[0].mxu0 %v791
  %v1968 = vpop.f32.mrb[0].mxu0
  %v1969 = vadd.f32 0.0, %v1968
  %v1970 = vpop.f32.mrb[0].mxu0
  %1971 = vmatprep.mubr.f32.mxu0 0.0
  %1972 = vmatmul.mubr.f32.gmra.mrb[0].mxu0 %v794
  %v1973 = vpop.f32.mrb[0].mxu0
  %v1974 = vadd.f32 0.0, %v1973
  %v1975 = vpop.f32.mrb[0].mxu0
  %1976 = vmatprep.mubr.f32.mxu0 0.0
  %1977 = vmatmul.mubr.f32.gmra.mrb[0].mxu0 %v797
  %v1978 = vpop.f32.mrb[0].mxu0
  %v1979 = vadd.f32 0.0, %v1978
  %v1980 = vpop.f32.mrb[0].mxu0
  %1981 = vmatprep.mubr.f32.mxu0 0.0
  %1982 = vmatmul.mubr.f32.gmra.mrb[0].mxu0 %v800
  %v1983 = vpop.f32.mrb[0].mxu0
  %v1984 = vadd.f32 0.0, %v1983
  %v1985 = vpop.f32.mrb[0].mxu0
  %1986 = vmatprep.mubr.f32.mxu0 0.0
  %1987 = vmatmul.mubr.f32.gmra.mrb[0].mxu0 %v803
  %v1988 = vpop.f32.mrb[0].mxu0
  %v1989 = vadd.f32 0.0, %v1988
  %v1990 = vpop.f32.mrb[0].mxu0
  %1991 = vmatprep.mubr.f32.mxu0 0.0
  %1992 = vmatmul.mubr.f32.gmra.mrb[0].mxu0 %v806
  %v1993 = vpop.f32.mrb[0].mxu0
  %v1994 = vadd.f32 0.0, %v1993
  %v1995 = vpop.f32.mrb[0].mxu0
  %1996 = vmatprep.mubr.f32.mxu0 0.0
  %1997 = vmatmul.mubr.f32.gmra.mrb[0].mxu0 %v809
  %v1998 = vpop.f32.mrb[0].mxu0
  %v1999 = vadd.f32 0.0, %v1998
  %v2000 = vpop.f32.mrb[0].mxu0
  %2001 = vmatprep.mubr.f32.mxu0 0.0
  %2002 = vmatmul.mubr.f32.gmra.mrb[0].mxu0 %v812
  %v2003 = vpop.f32.mrb[0].mxu0
  %v2004 = vadd.f32 0.0, %v2003
  %v2005 = vpop.f32.mrb[0].mxu0
  %2006 = vmatprep.mubr.f32.mxu0 0.0
  %2007 = vmatmul.mubr.f32.gmra.mrb[0].mxu0 %v815
  %v2008 = vpop.f32.mrb[0].mxu0
  %v2009 = vadd.f32 0.0, %v2008
  %v2010 = vpop.f32.mrb[0].mxu0
  %2011 = vmatprep.mubr.f32.mxu0 0.0
  %2012 = vmatmul.mubr.f32.gmra.mrb[0].mxu0 %v818
  %v2013 = vpop.f32.mrb[0].mxu0
  %v2014 = vadd.f32 0.0, %v2013
  %v2015 = vpop.f32.mrb[0].mxu0
  %2016 = vmatprep.mubr.f32.mxu0 0.0
  %2017 = vmatmul.mubr.f32.gmra.mrb[0].mxu0 %v821
  %v2018 = vpop.f32.mrb[0].mxu0
  %v2019 = vadd.f32 0.0, %v2018
  %v2020 = vpop.f32.mrb[0].mxu0
  %2021 = vmatprep.mubr.f32.mxu0 0.0
  %2022 = vmatmul.mubr.f32.gmra.mrb[0].mxu0 %v824
  %v2023 = vpop.f32.mrb[0].mxu0
  %v2024 = vadd.f32 0.0, %v2023
  %v2025 = vpop.f32.mrb[0].mxu0
  %2026 = vmatprep.mubr.f32.mxu0 0.0
  %2027 = vmatmul.mubr.f32.gmra.mrb[0].mxu0 %v827
  %v2028 = vpop.f32.mrb[0].mxu0
  %v2029 = vadd.f32 0.0, %v2028
  %v2030 = vpop.f32.mrb[0].mxu0
  %2031 = vmatprep.mubr.f32.mxu0 0.0
  %2032 = vmatmul.mubr.f32.gmra.mrb[0].mxu0 %v830
  %v2033 = vpop.f32.mrb[0].mxu0
  %v2034 = vadd.f32 0.0, %v2033
  %v2035 = vpop.f32.mrb[0].mxu0
  %2036 = vmatprep.mubr.f32.mxu0 0.0
  %2037 = vmatmul.mubr.f32.gmra.mrb[0].mxu0 %v833
  %v2038 = vpop.f32.mrb[0].mxu0
  %v2039 = vadd.f32 0.0, %v2038
  %v2040 = vpop.f32.mrb[0].mxu0
  %2041 = vmatprep.mubr.f32.mxu0 0.0
  %2042 = vmatmul.mubr.f32.gmra.mrb[0].mxu0 %v836
  %v2043 = vpop.f32.mrb[0].mxu0
  %v2044 = vadd.f32 0.0, %v2043
  %v2045 = vpop.f32.mrb[0].mxu0
  %2046 = vmatprep.mubr.f32.mxu0 0.0
  %2047 = vmatmul.mubr.f32.gmra.mrb[0].mxu0 %v839
  %v2048 = vpop.f32.mrb[0].mxu0
  %v2049 = vadd.f32 0.0, %v2048
  %v2050 = vpop.f32.mrb[0].mxu0
  %2051 = vmatprep.mubr.f32.mxu0 0.0
  %2052 = vmatmul.mubr.f32.gmra.mrb[0].mxu0 %v842
  %v2053 = vpop.f32.mrb[0].mxu0
  %v2054 = vadd.f32 0.0, %v2053
  %v2055 = vpop.f32.mrb[0].mxu0
  %2056 = vmatprep.mubr.f32.mxu0 0.0
  %2057 = vmatmul.mubr.f32.gmra.mrb[0].mxu0 %v845
  %v2058 = vpop.f32.mrb[0].mxu0
  %v2059 = vadd.f32 0.0, %v2058
  %v2060 = vpop.f32.mrb[0].mxu0
  %2061 = vmatprep.mubr.f32.mxu0 0.0
  %2062 = vmatmul.mubr.f32.gmra.mrb[0].mxu0 %v848
  %v2063 = vpop.f32.mrb[0].mxu0
  %v2064 = vadd.f32 0.0, %v2063
  %v2065 = vpop.f32.mrb[0].mxu0
  %2066 = vmatprep.mubr.f32.mxu0 0.0
  %2067 = vmatmul.mubr.f32.gmra.mrb[0].mxu0 %v851
  %v2068 = vpop.f32.mrb[0].mxu0
  %v2069 = vadd.f32 0.0, %v2068
  %v2070 = vpop.f32.mrb[0].mxu0
  %2071 = vmatprep.mubr.f32.mxu0 0.0
  %2072 = vmatmul.mubr.f32.gmra.mrb[0].mxu0 %v854
  %v2073 = vpop.f32.mrb[0].mxu0
  %v2074 = vadd.f32 0.0, %v2073
  %v2075 = vpop.f32.mrb[0].mxu0
  %2076 = vmatprep.mubr.f32.mxu0 0.0
  %2077 = vmatmul.mubr.f32.gmra.mrb[0].mxu0 %v857
  %v2078 = vpop.f32.mrb[0].mxu0
  %v2079 = vadd.f32 0.0, %v2078
  %v2080 = vpop.f32.mrb[0].mxu0
  %2081 = vmatprep.mubr.f32.mxu0 0.0
  %2082 = vmatmul.mubr.f32.gmra.mrb[0].mxu0 %v860
  %v2083 = vpop.f32.mrb[0].mxu0
  %v2084 = vadd.f32 0.0, %v2083
  %v2085 = vpop.f32.mrb[0].mxu0
  %2086 = vmatprep.mubr.f32.mxu0 0.0
  %2087 = vmatmul.mubr.f32.gmra.mrb[0].mxu0 %v863
  %v2088 = vpop.f32.mrb[0].mxu0
  %v2089 = vadd.f32 0.0, %v2088
  %v2090 = vpop.f32.mrb[0].mxu0
  %2091 = vmatprep.mubr.f32.mxu0 0.0
  %2092 = vmatmul.mubr.f32.gmra.mrb[0].mxu0 %v866
  %v2093 = vpop.f32.mrb[0].mxu0
  %v2094 = vadd.f32 0.0, %v2093
  %v2095 = vpop.f32.mrb[0].mxu0
  %2096 = vmatprep.mubr.f32.mxu0 0.0
  %2097 = vmatmul.mubr.f32.gmra.mrb[0].mxu0 %v869
  %v2098 = vpop.f32.mrb[0].mxu0
  %v2099 = vadd.f32 0.0, %v2098
  %v2100 = vpop.f32.mrb[0].mxu0
  %2101 = vmatprep.mubr.f32.mxu0 0.0
  %2102 = vmatmul.mubr.f32.gmra.mrb[0].mxu0 %v872
  %v2103 = vpop.f32.mrb[0].mxu0
  %v2104 = vadd.f32 0.0, %v2103
  %v2105 = vpop.f32.mrb[0].mxu0
  %2106 = vmatprep.mubr.f32.mxu0 0.0
  %2107 = vmatmul.mubr.f32.gmra.mrb[0].mxu0 %v875
  %v2108 = vpop.f32.mrb[0].mxu0
  %v2109 = vadd.f32 0.0, %v2108
  %v2110 = vpop.f32.mrb[0].mxu0
  %2111 = vmatprep.mubr.f32.mxu0 0.0
  %2112 = vmatmul.mubr.f32.gmra.mrb[0].mxu0 %v878
  %v2113 = vpop.f32.mrb[0].mxu0
  %v2114 = vadd.f32 0.0, %v2113
  %v2115 = vpop.f32.mrb[0].mxu0
  %2116 = vmatprep.mubr.f32.mxu0 0.0
  %2117 = vmatmul.mubr.f32.gmra.mrb[0].mxu0 %v881
  %v2118 = vpop.f32.mrb[0].mxu0
  %v2119 = vadd.f32 0.0, %v2118
  %v2120 = vpop.f32.mrb[0].mxu0
  %2121 = vmatprep.mubr.f32.mxu0 0.0
  %2122 = vmatmul.mubr.f32.gmra.mrb[0].mxu0 %v884
  %v2123 = vpop.f32.mrb[0].mxu0
  %v2124 = vadd.f32 0.0, %v2123
  %v2125 = vpop.f32.mrb[0].mxu0
  %2126 = vmatprep.mubr.f32.mxu0 0.0
  %2127 = vmatmul.mubr.f32.gmra.mrb[0].mxu0 %v887
  %v2128 = vpop.f32.mrb[0].mxu0
  %v2129 = vadd.f32 0.0, %v2128
  %v2130 = vpop.f32.mrb[0].mxu0
  %2131 = vmatprep.mubr.f32.mxu0 0.0
  %2132 = vmatmul.mubr.f32.gmra.mrb[0].mxu0 %v890
  %v2133 = vpop.f32.mrb[0].mxu0
  %v2134 = vadd.f32 0.0, %v2133
  %v2135 = vpop.f32.mrb[0].mxu0
  %2136 = vmatprep.mubr.f32.mxu0 0.0
  %2137 = vmatmul.mubr.f32.gmra.mrb[0].mxu0 %v893
  %v2138 = vpop.f32.mrb[0].mxu0
  %v2139 = vadd.f32 0.0, %v2138
  %v2140 = vpop.f32.mrb[0].mxu0
  %2141 = vmatprep.mubr.f32.mxu0 0.0
  %2142 = vmatmul.mubr.f32.gmra.mrb[0].mxu0 %v896
  %v2143 = vpop.f32.mrb[0].mxu0
  %v2144 = vadd.f32 0.0, %v2143
  %v2145 = vpop.f32.mrb[0].mxu0
  %2146 = vmatprep.mubr.f32.mxu0 0.0
  %2147 = vmatmul.mubr.f32.gmra.mrb[0].mxu0 %v899
  %v2148 = vpop.f32.mrb[0].mxu0
  %v2149 = vadd.f32 0.0, %v2148
  %v2150 = vpop.f32.mrb[0].mxu0
  %2151 = vmatprep.mubr.f32.mxu0 0.0
  %2152 = vmatmul.mubr.f32.gmra.mrb[0].mxu0 %v902
  %v2153 = vpop.f32.mrb[0].mxu0
  %v2154 = vadd.f32 0.0, %v2153
  %v2155 = vpop.f32.mrb[0].mxu0
  %2156 = vmatprep.mubr.f32.mxu0 0.0
  %2157 = vmatmul.mubr.f32.gmra.mrb[0].mxu0 %v905
  %v2158 = vpop.f32.mrb[0].mxu0
  %v2159 = vadd.f32 0.0, %v2158
  %v2160 = vpop.f32.mrb[0].mxu0
  %2161 = vmatprep.mubr.f32.mxu0 0.0
  %2162 = vmatmul.mubr.f32.gmra.mrb[0].mxu0 %v908
  %v2163 = vpop.f32.mrb[0].mxu0
  %v2164 = vadd.f32 0.0, %v2163
  %v2165 = vpop.f32.mrb[0].mxu0
  %2166 = vmatprep.mubr.f32.mxu0 0.0
  %2167 = vmatmul.mubr.f32.gmra.mrb[0].mxu0 %v911
  %v2168 = vpop.f32.mrb[0].mxu0
  %v2169 = vadd.f32 0.0, %v2168
  %v2170 = vpop.f32.mrb[0].mxu0
  %2171 = vmatprep.mubr.f32.mxu0 0.0
  %2172 = vmatmul.mubr.f32.gmra.mrb[0].mxu0 %v914
  %v2173 = vpop.f32.mrb[0].mxu0
  %v2174 = vadd.f32 0.0, %v2173
  %v2175 = vpop.f32.mrb[0].mxu0
  %2176 = vmatprep.mubr.f32.mxu0 0.0
  %2177 = vmatmul.mubr.f32.gmra.mrb[0].mxu0 %v917
  %v2178 = vpop.f32.mrb[0].mxu0
  %v2179 = vadd.f32 0.0, %v2178
  %v2180 = vpop.f32.mrb[0].mxu0
  %2181 = vmatprep.mubr.f32.mxu0 0.0
  %2182 = vmatmul.mubr.f32.gmra.mrb[0].mxu0 %v920
  %v2183 = vpop.f32.mrb[0].mxu0
  %v2184 = vadd.f32 0.0, %v2183
  %v2185 = vpop.f32.mrb[0].mxu0
  %2186 = vmatprep.mubr.f32.mxu0 0.0
  %2187 = vmatmul.mubr.f32.gmra.mrb[0].mxu0 %v923
  %v2188 = vpop.f32.mrb[0].mxu0
  %v2189 = vadd.f32 0.0, %v2188
  %v2190 = vpop.f32.mrb[0].mxu0
  %2191 = vmatprep.mubr.f32.mxu0 0.0
  %2192 = vmatmul.mubr.f32.gmra.mrb[0].mxu0 %v926
  %v2193 = vpop.f32.mrb[0].mxu0
  %v2194 = vadd.f32 0.0, %v2193
  %v2195 = vpop.f32.mrb[0].mxu0
  %2196 = vmatprep.mubr.f32.mxu0 0.0
  %2197 = vmatmul.mubr.f32.gmra.mrb[0].mxu0 %v929
  %v2198 = vpop.f32.mrb[0].mxu0
  %v2199 = vadd.f32 0.0, %v2198
  %v2200 = vpop.f32.mrb[0].mxu0
  %2201 = vmatprep.mubr.f32.mxu0 0.0
  %2202 = vmatmul.mubr.f32.gmra.mrb[0].mxu0 %v932
  %v2203 = vpop.f32.mrb[0].mxu0
  %v2204 = vadd.f32 0.0, %v2203
  %v2205 = vpop.f32.mrb[0].mxu0
  %2206 = vmatprep.mubr.f32.mxu0 0.0
  %2207 = vmatmul.mubr.f32.gmra.mrb[0].mxu0 %v935
  %v2208 = vpop.f32.mrb[0].mxu0
  %v2209 = vadd.f32 0.0, %v2208
  %v2210 = vpop.f32.mrb[0].mxu0
  %2211 = vmatprep.mubr.f32.mxu0 0.0
  %2212 = vmatmul.mubr.f32.gmra.mrb[0].mxu0 %v938
  %v2213 = vpop.f32.mrb[0].mxu0
  %v2214 = vadd.f32 0.0, %v2213
  %v2215 = vpop.f32.mrb[0].mxu0
  %2216 = vmatprep.mubr.f32.mxu0 0.0
  %2217 = vmatmul.mubr.f32.gmra.mrb[0].mxu0 %v941
  %v2218 = vpop.f32.mrb[0].mxu0
  %v2219 = vadd.f32 0.0, %v2218
  %v2220 = vpop.f32.mrb[0].mxu0
  %2221 = vmatprep.mubr.f32.mxu0 0.0
  %2222 = vmatmul.mubr.f32.gmra.mrb[0].mxu0 %v944
  %v2223 = vpop.f32.mrb[0].mxu0
  %v2224 = vadd.f32 0.0, %v2223
  %v2225 = vpop.f32.mrb[0].mxu0
  %2226 = vmatprep.mubr.f32.mxu0 0.0
  %2227 = vmatmul.mubr.f32.gmra.mrb[0].mxu0 %v947
  %v2228 = vpop.f32.mrb[0].mxu0
  %v2229 = vadd.f32 0.0, %v2228
  %v2230 = vpop.f32.mrb[0].mxu0
  %2231 = vmatprep.mubr.f32.mxu0 0.0
  %2232 = vmatmul.mubr.f32.gmra.mrb[0].mxu0 %v950
  %v2233 = vpop.f32.mrb[0].mxu0
  %v2234 = vadd.f32 0.0, %v2233
  %v2235 = vpop.f32.mrb[0].mxu0
  %2236 = vmatprep.mubr.f32.mxu0 0.0
  %2237 = vmatmul.mubr.f32.gmra.mrb[0].mxu0 %v953
  %v2238 = vpop.f32.mrb[0].mxu0
  %v2239 = vadd.f32 0.0, %v2238
  %v2240 = vpop.f32.mrb[0].mxu0
  %2241 = vmatprep.mubr.f32.mxu0 0.0
  %2242 = vmatmul.mubr.f32.gmra.mrb[0].mxu0 %v956
  %v2243 = vpop.f32.mrb[0].mxu0
  %v2244 = vadd.f32 0.0, %v2243
  %v2245 = vpop.f32.mrb[0].mxu0
  %2246 = vmatprep.mubr.f32.mxu0 0.0
  %2247 = vmatmul.mubr.f32.gmra.mrb[0].mxu0 %v959
  %v2248 = vpop.f32.mrb[0].mxu0
  %v2249 = vadd.f32 0.0, %v2248
  %v2250 = vpop.f32.mrb[0].mxu0
  %2251 = vmatprep.mubr.f32.mxu0 0.0
  %2252 = vmatmul.mubr.f32.gmra.mrb[0].mxu0 %v962
  %v2253 = vpop.f32.mrb[0].mxu0
  %v2254 = vadd.f32 0.0, %v2253
  %v2255 = vpop.f32.mrb[0].mxu0
  %2256 = vmatprep.mubr.f32.mxu0 0.0
  %2257 = vmatmul.mubr.f32.gmra.mrb[0].mxu0 %v965
  %v2258 = vpop.f32.mrb[0].mxu0
  %v2259 = vadd.f32 0.0, %v2258
  %v2260 = vpop.f32.mrb[0].mxu0
  %2261 = vmatprep.mubr.f32.mxu0 0.0
  %2262 = vmatmul.mubr.f32.gmra.mrb[0].mxu0 %v968
  %v2263 = vpop.f32.mrb[0].mxu0
  %v2264 = vadd.f32 0.0, %v2263
  %v2265 = vpop.f32.mrb[0].mxu0
  %2266 = vmatprep.mubr.f32.mxu0 0.0
  %2267 = vmatmul.mubr.f32.gmra.mrb[0].mxu0 %v971
  %v2268 = vpop.f32.mrb[0].mxu0
  %v2269 = vadd.f32 0.0, %v2268
  %v2270 = vpop.f32.mrb[0].mxu0
  %2271 = vmatprep.mubr.f32.mxu0 0.0
  %2272 = vmatmul.mubr.f32.gmra.mrb[0].mxu0 %v974
  %v2273 = vpop.f32.mrb[0].mxu0
  %v2274 = vadd.f32 0.0, %v2273
  %v2275 = vpop.f32.mrb[0].mxu0
  %2276 = vmatprep.mubr.f32.mxu0 0.0
  %2277 = vmatmul.mubr.f32.gmra.mrb[0].mxu0 %v977
  %v2278 = vpop.f32.mrb[0].mxu0
  %v2279 = vadd.f32 0.0, %v2278
  %v2280 = vpop.f32.mrb[0].mxu0
  %2281 = vmatprep.mubr.f32.mxu0 0.0
  %2282 = vmatmul.mubr.f32.gmra.mrb[0].mxu0 %v980
  %v2283 = vpop.f32.mrb[0].mxu0
  %v2284 = vadd.f32 0.0, %v2283
  %v2285 = vpop.f32.mrb[0].mxu0
  %2286 = vmatprep.mubr.f32.mxu0 0.0
  %2287 = vmatmul.mubr.f32.gmra.mrb[0].mxu0 %v983
  %v2288 = vpop.f32.mrb[0].mxu0
  %v2289 = vadd.f32 0.0, %v2288
  %v2290 = vpop.f32.mrb[0].mxu0
  %2291 = vmatprep.mubr.f32.mxu0 0.0
  %2292 = vmatmul.mubr.f32.gmra.mrb[0].mxu0 %v986
  %v2293 = vpop.f32.mrb[0].mxu0
  %v2294 = vadd.f32 0.0, %v2293
  %v2295 = vpop.f32.mrb[0].mxu0
  %2296 = vmatprep.mubr.f32.mxu0 0.0
  %2297 = vmatmul.mubr.f32.gmra.mrb[0].mxu0 %v989
  %v2298 = vpop.f32.mrb[0].mxu0
  %v2299 = vadd.f32 0.0, %v2298
  %v2300 = vpop.f32.mrb[0].mxu0
  %2301 = vmatprep.mubr.f32.mxu0 0.0
  %2302 = vmatmul.mubr.f32.gmra.mrb[0].mxu0 %v992
  %v2303 = vpop.f32.mrb[0].mxu0
  %v2304 = vadd.f32 0.0, %v2303
  %v2305 = vpop.f32.mrb[0].mxu0
  %2306 = vmatprep.mubr.f32.mxu0 0.0
  %2307 = vmatmul.mubr.f32.gmra.mrb[0].mxu0 %v995
  %v2308 = vpop.f32.mrb[0].mxu0
  %v2309 = vadd.f32 0.0, %v2308
  %v2310 = vpop.f32.mrb[0].mxu0
  %2311 = vmatprep.mubr.f32.mxu0 0.0
  %2312 = vmatmul.mubr.f32.gmra.mrb[0].mxu0 %v998
  %v2313 = vpop.f32.mrb[0].mxu0
  %v2314 = vadd.f32 0.0, %v2313
  %v2315 = vpop.f32.mrb[0].mxu0
  %2316 = vmatprep.mubr.f32.mxu0 0.0
  %2317 = vmatmul.mubr.f32.gmra.mrb[0].mxu0 %v1001
  %v2318 = vpop.f32.mrb[0].mxu0
  %v2319 = vadd.f32 0.0, %v2318
  %v2320 = vpop.f32.mrb[0].mxu0
  %2321 = vmatprep.mubr.f32.mxu0 0.0
  %2322 = vmatmul.mubr.f32.gmra.mrb[0].mxu0 %v1004
  %v2323 = vpop.f32.mrb[0].mxu0
  %v2324 = vadd.f32 0.0, %v2323
  %v2325 = vpop.f32.mrb[0].mxu0
  %2326 = vmatprep.mubr.f32.mxu0 0.0
  %2327 = vmatmul.mubr.f32.gmra.mrb[0].mxu0 %v1007
  %v2328 = vpop.f32.mrb[0].mxu0
  %v2329 = vadd.f32 0.0, %v2328
  %v2330 = vpop.f32.mrb[0].mxu0
  %2331 = vmatprep.mubr.f32.mxu0 0.0
  %2332 = vmatmul.mubr.f32.gmra.mrb[0].mxu0 %v1010
  %v2333 = vpop.f32.mrb[0].mxu0
  %v2334 = vadd.f32 0.0, %v2333
  %v2335 = vpop.f32.mrb[0].mxu0
  %2336 = vmatprep.mubr.f32.mxu0 0.0
  %2337 = vmatmul.mubr.f32.gmra.mrb[0].mxu0 %v1013
  %v2338 = vpop.f32.mrb[0].mxu0
  %v2339 = vadd.f32 0.0, %v2338
  %v2340 = vpop.f32.mrb[0].mxu0
  %2341 = vmatprep.mubr.f32.mxu0 0.0
  %2342 = vmatmul.mubr.f32.gmra.mrb[0].mxu0 %v1016
  %v2343 = vpop.f32.mrb[0].mxu0
  %v2344 = vadd.f32 0.0, %v2343
  %v2345 = vpop.f32.mrb[0].mxu0
  %2346 = vmatprep.mubr.f32.mxu0 0.0
  %2347 = vmatmul.mubr.f32.gmra.mrb[0].mxu0 %v1019
  %v2348 = vpop.f32.mrb[0].mxu0
  %v2349 = vadd.f32 0.0, %v2348
  %v2350 = vpop.f32.mrb[0].mxu0
  %2351 = vmatprep.mubr.f32.mxu0 0.0
  %2352 = vmatmul.mubr.f32.gmra.mrb[0].mxu0 %v1022
  %v2353 = vpop.f32.mrb[0].mxu0
  %v2354 = vadd.f32 0.0, %v2353
  %v2355 = vpop.f32.mrb[0].mxu0
  %2356 = vmatprep.mubr.f32.mxu0 0.0
  %2357 = vmatmul.mubr.f32.gmra.mrb[0].mxu0 %v1025
  %v2358 = vpop.f32.mrb[0].mxu0
  %v2359 = vadd.f32 0.0, %v2358
  %v2360 = vpop.f32.mrb[0].mxu0
  %2361 = vmatprep.mubr.f32.mxu0 0.0
  %2362 = vmatmul.mubr.f32.gmra.mrb[0].mxu0 %v1028
  %v2363 = vpop.f32.mrb[0].mxu0
  %v2364 = vadd.f32 0.0, %v2363
  %v2365 = vpop.f32.mrb[0].mxu0
  %2366 = vmatprep.mubr.f32.mxu0 0.0
  %2367 = vmatmul.mubr.f32.gmra.mrb[0].mxu0 %v1031
  %v2368 = vpop.f32.mrb[0].mxu0
  %v2369 = vadd.f32 0.0, %v2368
  %v2370 = vpop.f32.mrb[0].mxu0
  %2371 = vmatprep.mubr.f32.mxu0 0.0
  %2372 = vmatmul.mubr.f32.gmra.mrb[0].mxu0 %v1034
  %v2373 = vpop.f32.mrb[0].mxu0
  %v2374 = vadd.f32 0.0, %v2373
  %v2375 = vpop.f32.mrb[0].mxu0
  %2376 = vmatprep.mubr.f32.mxu0 0.0
  %2377 = vmatmul.mubr.f32.gmra.mrb[0].mxu0 %v1037
  %v2378 = vpop.f32.mrb[0].mxu0
  %v2379 = vadd.f32 0.0, %v2378
  %v2380 = vpop.f32.mrb[0].mxu0
  %2381 = vmatprep.mubr.f32.mxu0 0.0
  %2382 = vmatmul.mubr.f32.gmra.mrb[0].mxu0 %v1040
  %v2383 = vpop.f32.mrb[0].mxu0
  %v2384 = vadd.f32 0.0, %v2383
  %v2385 = vpop.f32.mrb[0].mxu0
  %2386 = vmatprep.mubr.f32.mxu0 0.0
  %2387 = vmatmul.mubr.f32.gmra.mrb[0].mxu0 %v1043
  %v2388 = vpop.f32.mrb[0].mxu0
  %v2389 = vadd.f32 0.0, %v2388
  %v2390 = vpop.f32.mrb[0].mxu0
  %2391 = vmatprep.mubr.f32.mxu0 0.0
  %2392 = vmatmul.mubr.f32.gmra.mrb[0].mxu0 %v1046
  %v2393 = vpop.f32.mrb[0].mxu0
  %v2394 = vadd.f32 0.0, %v2393
  %v2395 = vpop.f32.mrb[0].mxu0
  %2396 = vdwg.mxu0
  %v2398 = vlaneseq
  %v2399 = vshrl.u32 %v2398, 7
  %v2400 = vsub.s32 0, %v2399
  %v2401 = vrot.slane %v21, %v2400
  %v2403 = vmul.f32 %v1119, %v2401
  %v2404 = vmul.f32 %v1124, %v2401
  %v2405 = vmul.f32 %v1129, %v2401
  %v2406 = vmul.f32 %v1134, %v2401
  %v2407 = vmul.f32 %v1139, %v2401
  %v2408 = vmul.f32 %v1144, %v2401
  %v2409 = vmul.f32 %v1149, %v2401
  %v2410 = vmul.f32 %v1154, %v2401
  %v2411 = vmul.f32 %v1159, %v2401
  %v2412 = vmul.f32 %v1164, %v2401
  %v2413 = vmul.f32 %v1169, %v2401
  %v2414 = vmul.f32 %v1174, %v2401
  %v2415 = vmul.f32 %v1179, %v2401
  %v2416 = vmul.f32 %v1184, %v2401
  %v2417 = vmul.f32 %v1189, %v2401
  %v2418 = vmul.f32 %v1194, %v2401
  %v2419 = vmul.f32 %v1199, %v2401
  %v2420 = vmul.f32 %v1204, %v2401
  %v2421 = vmul.f32 %v1209, %v2401
  %v2422 = vmul.f32 %v1214, %v2401
  %v2423 = vmul.f32 %v1219, %v2401
  %v2424 = vmul.f32 %v1224, %v2401
  %v2425 = vmul.f32 %v1229, %v2401
  %v2426 = vmul.f32 %v1234, %v2401
  %v2427 = vmul.f32 %v1239, %v2401
  %v2428 = vmul.f32 %v1244, %v2401
  %v2429 = vmul.f32 %v1249, %v2401
  %v2430 = vmul.f32 %v1254, %v2401
  %v2431 = vmul.f32 %v1259, %v2401
  %v2432 = vmul.f32 %v1264, %v2401
  %v2433 = vmul.f32 %v1269, %v2401
  %v2434 = vmul.f32 %v1274, %v2401
  %v2435 = vmul.f32 %v1279, %v2401
  %v2436 = vmul.f32 %v1284, %v2401
  %v2437 = vmul.f32 %v1289, %v2401
  %v2438 = vmul.f32 %v1294, %v2401
  %v2439 = vmul.f32 %v1299, %v2401
  %v2440 = vmul.f32 %v1304, %v2401
  %v2441 = vmul.f32 %v1309, %v2401
  %v2442 = vmul.f32 %v1314, %v2401
  %v2443 = vmul.f32 %v1319, %v2401
  %v2444 = vmul.f32 %v1324, %v2401
  %v2445 = vmul.f32 %v1329, %v2401
  %v2446 = vmul.f32 %v1334, %v2401
  %v2447 = vmul.f32 %v1339, %v2401
  %v2448 = vmul.f32 %v1344, %v2401
  %v2449 = vmul.f32 %v1349, %v2401
  %v2450 = vmul.f32 %v1354, %v2401
  %v2451 = vmul.f32 %v1359, %v2401
  %v2452 = vmul.f32 %v1364, %v2401
  %v2453 = vmul.f32 %v1369, %v2401
  %v2454 = vmul.f32 %v1374, %v2401
  %v2455 = vmul.f32 %v1379, %v2401
  %v2456 = vmul.f32 %v1384, %v2401
  %v2457 = vmul.f32 %v1389, %v2401
  %v2458 = vmul.f32 %v1394, %v2401
  %v2459 = vmul.f32 %v1399, %v2401
  %v2460 = vmul.f32 %v1404, %v2401
  %v2461 = vmul.f32 %v1409, %v2401
  %v2462 = vmul.f32 %v1414, %v2401
  %v2463 = vmul.f32 %v1419, %v2401
  %v2464 = vmul.f32 %v1424, %v2401
  %v2465 = vmul.f32 %v1429, %v2401
  %v2466 = vmul.f32 %v1434, %v2401
  %v2467 = vmul.f32 %v1439, %v2401
  %v2468 = vmul.f32 %v1444, %v2401
  %v2469 = vmul.f32 %v1449, %v2401
  %v2470 = vmul.f32 %v1454, %v2401
  %v2471 = vmul.f32 %v1459, %v2401
  %v2472 = vmul.f32 %v1464, %v2401
  %v2473 = vmul.f32 %v1469, %v2401
  %v2474 = vmul.f32 %v1474, %v2401
  %v2475 = vmul.f32 %v1479, %v2401
  %v2476 = vmul.f32 %v1484, %v2401
  %v2477 = vmul.f32 %v1489, %v2401
  %v2478 = vmul.f32 %v1494, %v2401
  %v2479 = vmul.f32 %v1499, %v2401
  %v2480 = vmul.f32 %v1504, %v2401
  %v2481 = vmul.f32 %v1509, %v2401
  %v2482 = vmul.f32 %v1514, %v2401
  %v2483 = vmul.f32 %v1519, %v2401
  %v2484 = vmul.f32 %v1524, %v2401
  %v2485 = vmul.f32 %v1529, %v2401
  %v2486 = vmul.f32 %v1534, %v2401
  %v2487 = vmul.f32 %v1539, %v2401
  %v2488 = vmul.f32 %v1544, %v2401
  %v2489 = vmul.f32 %v1549, %v2401
  %v2490 = vmul.f32 %v1554, %v2401
  %v2491 = vmul.f32 %v1559, %v2401
  %v2492 = vmul.f32 %v1564, %v2401
  %v2493 = vmul.f32 %v1569, %v2401
  %v2494 = vmul.f32 %v1574, %v2401
  %v2495 = vmul.f32 %v1579, %v2401
  %v2496 = vmul.f32 %v1584, %v2401
  %v2497 = vmul.f32 %v1589, %v2401
  %v2498 = vmul.f32 %v1594, %v2401
  %v2499 = vmul.f32 %v1599, %v2401
  %v2500 = vmul.f32 %v1604, %v2401
  %v2501 = vmul.f32 %v1609, %v2401
  %v2502 = vmul.f32 %v1614, %v2401
  %v2503 = vmul.f32 %v1619, %v2401
  %v2504 = vmul.f32 %v1624, %v2401
  %v2505 = vmul.f32 %v1629, %v2401
  %v2506 = vmul.f32 %v1634, %v2401
  %v2507 = vmul.f32 %v1639, %v2401
  %v2508 = vmul.f32 %v1644, %v2401
  %v2509 = vmul.f32 %v1649, %v2401
  %v2510 = vmul.f32 %v1654, %v2401
  %v2511 = vmul.f32 %v1659, %v2401
  %v2512 = vmul.f32 %v1664, %v2401
  %v2513 = vmul.f32 %v1669, %v2401
  %v2514 = vmul.f32 %v1674, %v2401
  %v2515 = vmul.f32 %v1679, %v2401
  %v2516 = vmul.f32 %v1684, %v2401
  %v2517 = vmul.f32 %v1689, %v2401
  %v2518 = vmul.f32 %v1694, %v2401
  %v2519 = vmul.f32 %v1699, %v2401
  %v2520 = vmul.f32 %v1704, %v2401
  %v2521 = vmul.f32 %v1709, %v2401
  %v2522 = vmul.f32 %v1714, %v2401
  %v2523 = vmul.f32 %v1719, %v2401
  %v2524 = vmul.f32 %v1724, %v2401
  %v2525 = vmul.f32 %v1729, %v2401
  %v2526 = vmul.f32 %v1734, %v2401
  %v2527 = vmul.f32 %v1739, %v2401
  %v2528 = vmul.f32 %v1744, %v2401
  %v2529 = vmul.f32 %v1749, %v2401
  %v2530 = vmul.f32 %v1754, %v2401
  %v2531 = vmul.f32 %v1759, %v2401
  %v2532 = vmul.f32 %v1764, %v2401
  %v2533 = vmul.f32 %v1769, %v2401
  %v2534 = vmul.f32 %v1774, %v2401
  %v2535 = vmul.f32 %v1779, %v2401
  %v2536 = vmul.f32 %v1784, %v2401
  %v2537 = vmul.f32 %v1789, %v2401
  %v2538 = vmul.f32 %v1794, %v2401
  %v2539 = vmul.f32 %v1799, %v2401
  %v2540 = vmul.f32 %v1804, %v2401
  %v2541 = vmul.f32 %v1809, %v2401
  %v2542 = vmul.f32 %v1814, %v2401
  %v2543 = vmul.f32 %v1819, %v2401
  %v2544 = vmul.f32 %v1824, %v2401
  %v2545 = vmul.f32 %v1829, %v2401
  %v2546 = vmul.f32 %v1834, %v2401
  %v2547 = vmul.f32 %v1839, %v2401
  %v2548 = vmul.f32 %v1844, %v2401
  %v2549 = vmul.f32 %v1849, %v2401
  %v2550 = vmul.f32 %v1854, %v2401
  %v2551 = vmul.f32 %v1859, %v2401
  %v2552 = vmul.f32 %v1864, %v2401
  %v2553 = vmul.f32 %v1869, %v2401
  %v2554 = vmul.f32 %v1874, %v2401
  %v2555 = vmul.f32 %v1879, %v2401
  %v2556 = vmul.f32 %v1884, %v2401
  %v2557 = vmul.f32 %v1889, %v2401
  %v2558 = vmul.f32 %v1894, %v2401
  %v2559 = vmul.f32 %v1899, %v2401
  %v2560 = vmul.f32 %v1904, %v2401
  %v2561 = vmul.f32 %v1909, %v2401
  %v2562 = vmul.f32 %v1914, %v2401
  %v2563 = vmul.f32 %v1919, %v2401
  %v2564 = vmul.f32 %v1924, %v2401
  %v2565 = vmul.f32 %v1929, %v2401
  %v2566 = vmul.f32 %v1934, %v2401
  %v2567 = vmul.f32 %v1939, %v2401
  %v2568 = vmul.f32 %v1944, %v2401
  %v2569 = vmul.f32 %v1949, %v2401
  %v2570 = vmul.f32 %v1954, %v2401
  %v2571 = vmul.f32 %v1959, %v2401
  %v2572 = vmul.f32 %v1964, %v2401
  %v2573 = vmul.f32 %v1969, %v2401
  %v2574 = vmul.f32 %v1974, %v2401
  %v2575 = vmul.f32 %v1979, %v2401
  %v2576 = vmul.f32 %v1984, %v2401
  %v2577 = vmul.f32 %v1989, %v2401
  %v2578 = vmul.f32 %v1994, %v2401
  %v2579 = vmul.f32 %v1999, %v2401
  %v2580 = vmul.f32 %v2004, %v2401
  %v2581 = vmul.f32 %v2009, %v2401
  %v2582 = vmul.f32 %v2014, %v2401
  %v2583 = vmul.f32 %v2019, %v2401
  %v2584 = vmul.f32 %v2024, %v2401
  %v2585 = vmul.f32 %v2029, %v2401
  %v2586 = vmul.f32 %v2034, %v2401
  %v2587 = vmul.f32 %v2039, %v2401
  %v2588 = vmul.f32 %v2044, %v2401
  %v2589 = vmul.f32 %v2049, %v2401
  %v2590 = vmul.f32 %v2054, %v2401
  %v2591 = vmul.f32 %v2059, %v2401
  %v2592 = vmul.f32 %v2064, %v2401
  %v2593 = vmul.f32 %v2069, %v2401
  %v2594 = vmul.f32 %v2074, %v2401
  %v2595 = vmul.f32 %v2079, %v2401
  %v2596 = vmul.f32 %v2084, %v2401
  %v2597 = vmul.f32 %v2089, %v2401
  %v2598 = vmul.f32 %v2094, %v2401
  %v2599 = vmul.f32 %v2099, %v2401
  %v2600 = vmul.f32 %v2104, %v2401
  %v2601 = vmul.f32 %v2109, %v2401
  %v2602 = vmul.f32 %v2114, %v2401
  %v2603 = vmul.f32 %v2119, %v2401
  %v2604 = vmul.f32 %v2124, %v2401
  %v2605 = vmul.f32 %v2129, %v2401
  %v2606 = vmul.f32 %v2134, %v2401
  %v2607 = vmul.f32 %v2139, %v2401
  %v2608 = vmul.f32 %v2144, %v2401
  %v2609 = vmul.f32 %v2149, %v2401
  %v2610 = vmul.f32 %v2154, %v2401
  %v2611 = vmul.f32 %v2159, %v2401
  %v2612 = vmul.f32 %v2164, %v2401
  %v2613 = vmul.f32 %v2169, %v2401
  %v2614 = vmul.f32 %v2174, %v2401
  %v2615 = vmul.f32 %v2179, %v2401
  %v2616 = vmul.f32 %v2184, %v2401
  %v2617 = vmul.f32 %v2189, %v2401
  %v2618 = vmul.f32 %v2194, %v2401
  %v2619 = vmul.f32 %v2199, %v2401
  %v2620 = vmul.f32 %v2204, %v2401
  %v2621 = vmul.f32 %v2209, %v2401
  %v2622 = vmul.f32 %v2214, %v2401
  %v2623 = vmul.f32 %v2219, %v2401
  %v2624 = vmul.f32 %v2224, %v2401
  %v2625 = vmul.f32 %v2229, %v2401
  %v2626 = vmul.f32 %v2234, %v2401
  %v2627 = vmul.f32 %v2239, %v2401
  %v2628 = vmul.f32 %v2244, %v2401
  %v2629 = vmul.f32 %v2249, %v2401
  %v2630 = vmul.f32 %v2254, %v2401
  %v2631 = vmul.f32 %v2259, %v2401
  %v2632 = vmul.f32 %v2264, %v2401
  %v2633 = vmul.f32 %v2269, %v2401
  %v2634 = vmul.f32 %v2274, %v2401
  %v2635 = vmul.f32 %v2279, %v2401
  %v2636 = vmul.f32 %v2284, %v2401
  %v2637 = vmul.f32 %v2289, %v2401
  %v2638 = vmul.f32 %v2294, %v2401
  %v2639 = vmul.f32 %v2299, %v2401
  %v2640 = vmul.f32 %v2304, %v2401
  %v2641 = vmul.f32 %v2309, %v2401
  %v2642 = vmul.f32 %v2314, %v2401
  %v2643 = vmul.f32 %v2319, %v2401
  %v2644 = vmul.f32 %v2324, %v2401
  %v2645 = vmul.f32 %v2329, %v2401
  %v2646 = vmul.f32 %v2334, %v2401
  %v2647 = vmul.f32 %v2339, %v2401
  %v2648 = vmul.f32 %v2344, %v2401
  %v2649 = vmul.f32 %v2349, %v2401
  %v2650 = vmul.f32 %v2354, %v2401
  %v2651 = vmul.f32 %v2359, %v2401
  %v2652 = vmul.f32 %v2364, %v2401
  %v2653 = vmul.f32 %v2369, %v2401
  %v2654 = vmul.f32 %v2374, %v2401
  %v2655 = vmul.f32 %v2379, %v2401
  %v2656 = vmul.f32 %v2384, %v2401
  %v2657 = vmul.f32 %v2389, %v2401
  %v2658 = vmul.f32 %v2394, %v2401
  %v2660 = vlaneseq
  %v2661 = vshrl.u32 %v2660, 7
  %v2662 = vsub.s32 0, %v2661
  %v2663 = vrot.slane %v22, %v2662
  %v2665 = vadd.f32 %v2403, %v2663
  %v2666 = vadd.f32 %v2404, %v2663
  %v2667 = vadd.f32 %v2405, %v2663
  %v2668 = vadd.f32 %v2406, %v2663
  %v2669 = vadd.f32 %v2407, %v2663
  %v2670 = vadd.f32 %v2408, %v2663
  %v2671 = vadd.f32 %v2409, %v2663
  %v2672 = vadd.f32 %v2410, %v2663
  %v2673 = vadd.f32 %v2411, %v2663
  %v2674 = vadd.f32 %v2412, %v2663
  %v2675 = vadd.f32 %v2413, %v2663
  %v2676 = vadd.f32 %v2414, %v2663
  %v2677 = vadd.f32 %v2415, %v2663
  %v2678 = vadd.f32 %v2416, %v2663
  %v2679 = vadd.f32 %v2417, %v2663
  %v2680 = vadd.f32 %v2418, %v2663
  %v2681 = vadd.f32 %v2419, %v2663
  %v2682 = vadd.f32 %v2420, %v2663
  %v2683 = vadd.f32 %v2421, %v2663
  %v2684 = vadd.f32 %v2422, %v2663
  %v2685 = vadd.f32 %v2423, %v2663
  %v2686 = vadd.f32 %v2424, %v2663
  %v2687 = vadd.f32 %v2425, %v2663
  %v2688 = vadd.f32 %v2426, %v2663
  %v2689 = vadd.f32 %v2427, %v2663
  %v2690 = vadd.f32 %v2428, %v2663
  %v2691 = vadd.f32 %v2429, %v2663
  %v2692 = vadd.f32 %v2430, %v2663
  %v2693 = vadd.f32 %v2431, %v2663
  %v2694 = vadd.f32 %v2432, %v2663
  %v2695 = vadd.f32 %v2433, %v2663
  %v2696 = vadd.f32 %v2434, %v2663
  %v2697 = vadd.f32 %v2435, %v2663
  %v2698 = vadd.f32 %v2436, %v2663
  %v2699 = vadd.f32 %v2437, %v2663
  %v2700 = vadd.f32 %v2438, %v2663
  %v2701 = vadd.f32 %v2439, %v2663
  %v2702 = vadd.f32 %v2440, %v2663
  %v2703 = vadd.f32 %v2441, %v2663
  %v2704 = vadd.f32 %v2442, %v2663
  %v2705 = vadd.f32 %v2443, %v2663
  %v2706 = vadd.f32 %v2444, %v2663
  %v2707 = vadd.f32 %v2445, %v2663
  %v2708 = vadd.f32 %v2446, %v2663
  %v2709 = vadd.f32 %v2447, %v2663
  %v2710 = vadd.f32 %v2448, %v2663
  %v2711 = vadd.f32 %v2449, %v2663
  %v2712 = vadd.f32 %v2450, %v2663
  %v2713 = vadd.f32 %v2451, %v2663
  %v2714 = vadd.f32 %v2452, %v2663
  %v2715 = vadd.f32 %v2453, %v2663
  %v2716 = vadd.f32 %v2454, %v2663
  %v2717 = vadd.f32 %v2455, %v2663
  %v2718 = vadd.f32 %v2456, %v2663
  %v2719 = vadd.f32 %v2457, %v2663
  %v2720 = vadd.f32 %v2458, %v2663
  %v2721 = vadd.f32 %v2459, %v2663
  %v2722 = vadd.f32 %v2460, %v2663
  %v2723 = vadd.f32 %v2461, %v2663
  %v2724 = vadd.f32 %v2462, %v2663
  %v2725 = vadd.f32 %v2463, %v2663
  %v2726 = vadd.f32 %v2464, %v2663
  %v2727 = vadd.f32 %v2465, %v2663
  %v2728 = vadd.f32 %v2466, %v2663
  %v2729 = vadd.f32 %v2467, %v2663
  %v2730 = vadd.f32 %v2468, %v2663
  %v2731 = vadd.f32 %v2469, %v2663
  %v2732 = vadd.f32 %v2470, %v2663
  %v2733 = vadd.f32 %v2471, %v2663
  %v2734 = vadd.f32 %v2472, %v2663
  %v2735 = vadd.f32 %v2473, %v2663
  %v2736 = vadd.f32 %v2474, %v2663
  %v2737 = vadd.f32 %v2475, %v2663
  %v2738 = vadd.f32 %v2476, %v2663
  %v2739 = vadd.f32 %v2477, %v2663
  %v2740 = vadd.f32 %v2478, %v2663
  %v2741 = vadd.f32 %v2479, %v2663
  %v2742 = vadd.f32 %v2480, %v2663
  %v2743 = vadd.f32 %v2481, %v2663
  %v2744 = vadd.f32 %v2482, %v2663
  %v2745 = vadd.f32 %v2483, %v2663
  %v2746 = vadd.f32 %v2484, %v2663
  %v2747 = vadd.f32 %v2485, %v2663
  %v2748 = vadd.f32 %v2486, %v2663
  %v2749 = vadd.f32 %v2487, %v2663
  %v2750 = vadd.f32 %v2488, %v2663
  %v2751 = vadd.f32 %v2489, %v2663
  %v2752 = vadd.f32 %v2490, %v2663
  %v2753 = vadd.f32 %v2491, %v2663
  %v2754 = vadd.f32 %v2492, %v2663
  %v2755 = vadd.f32 %v2493, %v2663
  %v2756 = vadd.f32 %v2494, %v2663
  %v2757 = vadd.f32 %v2495, %v2663
  %v2758 = vadd.f32 %v2496, %v2663
  %v2759 = vadd.f32 %v2497, %v2663
  %v2760 = vadd.f32 %v2498, %v2663
  %v2761 = vadd.f32 %v2499, %v2663
  %v2762 = vadd.f32 %v2500, %v2663
  %v2763 = vadd.f32 %v2501, %v2663
  %v2764 = vadd.f32 %v2502, %v2663
  %v2765 = vadd.f32 %v2503, %v2663
  %v2766 = vadd.f32 %v2504, %v2663
  %v2767 = vadd.f32 %v2505, %v2663
  %v2768 = vadd.f32 %v2506, %v2663
  %v2769 = vadd.f32 %v2507, %v2663
  %v2770 = vadd.f32 %v2508, %v2663
  %v2771 = vadd.f32 %v2509, %v2663
  %v2772 = vadd.f32 %v2510, %v2663
  %v2773 = vadd.f32 %v2511, %v2663
  %v2774 = vadd.f32 %v2512, %v2663
  %v2775 = vadd.f32 %v2513, %v2663
  %v2776 = vadd.f32 %v2514, %v2663
  %v2777 = vadd.f32 %v2515, %v2663
  %v2778 = vadd.f32 %v2516, %v2663
  %v2779 = vadd.f32 %v2517, %v2663
  %v2780 = vadd.f32 %v2518, %v2663
  %v2781 = vadd.f32 %v2519, %v2663
  %v2782 = vadd.f32 %v2520, %v2663
  %v2783 = vadd.f32 %v2521, %v2663
  %v2784 = vadd.f32 %v2522, %v2663
  %v2785 = vadd.f32 %v2523, %v2663
  %v2786 = vadd.f32 %v2524, %v2663
  %v2787 = vadd.f32 %v2525, %v2663
  %v2788 = vadd.f32 %v2526, %v2663
  %v2789 = vadd.f32 %v2527, %v2663
  %v2790 = vadd.f32 %v2528, %v2663
  %v2791 = vadd.f32 %v2529, %v2663
  %v2792 = vadd.f32 %v2530, %v2663
  %v2793 = vadd.f32 %v2531, %v2663
  %v2794 = vadd.f32 %v2532, %v2663
  %v2795 = vadd.f32 %v2533, %v2663
  %v2796 = vadd.f32 %v2534, %v2663
  %v2797 = vadd.f32 %v2535, %v2663
  %v2798 = vadd.f32 %v2536, %v2663
  %v2799 = vadd.f32 %v2537, %v2663
  %v2800 = vadd.f32 %v2538, %v2663
  %v2801 = vadd.f32 %v2539, %v2663
  %v2802 = vadd.f32 %v2540, %v2663
  %v2803 = vadd.f32 %v2541, %v2663
  %v2804 = vadd.f32 %v2542, %v2663
  %v2805 = vadd.f32 %v2543, %v2663
  %v2806 = vadd.f32 %v2544, %v2663
  %v2807 = vadd.f32 %v2545, %v2663
  %v2808 = vadd.f32 %v2546, %v2663
  %v2809 = vadd.f32 %v2547, %v2663
  %v2810 = vadd.f32 %v2548, %v2663
  %v2811 = vadd.f32 %v2549, %v2663
  %v2812 = vadd.f32 %v2550, %v2663
  %v2813 = vadd.f32 %v2551, %v2663
  %v2814 = vadd.f32 %v2552, %v2663
  %v2815 = vadd.f32 %v2553, %v2663
  %v2816 = vadd.f32 %v2554, %v2663
  %v2817 = vadd.f32 %v2555, %v2663
  %v2818 = vadd.f32 %v2556, %v2663
  %v2819 = vadd.f32 %v2557, %v2663
  %v2820 = vadd.f32 %v2558, %v2663
  %v2821 = vadd.f32 %v2559, %v2663
  %v2822 = vadd.f32 %v2560, %v2663
  %v2823 = vadd.f32 %v2561, %v2663
  %v2824 = vadd.f32 %v2562, %v2663
  %v2825 = vadd.f32 %v2563, %v2663
  %v2826 = vadd.f32 %v2564, %v2663
  %v2827 = vadd.f32 %v2565, %v2663
  %v2828 = vadd.f32 %v2566, %v2663
  %v2829 = vadd.f32 %v2567, %v2663
  %v2830 = vadd.f32 %v2568, %v2663
  %v2831 = vadd.f32 %v2569, %v2663
  %v2832 = vadd.f32 %v2570, %v2663
  %v2833 = vadd.f32 %v2571, %v2663
  %v2834 = vadd.f32 %v2572, %v2663
  %v2835 = vadd.f32 %v2573, %v2663
  %v2836 = vadd.f32 %v2574, %v2663
  %v2837 = vadd.f32 %v2575, %v2663
  %v2838 = vadd.f32 %v2576, %v2663
  %v2839 = vadd.f32 %v2577, %v2663
  %v2840 = vadd.f32 %v2578, %v2663
  %v2841 = vadd.f32 %v2579, %v2663
  %v2842 = vadd.f32 %v2580, %v2663
  %v2843 = vadd.f32 %v2581, %v2663
  %v2844 = vadd.f32 %v2582, %v2663
  %v2845 = vadd.f32 %v2583, %v2663
  %v2846 = vadd.f32 %v2584, %v2663
  %v2847 = vadd.f32 %v2585, %v2663
  %v2848 = vadd.f32 %v2586, %v2663
  %v2849 = vadd.f32 %v2587, %v2663
  %v2850 = vadd.f32 %v2588, %v2663
  %v2851 = vadd.f32 %v2589, %v2663
  %v2852 = vadd.f32 %v2590, %v2663
  %v2853 = vadd.f32 %v2591, %v2663
  %v2854 = vadd.f32 %v2592, %v2663
  %v2855 = vadd.f32 %v2593, %v2663
  %v2856 = vadd.f32 %v2594, %v2663
  %v2857 = vadd.f32 %v2595, %v2663
  %v2858 = vadd.f32 %v2596, %v2663
  %v2859 = vadd.f32 %v2597, %v2663
  %v2860 = vadd.f32 %v2598, %v2663
  %v2861 = vadd.f32 %v2599, %v2663
  %v2862 = vadd.f32 %v2600, %v2663
  %v2863 = vadd.f32 %v2601, %v2663
  %v2864 = vadd.f32 %v2602, %v2663
  %v2865 = vadd.f32 %v2603, %v2663
  %v2866 = vadd.f32 %v2604, %v2663
  %v2867 = vadd.f32 %v2605, %v2663
  %v2868 = vadd.f32 %v2606, %v2663
  %v2869 = vadd.f32 %v2607, %v2663
  %v2870 = vadd.f32 %v2608, %v2663
  %v2871 = vadd.f32 %v2609, %v2663
  %v2872 = vadd.f32 %v2610, %v2663
  %v2873 = vadd.f32 %v2611, %v2663
  %v2874 = vadd.f32 %v2612, %v2663
  %v2875 = vadd.f32 %v2613, %v2663
  %v2876 = vadd.f32 %v2614, %v2663
  %v2877 = vadd.f32 %v2615, %v2663
  %v2878 = vadd.f32 %v2616, %v2663
  %v2879 = vadd.f32 %v2617, %v2663
  %v2880 = vadd.f32 %v2618, %v2663
  %v2881 = vadd.f32 %v2619, %v2663
  %v2882 = vadd.f32 %v2620, %v2663
  %v2883 = vadd.f32 %v2621, %v2663
  %v2884 = vadd.f32 %v2622, %v2663
  %v2885 = vadd.f32 %v2623, %v2663
  %v2886 = vadd.f32 %v2624, %v2663
  %v2887 = vadd.f32 %v2625, %v2663
  %v2888 = vadd.f32 %v2626, %v2663
  %v2889 = vadd.f32 %v2627, %v2663
  %v2890 = vadd.f32 %v2628, %v2663
  %v2891 = vadd.f32 %v2629, %v2663
  %v2892 = vadd.f32 %v2630, %v2663
  %v2893 = vadd.f32 %v2631, %v2663
  %v2894 = vadd.f32 %v2632, %v2663
  %v2895 = vadd.f32 %v2633, %v2663
  %v2896 = vadd.f32 %v2634, %v2663
  %v2897 = vadd.f32 %v2635, %v2663
  %v2898 = vadd.f32 %v2636, %v2663
  %v2899 = vadd.f32 %v2637, %v2663
  %v2900 = vadd.f32 %v2638, %v2663
  %v2901 = vadd.f32 %v2639, %v2663
  %v2902 = vadd.f32 %v2640, %v2663
  %v2903 = vadd.f32 %v2641, %v2663
  %v2904 = vadd.f32 %v2642, %v2663
  %v2905 = vadd.f32 %v2643, %v2663
  %v2906 = vadd.f32 %v2644, %v2663
  %v2907 = vadd.f32 %v2645, %v2663
  %v2908 = vadd.f32 %v2646, %v2663
  %v2909 = vadd.f32 %v2647, %v2663
  %v2910 = vadd.f32 %v2648, %v2663
  %v2911 = vadd.f32 %v2649, %v2663
  %v2912 = vadd.f32 %v2650, %v2663
  %v2913 = vadd.f32 %v2651, %v2663
  %v2914 = vadd.f32 %v2652, %v2663
  %v2915 = vadd.f32 %v2653, %v2663
  %v2916 = vadd.f32 %v2654, %v2663
  %v2917 = vadd.f32 %v2655, %v2663
  %v2918 = vadd.f32 %v2656, %v2663
  %v2919 = vadd.f32 %v2657, %v2663
  %v2920 = vadd.f32 %v2658, %v2663
  %v2921 = vmax.f32 %v2665, 0.0
  %v2922 = vmax.f32 %v2666, 0.0
  %v2923 = vmax.f32 %v2667, 0.0
  %v2924 = vmax.f32 %v2668, 0.0
  %v2925 = vmax.f32 %v2669, 0.0
  %v2926 = vmax.f32 %v2670, 0.0
  %v2927 = vmax.f32 %v2671, 0.0
  %v2928 = vmax.f32 %v2672, 0.0
  %v2929 = vmax.f32 %v2673, 0.0
  %v2930 = vmax.f32 %v2674, 0.0
  %v2931 = vmax.f32 %v2675, 0.0
  %v2932 = vmax.f32 %v2676, 0.0
  %v2933 = vmax.f32 %v2677, 0.0
  %v2934 = vmax.f32 %v2678, 0.0
  %v2935 = vmax.f32 %v2679, 0.0
  %v2936 = vmax.f32 %v2680, 0.0
  %v2937 = vmax.f32 %v2681, 0.0
  %v2938 = vmax.f32 %v2682, 0.0
  %v2939 = vmax.f32 %v2683, 0.0
  %v2940 = vmax.f32 %v2684, 0.0
  %v2941 = vmax.f32 %v2685, 0.0
  %v2942 = vmax.f32 %v2686, 0.0
  %v2943 = vmax.f32 %v2687, 0.0
  %v2944 = vmax.f32 %v2688, 0.0
  %v2945 = vmax.f32 %v2689, 0.0
  %v2946 = vmax.f32 %v2690, 0.0
  %v2947 = vmax.f32 %v2691, 0.0
  %v2948 = vmax.f32 %v2692, 0.0
  %v2949 = vmax.f32 %v2693, 0.0
  %v2950 = vmax.f32 %v2694, 0.0
  %v2951 = vmax.f32 %v2695, 0.0
  %v2952 = vmax.f32 %v2696, 0.0
  %v2953 = vmax.f32 %v2697, 0.0
  %v2954 = vmax.f32 %v2698, 0.0
  %v2955 = vmax.f32 %v2699, 0.0
  %v2956 = vmax.f32 %v2700, 0.0
  %v2957 = vmax.f32 %v2701, 0.0
  %v2958 = vmax.f32 %v2702, 0.0
  %v2959 = vmax.f32 %v2703, 0.0
  %v2960 = vmax.f32 %v2704, 0.0
  %v2961 = vmax.f32 %v2705, 0.0
  %v2962 = vmax.f32 %v2706, 0.0
  %v2963 = vmax.f32 %v2707, 0.0
  %v2964 = vmax.f32 %v2708, 0.0
  %v2965 = vmax.f32 %v2709, 0.0
  %v2966 = vmax.f32 %v2710, 0.0
  %v2967 = vmax.f32 %v2711, 0.0
  %v2968 = vmax.f32 %v2712, 0.0
  %v2969 = vmax.f32 %v2713, 0.0
  %v2970 = vmax.f32 %v2714, 0.0
  %v2971 = vmax.f32 %v2715, 0.0
  %v2972 = vmax.f32 %v2716, 0.0
  %v2973 = vmax.f32 %v2717, 0.0
  %v2974 = vmax.f32 %v2718, 0.0
  %v2975 = vmax.f32 %v2719, 0.0
  %v2976 = vmax.f32 %v2720, 0.0
  %v2977 = vmax.f32 %v2721, 0.0
  %v2978 = vmax.f32 %v2722, 0.0
  %v2979 = vmax.f32 %v2723, 0.0
  %v2980 = vmax.f32 %v2724, 0.0
  %v2981 = vmax.f32 %v2725, 0.0
  %v2982 = vmax.f32 %v2726, 0.0
  %v2983 = vmax.f32 %v2727, 0.0
  %v2984 = vmax.f32 %v2728, 0.0
  %v2985 = vmax.f32 %v2729, 0.0
  %v2986 = vmax.f32 %v2730, 0.0
  %v2987 = vmax.f32 %v2731, 0.0
  %v2988 = vmax.f32 %v2732, 0.0
  %v2989 = vmax.f32 %v2733, 0.0
  %v2990 = vmax.f32 %v2734, 0.0
  %v2991 = vmax.f32 %v2735, 0.0
  %v2992 = vmax.f32 %v2736, 0.0
  %v2993 = vmax.f32 %v2737, 0.0
  %v2994 = vmax.f32 %v2738, 0.0
  %v2995 = vmax.f32 %v2739, 0.0
  %v2996 = vmax.f32 %v2740, 0.0
  %v2997 = vmax.f32 %v2741, 0.0
  %v2998 = vmax.f32 %v2742, 0.0
  %v2999 = vmax.f32 %v2743, 0.0
  %v3000 = vmax.f32 %v2744, 0.0
  %v3001 = vmax.f32 %v2745, 0.0
  %v3002 = vmax.f32 %v2746, 0.0
  %v3003 = vmax.f32 %v2747, 0.0
  %v3004 = vmax.f32 %v2748, 0.0
  %v3005 = vmax.f32 %v2749, 0.0
  %v3006 = vmax.f32 %v2750, 0.0
  %v3007 = vmax.f32 %v2751, 0.0
  %v3008 = vmax.f32 %v2752, 0.0
  %v3009 = vmax.f32 %v2753, 0.0
  %v3010 = vmax.f32 %v2754, 0.0
  %v3011 = vmax.f32 %v2755, 0.0
  %v3012 = vmax.f32 %v2756, 0.0
  %v3013 = vmax.f32 %v2757, 0.0
  %v3014 = vmax.f32 %v2758, 0.0
  %v3015 = vmax.f32 %v2759, 0.0
  %v3016 = vmax.f32 %v2760, 0.0
  %v3017 = vmax.f32 %v2761, 0.0
  %v3018 = vmax.f32 %v2762, 0.0
  %v3019 = vmax.f32 %v2763, 0.0
  %v3020 = vmax.f32 %v2764, 0.0
  %v3021 = vmax.f32 %v2765, 0.0
  %v3022 = vmax.f32 %v2766, 0.0
  %v3023 = vmax.f32 %v2767, 0.0
  %v3024 = vmax.f32 %v2768, 0.0
  %v3025 = vmax.f32 %v2769, 0.0
  %v3026 = vmax.f32 %v2770, 0.0
  %v3027 = vmax.f32 %v2771, 0.0
  %v3028 = vmax.f32 %v2772, 0.0
  %v3029 = vmax.f32 %v2773, 0.0
  %v3030 = vmax.f32 %v2774, 0.0
  %v3031 = vmax.f32 %v2775, 0.0
  %v3032 = vmax.f32 %v2776, 0.0
  %v3033 = vmax.f32 %v2777, 0.0
  %v3034 = vmax.f32 %v2778, 0.0
  %v3035 = vmax.f32 %v2779, 0.0
  %v3036 = vmax.f32 %v2780, 0.0
  %v3037 = vmax.f32 %v2781, 0.0
  %v3038 = vmax.f32 %v2782, 0.0
  %v3039 = vmax.f32 %v2783, 0.0
  %v3040 = vmax.f32 %v2784, 0.0
  %v3041 = vmax.f32 %v2785, 0.0
  %v3042 = vmax.f32 %v2786, 0.0
  %v3043 = vmax.f32 %v2787, 0.0
  %v3044 = vmax.f32 %v2788, 0.0
  %v3045 = vmax.f32 %v2789, 0.0
  %v3046 = vmax.f32 %v2790, 0.0
  %v3047 = vmax.f32 %v2791, 0.0
  %v3048 = vmax.f32 %v2792, 0.0
  %v3049 = vmax.f32 %v2793, 0.0
  %v3050 = vmax.f32 %v2794, 0.0
  %v3051 = vmax.f32 %v2795, 0.0
  %v3052 = vmax.f32 %v2796, 0.0
  %v3053 = vmax.f32 %v2797, 0.0
  %v3054 = vmax.f32 %v2798, 0.0
  %v3055 = vmax.f32 %v2799, 0.0
  %v3056 = vmax.f32 %v2800, 0.0
  %v3057 = vmax.f32 %v2801, 0.0
  %v3058 = vmax.f32 %v2802, 0.0
  %v3059 = vmax.f32 %v2803, 0.0
  %v3060 = vmax.f32 %v2804, 0.0
  %v3061 = vmax.f32 %v2805, 0.0
  %v3062 = vmax.f32 %v2806, 0.0
  %v3063 = vmax.f32 %v2807, 0.0
  %v3064 = vmax.f32 %v2808, 0.0
  %v3065 = vmax.f32 %v2809, 0.0
  %v3066 = vmax.f32 %v2810, 0.0
  %v3067 = vmax.f32 %v2811, 0.0
  %v3068 = vmax.f32 %v2812, 0.0
  %v3069 = vmax.f32 %v2813, 0.0
  %v3070 = vmax.f32 %v2814, 0.0
  %v3071 = vmax.f32 %v2815, 0.0
  %v3072 = vmax.f32 %v2816, 0.0
  %v3073 = vmax.f32 %v2817, 0.0
  %v3074 = vmax.f32 %v2818, 0.0
  %v3075 = vmax.f32 %v2819, 0.0
  %v3076 = vmax.f32 %v2820, 0.0
  %v3077 = vmax.f32 %v2821, 0.0
  %v3078 = vmax.f32 %v2822, 0.0
  %v3079 = vmax.f32 %v2823, 0.0
  %v3080 = vmax.f32 %v2824, 0.0
  %v3081 = vmax.f32 %v2825, 0.0
  %v3082 = vmax.f32 %v2826, 0.0
  %v3083 = vmax.f32 %v2827, 0.0
  %v3084 = vmax.f32 %v2828, 0.0
  %v3085 = vmax.f32 %v2829, 0.0
  %v3086 = vmax.f32 %v2830, 0.0
  %v3087 = vmax.f32 %v2831, 0.0
  %v3088 = vmax.f32 %v2832, 0.0
  %v3089 = vmax.f32 %v2833, 0.0
  %v3090 = vmax.f32 %v2834, 0.0
  %v3091 = vmax.f32 %v2835, 0.0
  %v3092 = vmax.f32 %v2836, 0.0
  %v3093 = vmax.f32 %v2837, 0.0
  %v3094 = vmax.f32 %v2838, 0.0
  %v3095 = vmax.f32 %v2839, 0.0
  %v3096 = vmax.f32 %v2840, 0.0
  %v3097 = vmax.f32 %v2841, 0.0
  %v3098 = vmax.f32 %v2842, 0.0
  %v3099 = vmax.f32 %v2843, 0.0
  %v3100 = vmax.f32 %v2844, 0.0
  %v3101 = vmax.f32 %v2845, 0.0
  %v3102 = vmax.f32 %v2846, 0.0
  %v3103 = vmax.f32 %v2847, 0.0
  %v3104 = vmax.f32 %v2848, 0.0
  %v3105 = vmax.f32 %v2849, 0.0
  %v3106 = vmax.f32 %v2850, 0.0
  %v3107 = vmax.f32 %v2851, 0.0
  %v3108 = vmax.f32 %v2852, 0.0
  %v3109 = vmax.f32 %v2853, 0.0
  %v3110 = vmax.f32 %v2854, 0.0
  %v3111 = vmax.f32 %v2855, 0.0
  %v3112 = vmax.f32 %v2856, 0.0
  %v3113 = vmax.f32 %v2857, 0.0
  %v3114 = vmax.f32 %v2858, 0.0
  %v3115 = vmax.f32 %v2859, 0.0
  %v3116 = vmax.f32 %v2860, 0.0
  %v3117 = vmax.f32 %v2861, 0.0
  %v3118 = vmax.f32 %v2862, 0.0
  %v3119 = vmax.f32 %v2863, 0.0
  %v3120 = vmax.f32 %v2864, 0.0
  %v3121 = vmax.f32 %v2865, 0.0
  %v3122 = vmax.f32 %v2866, 0.0
  %v3123 = vmax.f32 %v2867, 0.0
  %v3124 = vmax.f32 %v2868, 0.0
  %v3125 = vmax.f32 %v2869, 0.0
  %v3126 = vmax.f32 %v2870, 0.0
  %v3127 = vmax.f32 %v2871, 0.0
  %v3128 = vmax.f32 %v2872, 0.0
  %v3129 = vmax.f32 %v2873, 0.0
  %v3130 = vmax.f32 %v2874, 0.0
  %v3131 = vmax.f32 %v2875, 0.0
  %v3132 = vmax.f32 %v2876, 0.0
  %v3133 = vmax.f32 %v2877, 0.0
  %v3134 = vmax.f32 %v2878, 0.0
  %v3135 = vmax.f32 %v2879, 0.0
  %v3136 = vmax.f32 %v2880, 0.0
  %v3137 = vmax.f32 %v2881, 0.0
  %v3138 = vmax.f32 %v2882, 0.0
  %v3139 = vmax.f32 %v2883, 0.0
  %v3140 = vmax.f32 %v2884, 0.0
  %v3141 = vmax.f32 %v2885, 0.0
  %v3142 = vmax.f32 %v2886, 0.0
  %v3143 = vmax.f32 %v2887, 0.0
  %v3144 = vmax.f32 %v2888, 0.0
  %v3145 = vmax.f32 %v2889, 0.0
  %v3146 = vmax.f32 %v2890, 0.0
  %v3147 = vmax.f32 %v2891, 0.0
  %v3148 = vmax.f32 %v2892, 0.0
  %v3149 = vmax.f32 %v2893, 0.0
  %v3150 = vmax.f32 %v2894, 0.0
  %v3151 = vmax.f32 %v2895, 0.0
  %v3152 = vmax.f32 %v2896, 0.0
  %v3153 = vmax.f32 %v2897, 0.0
  %v3154 = vmax.f32 %v2898, 0.0
  %v3155 = vmax.f32 %v2899, 0.0
  %v3156 = vmax.f32 %v2900, 0.0
  %v3157 = vmax.f32 %v2901, 0.0
  %v3158 = vmax.f32 %v2902, 0.0
  %v3159 = vmax.f32 %v2903, 0.0
  %v3160 = vmax.f32 %v2904, 0.0
  %v3161 = vmax.f32 %v2905, 0.0
  %v3162 = vmax.f32 %v2906, 0.0
  %v3163 = vmax.f32 %v2907, 0.0
  %v3164 = vmax.f32 %v2908, 0.0
  %v3165 = vmax.f32 %v2909, 0.0
  %v3166 = vmax.f32 %v2910, 0.0
  %v3167 = vmax.f32 %v2911, 0.0
  %v3168 = vmax.f32 %v2912, 0.0
  %v3169 = vmax.f32 %v2913, 0.0
  %v3170 = vmax.f32 %v2914, 0.0
  %v3171 = vmax.f32 %v2915, 0.0
  %v3172 = vmax.f32 %v2916, 0.0
  %v3173 = vmax.f32 %v2917, 0.0
  %v3174 = vmax.f32 %v2918, 0.0
  %v3175 = vmax.f32 %v2919, 0.0
  %v3176 = vmax.f32 %v2920, 0.0
  %vm3177 = vcmask 261120
  %v3178 = vsel %vm3177, %v2921, -inf
  %v3179 = vsel %vm3177, %v2985, -inf
  %v3180 = vmax.f32 %v3178, %v3179
  %v3181 = vsel %vm3177, %v3049, -inf
  %v3182 = vmax.f32 %v3180, %v3181
  %v3183 = vsel %vm3177, %v3113, -inf
  %v3184 = vmax.f32 %v3182, %v3183
  %v3185 = vsel %vm3177, %v2922, -inf
  %v3186 = vsel %vm3177, %v2986, -inf
  %v3187 = vmax.f32 %v3185, %v3186
  %v3188 = vsel %vm3177, %v3050, -inf
  %v3189 = vmax.f32 %v3187, %v3188
  %v3190 = vsel %vm3177, %v3114, -inf
  %v3191 = vmax.f32 %v3189, %v3190
  %v3192 = vsel %vm3177, %v2923, -inf
  %v3193 = vsel %vm3177, %v2987, -inf
  %v3194 = vmax.f32 %v3192, %v3193
  %v3195 = vsel %vm3177, %v3051, -inf
  %v3196 = vmax.f32 %v3194, %v3195
  %v3197 = vsel %vm3177, %v3115, -inf
  %v3198 = vmax.f32 %v3196, %v3197
  %v3199 = vsel %vm3177, %v2924, -inf
  %v3200 = vsel %vm3177, %v2988, -inf
  %v3201 = vmax.f32 %v3199, %v3200
  %v3202 = vsel %vm3177, %v3052, -inf
  %v3203 = vmax.f32 %v3201, %v3202
  %v3204 = vsel %vm3177, %v3116, -inf
  %v3205 = vmax.f32 %v3203, %v3204
  %v3206 = vsel %vm3177, %v2925, -inf
  %v3207 = vsel %vm3177, %v2989, -inf
  %v3208 = vmax.f32 %v3206, %v3207
  %v3209 = vsel %vm3177, %v3053, -inf
  %v3210 = vmax.f32 %v3208, %v3209
  %v3211 = vsel %vm3177, %v3117, -inf
  %v3212 = vmax.f32 %v3210, %v3211
  %v3213 = vsel %vm3177, %v2926, -inf
  %v3214 = vsel %vm3177, %v2990, -inf
  %v3215 = vmax.f32 %v3213, %v3214
  %v3216 = vsel %vm3177, %v3054, -inf
  %v3217 = vmax.f32 %v3215, %v3216
  %v3218 = vsel %vm3177, %v3118, -inf
  %v3219 = vmax.f32 %v3217, %v3218
  %v3220 = vsel %vm3177, %v2927, -inf
  %v3221 = vsel %vm3177, %v2991, -inf
  %v3222 = vmax.f32 %v3220, %v3221
  %v3223 = vsel %vm3177, %v3055, -inf
  %v3224 = vmax.f32 %v3222, %v3223
  %v3225 = vsel %vm3177, %v3119, -inf
  %v3226 = vmax.f32 %v3224, %v3225
  %v3227 = vsel %vm3177, %v2928, -inf
  %v3228 = vsel %vm3177, %v2992, -inf
  %v3229 = vmax.f32 %v3227, %v3228
  %v3230 = vsel %vm3177, %v3056, -inf
  %v3231 = vmax.f32 %v3229, %v3230
  %v3232 = vsel %vm3177, %v3120, -inf
  %v3233 = vmax.f32 %v3231, %v3232
  %v3234 = vsel %vm3177, %v2929, -inf
  %v3235 = vsel %vm3177, %v2993, -inf
  %v3236 = vmax.f32 %v3234, %v3235
  %v3237 = vsel %vm3177, %v3057, -inf
  %v3238 = vmax.f32 %v3236, %v3237
  %v3239 = vsel %vm3177, %v3121, -inf
  %v3240 = vmax.f32 %v3238, %v3239
  %v3241 = vsel %vm3177, %v2930, -inf
  %v3242 = vsel %vm3177, %v2994, -inf
  %v3243 = vmax.f32 %v3241, %v3242
  %v3244 = vsel %vm3177, %v3058, -inf
  %v3245 = vmax.f32 %v3243, %v3244
  %v3246 = vsel %vm3177, %v3122, -inf
  %v3247 = vmax.f32 %v3245, %v3246
  %v3248 = vsel %vm3177, %v2931, -inf
  %v3249 = vsel %vm3177, %v2995, -inf
  %v3250 = vmax.f32 %v3248, %v3249
  %v3251 = vsel %vm3177, %v3059, -inf
  %v3252 = vmax.f32 %v3250, %v3251
  %v3253 = vsel %vm3177, %v3123, -inf
  %v3254 = vmax.f32 %v3252, %v3253
  %v3255 = vsel %vm3177, %v2932, -inf
  %v3256 = vsel %vm3177, %v2996, -inf
  %v3257 = vmax.f32 %v3255, %v3256
  %v3258 = vsel %vm3177, %v3060, -inf
  %v3259 = vmax.f32 %v3257, %v3258
  %v3260 = vsel %vm3177, %v3124, -inf
  %v3261 = vmax.f32 %v3259, %v3260
  %v3262 = vsel %vm3177, %v2933, -inf
  %v3263 = vsel %vm3177, %v2997, -inf
  %v3264 = vmax.f32 %v3262, %v3263
  %v3265 = vsel %vm3177, %v3061, -inf
  %v3266 = vmax.f32 %v3264, %v3265
  %v3267 = vsel %vm3177, %v3125, -inf
  %v3268 = vmax.f32 %v3266, %v3267
  %v3269 = vsel %vm3177, %v2934, -inf
  %v3270 = vsel %vm3177, %v2998, -inf
  %v3271 = vmax.f32 %v3269, %v3270
  %v3272 = vsel %vm3177, %v3062, -inf
  %v3273 = vmax.f32 %v3271, %v3272
  %v3274 = vsel %vm3177, %v3126, -inf
  %v3275 = vmax.f32 %v3273, %v3274
  %v3276 = vsel %vm3177, %v2935, -inf
  %v3277 = vsel %vm3177, %v2999, -inf
  %v3278 = vmax.f32 %v3276, %v3277
  %v3279 = vsel %vm3177, %v3063, -inf
  %v3280 = vmax.f32 %v3278, %v3279
  %v3281 = vsel %vm3177, %v3127, -inf
  %v3282 = vmax.f32 %v3280, %v3281
  %v3283 = vsel %vm3177, %v2936, -inf
  %v3284 = vsel %vm3177, %v3000, -inf
  %v3285 = vmax.f32 %v3283, %v3284
  %v3286 = vsel %vm3177, %v3064, -inf
  %v3287 = vmax.f32 %v3285, %v3286
  %v3288 = vsel %vm3177, %v3128, -inf
  %v3289 = vmax.f32 %v3287, %v3288
  %v3290 = vsel %vm3177, %v2937, -inf
  %v3291 = vsel %vm3177, %v3001, -inf
  %v3292 = vmax.f32 %v3290, %v3291
  %v3293 = vsel %vm3177, %v3065, -inf
  %v3294 = vmax.f32 %v3292, %v3293
  %v3295 = vsel %vm3177, %v3129, -inf
  %v3296 = vmax.f32 %v3294, %v3295
  %v3297 = vsel %vm3177, %v2938, -inf
  %v3298 = vsel %vm3177, %v3002, -inf
  %v3299 = vmax.f32 %v3297, %v3298
  %v3300 = vsel %vm3177, %v3066, -inf
  %v3301 = vmax.f32 %v3299, %v3300
  %v3302 = vsel %vm3177, %v3130, -inf
  %v3303 = vmax.f32 %v3301, %v3302
  %v3304 = vsel %vm3177, %v2939, -inf
  %v3305 = vsel %vm3177, %v3003, -inf
  %v3306 = vmax.f32 %v3304, %v3305
  %v3307 = vsel %vm3177, %v3067, -inf
  %v3308 = vmax.f32 %v3306, %v3307
  %v3309 = vsel %vm3177, %v3131, -inf
  %v3310 = vmax.f32 %v3308, %v3309
  %v3311 = vsel %vm3177, %v2940, -inf
  %v3312 = vsel %vm3177, %v3004, -inf
  %v3313 = vmax.f32 %v3311, %v3312
  %v3314 = vsel %vm3177, %v3068, -inf
  %v3315 = vmax.f32 %v3313, %v3314
  %v3316 = vsel %vm3177, %v3132, -inf
  %v3317 = vmax.f32 %v3315, %v3316
  %v3318 = vsel %vm3177, %v2941, -inf
  %v3319 = vsel %vm3177, %v3005, -inf
  %v3320 = vmax.f32 %v3318, %v3319
  %v3321 = vsel %vm3177, %v3069, -inf
  %v3322 = vmax.f32 %v3320, %v3321
  %v3323 = vsel %vm3177, %v3133, -inf
  %v3324 = vmax.f32 %v3322, %v3323
  %v3325 = vsel %vm3177, %v2942, -inf
  %v3326 = vsel %vm3177, %v3006, -inf
  %v3327 = vmax.f32 %v3325, %v3326
  %v3328 = vsel %vm3177, %v3070, -inf
  %v3329 = vmax.f32 %v3327, %v3328
  %v3330 = vsel %vm3177, %v3134, -inf
  %v3331 = vmax.f32 %v3329, %v3330
  %v3332 = vsel %vm3177, %v2943, -inf
  %v3333 = vsel %vm3177, %v3007, -inf
  %v3334 = vmax.f32 %v3332, %v3333
  %v3335 = vsel %vm3177, %v3071, -inf
  %v3336 = vmax.f32 %v3334, %v3335
  %v3337 = vsel %vm3177, %v3135, -inf
  %v3338 = vmax.f32 %v3336, %v3337
  %v3339 = vsel %vm3177, %v2944, -inf
  %v3340 = vsel %vm3177, %v3008, -inf
  %v3341 = vmax.f32 %v3339, %v3340
  %v3342 = vsel %vm3177, %v3072, -inf
  %v3343 = vmax.f32 %v3341, %v3342
  %v3344 = vsel %vm3177, %v3136, -inf
  %v3345 = vmax.f32 %v3343, %v3344
  %v3346 = vsel %vm3177, %v2945, -inf
  %v3347 = vsel %vm3177, %v3009, -inf
  %v3348 = vmax.f32 %v3346, %v3347
  %v3349 = vsel %vm3177, %v3073, -inf
  %v3350 = vmax.f32 %v3348, %v3349
  %v3351 = vsel %vm3177, %v3137, -inf
  %v3352 = vmax.f32 %v3350, %v3351
  %v3353 = vsel %vm3177, %v2946, -inf
  %v3354 = vsel %vm3177, %v3010, -inf
  %v3355 = vmax.f32 %v3353, %v3354
  %v3356 = vsel %vm3177, %v3074, -inf
  %v3357 = vmax.f32 %v3355, %v3356
  %v3358 = vsel %vm3177, %v3138, -inf
  %v3359 = vmax.f32 %v3357, %v3358
  %v3360 = vsel %vm3177, %v2947, -inf
  %v3361 = vsel %vm3177, %v3011, -inf
  %v3362 = vmax.f32 %v3360, %v3361
  %v3363 = vsel %vm3177, %v3075, -inf
  %v3364 = vmax.f32 %v3362, %v3363
  %v3365 = vsel %vm3177, %v3139, -inf
  %v3366 = vmax.f32 %v3364, %v3365
  %v3367 = vsel %vm3177, %v2948, -inf
  %v3368 = vsel %vm3177, %v3012, -inf
  %v3369 = vmax.f32 %v3367, %v3368
  %v3370 = vsel %vm3177, %v3076, -inf
  %v3371 = vmax.f32 %v3369, %v3370
  %v3372 = vsel %vm3177, %v3140, -inf
  %v3373 = vmax.f32 %v3371, %v3372
  %v3374 = vsel %vm3177, %v2949, -inf
  %v3375 = vsel %vm3177, %v3013, -inf
  %v3376 = vmax.f32 %v3374, %v3375
  %v3377 = vsel %vm3177, %v3077, -inf
  %v3378 = vmax.f32 %v3376, %v3377
  %v3379 = vsel %vm3177, %v3141, -inf
  %v3380 = vmax.f32 %v3378, %v3379
  %v3381 = vsel %vm3177, %v2950, -inf
  %v3382 = vsel %vm3177, %v3014, -inf
  %v3383 = vmax.f32 %v3381, %v3382
  %v3384 = vsel %vm3177, %v3078, -inf
  %v3385 = vmax.f32 %v3383, %v3384
  %v3386 = vsel %vm3177, %v3142, -inf
  %v3387 = vmax.f32 %v3385, %v3386
  %v3388 = vsel %vm3177, %v2951, -inf
  %v3389 = vsel %vm3177, %v3015, -inf
  %v3390 = vmax.f32 %v3388, %v3389
  %v3391 = vsel %vm3177, %v3079, -inf
  %v3392 = vmax.f32 %v3390, %v3391
  %v3393 = vsel %vm3177, %v3143, -inf
  %v3394 = vmax.f32 %v3392, %v3393
  %v3395 = vsel %vm3177, %v2952, -inf
  %v3396 = vsel %vm3177, %v3016, -inf
  %v3397 = vmax.f32 %v3395, %v3396
  %v3398 = vsel %vm3177, %v3080, -inf
  %v3399 = vmax.f32 %v3397, %v3398
  %v3400 = vsel %vm3177, %v3144, -inf
  %v3401 = vmax.f32 %v3399, %v3400
  %v3402 = vsel %vm3177, %v2953, -inf
  %v3403 = vsel %vm3177, %v3017, -inf
  %v3404 = vmax.f32 %v3402, %v3403
  %v3405 = vsel %vm3177, %v3081, -inf
  %v3406 = vmax.f32 %v3404, %v3405
  %v3407 = vsel %vm3177, %v3145, -inf
  %v3408 = vmax.f32 %v3406, %v3407
  %v3409 = vsel %vm3177, %v2954, -inf
  %v3410 = vsel %vm3177, %v3018, -inf
  %v3411 = vmax.f32 %v3409, %v3410
  %v3412 = vsel %vm3177, %v3082, -inf
  %v3413 = vmax.f32 %v3411, %v3412
  %v3414 = vsel %vm3177, %v3146, -inf
  %v3415 = vmax.f32 %v3413, %v3414
  %v3416 = vsel %vm3177, %v2955, -inf
  %v3417 = vsel %vm3177, %v3019, -inf
  %v3418 = vmax.f32 %v3416, %v3417
  %v3419 = vsel %vm3177, %v3083, -inf
  %v3420 = vmax.f32 %v3418, %v3419
  %v3421 = vsel %vm3177, %v3147, -inf
  %v3422 = vmax.f32 %v3420, %v3421
  %v3423 = vsel %vm3177, %v2956, -inf
  %v3424 = vsel %vm3177, %v3020, -inf
  %v3425 = vmax.f32 %v3423, %v3424
  %v3426 = vsel %vm3177, %v3084, -inf
  %v3427 = vmax.f32 %v3425, %v3426
  %v3428 = vsel %vm3177, %v3148, -inf
  %v3429 = vmax.f32 %v3427, %v3428
  %v3430 = vsel %vm3177, %v2957, -inf
  %v3431 = vsel %vm3177, %v3021, -inf
  %v3432 = vmax.f32 %v3430, %v3431
  %v3433 = vsel %vm3177, %v3085, -inf
  %v3434 = vmax.f32 %v3432, %v3433
  %v3435 = vsel %vm3177, %v3149, -inf
  %v3436 = vmax.f32 %v3434, %v3435
  %v3437 = vsel %vm3177, %v2958, -inf
  %v3438 = vsel %vm3177, %v3022, -inf
  %v3439 = vmax.f32 %v3437, %v3438
  %v3440 = vsel %vm3177, %v3086, -inf
  %v3441 = vmax.f32 %v3439, %v3440
  %v3442 = vsel %vm3177, %v3150, -inf
  %v3443 = vmax.f32 %v3441, %v3442
  %v3444 = vsel %vm3177, %v2959, -inf
  %v3445 = vsel %vm3177, %v3023, -inf
  %v3446 = vmax.f32 %v3444, %v3445
  %v3447 = vsel %vm3177, %v3087, -inf
  %v3448 = vmax.f32 %v3446, %v3447
  %v3449 = vsel %vm3177, %v3151, -inf
  %v3450 = vmax.f32 %v3448, %v3449
  %v3451 = vsel %vm3177, %v2960, -inf
  %v3452 = vsel %vm3177, %v3024, -inf
  %v3453 = vmax.f32 %v3451, %v3452
  %v3454 = vsel %vm3177, %v3088, -inf
  %v3455 = vmax.f32 %v3453, %v3454
  %v3456 = vsel %vm3177, %v3152, -inf
  %v3457 = vmax.f32 %v3455, %v3456
  %v3458 = vsel %vm3177, %v2961, -inf
  %v3459 = vsel %vm3177, %v3025, -inf
  %v3460 = vmax.f32 %v3458, %v3459
  %v3461 = vsel %vm3177, %v3089, -inf
  %v3462 = vmax.f32 %v3460, %v3461
  %v3463 = vsel %vm3177, %v3153, -inf
  %v3464 = vmax.f32 %v3462, %v3463
  %v3465 = vsel %vm3177, %v2962, -inf
  %v3466 = vsel %vm3177, %v3026, -inf
  %v3467 = vmax.f32 %v3465, %v3466
  %v3468 = vsel %vm3177, %v3090, -inf
  %v3469 = vmax.f32 %v3467, %v3468
  %v3470 = vsel %vm3177, %v3154, -inf
  %v3471 = vmax.f32 %v3469, %v3470
  %v3472 = vsel %vm3177, %v2963, -inf
  %v3473 = vsel %vm3177, %v3027, -inf
  %v3474 = vmax.f32 %v3472, %v3473
  %v3475 = vsel %vm3177, %v3091, -inf
  %v3476 = vmax.f32 %v3474, %v3475
  %v3477 = vsel %vm3177, %v3155, -inf
  %v3478 = vmax.f32 %v3476, %v3477
  %v3479 = vsel %vm3177, %v2964, -inf
  %v3480 = vsel %vm3177, %v3028, -inf
  %v3481 = vmax.f32 %v3479, %v3480
  %v3482 = vsel %vm3177, %v3092, -inf
  %v3483 = vmax.f32 %v3481, %v3482
  %v3484 = vsel %vm3177, %v3156, -inf
  %v3485 = vmax.f32 %v3483, %v3484
  %v3486 = vsel %vm3177, %v2965, -inf
  %v3487 = vsel %vm3177, %v3029, -inf
  %v3488 = vmax.f32 %v3486, %v3487
  %v3489 = vsel %vm3177, %v3093, -inf
  %v3490 = vmax.f32 %v3488, %v3489
  %v3491 = vsel %vm3177, %v3157, -inf
  %v3492 = vmax.f32 %v3490, %v3491
  %v3493 = vsel %vm3177, %v2966, -inf
  %v3494 = vsel %vm3177, %v3030, -inf
  %v3495 = vmax.f32 %v3493, %v3494
  %v3496 = vsel %vm3177, %v3094, -inf
  %v3497 = vmax.f32 %v3495, %v3496
  %v3498 = vsel %vm3177, %v3158, -inf
  %v3499 = vmax.f32 %v3497, %v3498
  %v3500 = vsel %vm3177, %v2967, -inf
  %v3501 = vsel %vm3177, %v3031, -inf
  %v3502 = vmax.f32 %v3500, %v3501
  %v3503 = vsel %vm3177, %v3095, -inf
  %v3504 = vmax.f32 %v3502, %v3503
  %v3505 = vsel %vm3177, %v3159, -inf
  %v3506 = vmax.f32 %v3504, %v3505
  %v3507 = vsel %vm3177, %v2968, -inf
  %v3508 = vsel %vm3177, %v3032, -inf
  %v3509 = vmax.f32 %v3507, %v3508
  %v3510 = vsel %vm3177, %v3096, -inf
  %v3511 = vmax.f32 %v3509, %v3510
  %v3512 = vsel %vm3177, %v3160, -inf
  %v3513 = vmax.f32 %v3511, %v3512
  %v3514 = vsel %vm3177, %v2969, -inf
  %v3515 = vsel %vm3177, %v3033, -inf
  %v3516 = vmax.f32 %v3514, %v3515
  %v3517 = vsel %vm3177, %v3097, -inf
  %v3518 = vmax.f32 %v3516, %v3517
  %v3519 = vsel %vm3177, %v3161, -inf
  %v3520 = vmax.f32 %v3518, %v3519
  %v3521 = vsel %vm3177, %v2970, -inf
  %v3522 = vsel %vm3177, %v3034, -inf
  %v3523 = vmax.f32 %v3521, %v3522
  %v3524 = vsel %vm3177, %v3098, -inf
  %v3525 = vmax.f32 %v3523, %v3524
  %v3526 = vsel %vm3177, %v3162, -inf
  %v3527 = vmax.f32 %v3525, %v3526
  %v3528 = vsel %vm3177, %v2971, -inf
  %v3529 = vsel %vm3177, %v3035, -inf
  %v3530 = vmax.f32 %v3528, %v3529
  %v3531 = vsel %vm3177, %v3099, -inf
  %v3532 = vmax.f32 %v3530, %v3531
  %v3533 = vsel %vm3177, %v3163, -inf
  %v3534 = vmax.f32 %v3532, %v3533
  %v3535 = vsel %vm3177, %v2972, -inf
  %v3536 = vsel %vm3177, %v3036, -inf
  %v3537 = vmax.f32 %v3535, %v3536
  %v3538 = vsel %vm3177, %v3100, -inf
  %v3539 = vmax.f32 %v3537, %v3538
  %v3540 = vsel %vm3177, %v3164, -inf
  %v3541 = vmax.f32 %v3539, %v3540
  %v3542 = vsel %vm3177, %v2973, -inf
  %v3543 = vsel %vm3177, %v3037, -inf
  %v3544 = vmax.f32 %v3542, %v3543
  %v3545 = vsel %vm3177, %v3101, -inf
  %v3546 = vmax.f32 %v3544, %v3545
  %v3547 = vsel %vm3177, %v3165, -inf
  %v3548 = vmax.f32 %v3546, %v3547
  %v3549 = vsel %vm3177, %v2974, -inf
  %v3550 = vsel %vm3177, %v3038, -inf
  %v3551 = vmax.f32 %v3549, %v3550
  %v3552 = vsel %vm3177, %v3102, -inf
  %v3553 = vmax.f32 %v3551, %v3552
  %v3554 = vsel %vm3177, %v3166, -inf
  %v3555 = vmax.f32 %v3553, %v3554
  %v3556 = vsel %vm3177, %v2975, -inf
  %v3557 = vsel %vm3177, %v3039, -inf
  %v3558 = vmax.f32 %v3556, %v3557
  %v3559 = vsel %vm3177, %v3103, -inf
  %v3560 = vmax.f32 %v3558, %v3559
  %v3561 = vsel %vm3177, %v3167, -inf
  %v3562 = vmax.f32 %v3560, %v3561
  %v3563 = vsel %vm3177, %v2976, -inf
  %v3564 = vsel %vm3177, %v3040, -inf
  %v3565 = vmax.f32 %v3563, %v3564
  %v3566 = vsel %vm3177, %v3104, -inf
  %v3567 = vmax.f32 %v3565, %v3566
  %v3568 = vsel %vm3177, %v3168, -inf
  %v3569 = vmax.f32 %v3567, %v3568
  %v3570 = vsel %vm3177, %v2977, -inf
  %v3571 = vsel %vm3177, %v3041, -inf
  %v3572 = vmax.f32 %v3570, %v3571
  %v3573 = vsel %vm3177, %v3105, -inf
  %v3574 = vmax.f32 %v3572, %v3573
  %v3575 = vsel %vm3177, %v3169, -inf
  %v3576 = vmax.f32 %v3574, %v3575
  %v3577 = vsel %vm3177, %v2978, -inf
  %v3578 = vsel %vm3177, %v3042, -inf
  %v3579 = vmax.f32 %v3577, %v3578
  %v3580 = vsel %vm3177, %v3106, -inf
  %v3581 = vmax.f32 %v3579, %v3580
  %v3582 = vsel %vm3177, %v3170, -inf
  %v3583 = vmax.f32 %v3581, %v3582
  %v3584 = vsel %vm3177, %v2979, -inf
  %v3585 = vsel %vm3177, %v3043, -inf
  %v3586 = vmax.f32 %v3584, %v3585
  %v3587 = vsel %vm3177, %v3107, -inf
  %v3588 = vmax.f32 %v3586, %v3587
  %v3589 = vsel %vm3177, %v3171, -inf
  %v3590 = vmax.f32 %v3588, %v3589
  %v3591 = vsel %vm3177, %v2980, -inf
  %v3592 = vsel %vm3177, %v3044, -inf
  %v3593 = vmax.f32 %v3591, %v3592
  %v3594 = vsel %vm3177, %v3108, -inf
  %v3595 = vmax.f32 %v3593, %v3594
  %v3596 = vsel %vm3177, %v3172, -inf
  %v3597 = vmax.f32 %v3595, %v3596
  %v3598 = vsel %vm3177, %v2981, -inf
  %v3599 = vsel %vm3177, %v3045, -inf
  %v3600 = vmax.f32 %v3598, %v3599
  %v3601 = vsel %vm3177, %v3109, -inf
  %v3602 = vmax.f32 %v3600, %v3601
  %v3603 = vsel %vm3177, %v3173, -inf
  %v3604 = vmax.f32 %v3602, %v3603
  %v3605 = vsel %vm3177, %v2982, -inf
  %v3606 = vsel %vm3177, %v3046, -inf
  %v3607 = vmax.f32 %v3605, %v3606
  %v3608 = vsel %vm3177, %v3110, -inf
  %v3609 = vmax.f32 %v3607, %v3608
  %v3610 = vsel %vm3177, %v3174, -inf
  %v3611 = vmax.f32 %v3609, %v3610
  %v3612 = vsel %vm3177, %v2983, -inf
  %v3613 = vsel %vm3177, %v3047, -inf
  %v3614 = vmax.f32 %v3612, %v3613
  %v3615 = vsel %vm3177, %v3111, -inf
  %v3616 = vmax.f32 %v3614, %v3615
  %v3617 = vsel %vm3177, %v3175, -inf
  %v3618 = vmax.f32 %v3616, %v3617
  %v3619 = vsel %vm3177, %v2984, -inf
  %v3620 = vsel %vm3177, %v3048, -inf
  %v3621 = vmax.f32 %v3619, %v3620
  %v3622 = vsel %vm3177, %v3112, -inf
  %v3623 = vmax.f32 %v3621, %v3622
  %v3624 = vsel %vm3177, %v3176, -inf
  %v3625 = vmax.f32 %v3623, %v3624
  %3626 = vst.msk [vmem:[%s4] sm:$0xff] %vm3177, %v3184
  %3627 = vst.msk [vmem:[%s4 + $0x8] sm:$0xff] %vm3177, %v3191
  %3628 = vst.msk [vmem:[%s4 + $0x10] sm:$0xff] %vm3177, %v3198
  %3629 = vst.msk [vmem:[%s4 + $0x18] sm:$0xff] %vm3177, %v3205
  %3630 = vst.msk [vmem:[%s4 + $0x20] sm:$0xff] %vm3177, %v3212
  %3631 = vst.msk [vmem:[%s4 + $0x28] sm:$0xff] %vm3177, %v3219
  %3632 = vst.msk [vmem:[%s4 + $0x30] sm:$0xff] %vm3177, %v3226
  %3633 = vst.msk [vmem:[%s4 + $0x38] sm:$0xff] %vm3177, %v3233
  %3634 = vst.msk [vmem:[%s4 + $0x40] sm:$0xff] %vm3177, %v3240
  %3635 = vst.msk [vmem:[%s4 + $0x48] sm:$0xff] %vm3177, %v3247
  %3636 = vst.msk [vmem:[%s4 + $0x50] sm:$0xff] %vm3177, %v3254
  %3637 = vst.msk [vmem:[%s4 + $0x58] sm:$0xff] %vm3177, %v3261
  %3638 = vst.msk [vmem:[%s4 + $0x60] sm:$0xff] %vm3177, %v3268
  %3639 = vst.msk [vmem:[%s4 + $0x68] sm:$0xff] %vm3177, %v3275
  %3640 = vst.msk [vmem:[%s4 + $0x70] sm:$0xff] %vm3177, %v3282
  %3641 = vst.msk [vmem:[%s4 + $0x78] sm:$0xff] %vm3177, %v3289
  %3642 = vst.msk [vmem:[%s4 + $0x80] sm:$0xff] %vm3177, %v3296
  %3643 = vst.msk [vmem:[%s4 + $0x88] sm:$0xff] %vm3177, %v3303
  %3644 = vst.msk [vmem:[%s4 + $0x90] sm:$0xff] %vm3177, %v3310
  %3645 = vst.msk [vmem:[%s4 + $0x98] sm:$0xff] %vm3177, %v3317
  %3646 = vst.msk [vmem:[%s4 + $0xa0] sm:$0xff] %vm3177, %v3324
  %3647 = vst.msk [vmem:[%s4 + $0xa8] sm:$0xff] %vm3177, %v3331
  %3648 = vst.msk [vmem:[%s4 + $0xb0] sm:$0xff] %vm3177, %v3338
  %3649 = vst.msk [vmem:[%s4 + $0xb8] sm:$0xff] %vm3177, %v3345
  %3650 = vst.msk [vmem:[%s4 + $0xc0] sm:$0xff] %vm3177, %v3352
  %3651 = vst.msk [vmem:[%s4 + $0xc8] sm:$0xff] %vm3177, %v3359
  %3652 = vst.msk [vmem:[%s4 + $0xd0] sm:$0xff] %vm3177, %v3366
  %3653 = vst.msk [vmem:[%s4 + $0xd8] sm:$0xff] %vm3177, %v3373
  %3654 = vst.msk [vmem:[%s4 + $0xe0] sm:$0xff] %vm3177, %v3380
  %3655 = vst.msk [vmem:[%s4 + $0xe8] sm:$0xff] %vm3177, %v3387
  %3656 = vst.msk [vmem:[%s4 + $0xf0] sm:$0xff] %vm3177, %v3394
  %3657 = vst.msk [vmem:[%s4 + $0xf8] sm:$0xff] %vm3177, %v3401
  %3658 = vst.msk [vmem:[%s4 + $0x100] sm:$0xff] %vm3177, %v3408
  %3659 = vst.msk [vmem:[%s4 + $0x108] sm:$0xff] %vm3177, %v3415
  %3660 = vst.msk [vmem:[%s4 + $0x110] sm:$0xff] %vm3177, %v3422
  %3661 = vst.msk [vmem:[%s4 + $0x118] sm:$0xff] %vm3177, %v3429
  %3662 = vst.msk [vmem:[%s4 + $0x120] sm:$0xff] %vm3177, %v3436
  %3663 = vst.msk [vmem:[%s4 + $0x128] sm:$0xff] %vm3177, %v3443
  %3664 = vst.msk [vmem:[%s4 + $0x130] sm:$0xff] %vm3177, %v3450
  %3665 = vst.msk [vmem:[%s4 + $0x138] sm:$0xff] %vm3177, %v3457
  %3666 = vst.msk [vmem:[%s4 + $0x140] sm:$0xff] %vm3177, %v3464
  %3667 = vst.msk [vmem:[%s4 + $0x148] sm:$0xff] %vm3177, %v3471
  %3668 = vst.msk [vmem:[%s4 + $0x150] sm:$0xff] %vm3177, %v3478
  %3669 = vst.msk [vmem:[%s4 + $0x158] sm:$0xff] %vm3177, %v3485
  %3670 = vst.msk [vmem:[%s4 + $0x160] sm:$0xff] %vm3177, %v3492
  %3671 = vst.msk [vmem:[%s4 + $0x168] sm:$0xff] %vm3177, %v3499
  %3672 = vst.msk [vmem:[%s4 + $0x170] sm:$0xff] %vm3177, %v3506
  %3673 = vst.msk [vmem:[%s4 + $0x178] sm:$0xff] %vm3177, %v3513
  %3674 = vst.msk [vmem:[%s4 + $0x180] sm:$0xff] %vm3177, %v3520
  %3675 = vst.msk [vmem:[%s4 + $0x188] sm:$0xff] %vm3177, %v3527
  %3676 = vst.msk [vmem:[%s4 + $0x190] sm:$0xff] %vm3177, %v3534
  %3677 = vst.msk [vmem:[%s4 + $0x198] sm:$0xff] %vm3177, %v3541
  %3678 = vst.msk [vmem:[%s4 + $0x1a0] sm:$0xff] %vm3177, %v3548
  %3679 = vst.msk [vmem:[%s4 + $0x1a8] sm:$0xff] %vm3177, %v3555
  %3680 = vst.msk [vmem:[%s4 + $0x1b0] sm:$0xff] %vm3177, %v3562
  %3681 = vst.msk [vmem:[%s4 + $0x1b8] sm:$0xff] %vm3177, %v3569
  %3682 = vst.msk [vmem:[%s4 + $0x1c0] sm:$0xff] %vm3177, %v3576
  %3683 = vst.msk [vmem:[%s4 + $0x1c8] sm:$0xff] %vm3177, %v3583
  %3684 = vst.msk [vmem:[%s4 + $0x1d0] sm:$0xff] %vm3177, %v3590
  %3685 = vst.msk [vmem:[%s4 + $0x1d8] sm:$0xff] %vm3177, %v3597
  %3686 = vst.msk [vmem:[%s4 + $0x1e0] sm:$0xff] %vm3177, %v3604
  %3687 = vst.msk [vmem:[%s4 + $0x1e8] sm:$0xff] %vm3177, %v3611
  %3688 = vst.msk [vmem:[%s4 + $0x1f0] sm:$0xff] %vm3177, %v3618
  %3689 = vst.msk [vmem:[%s4 + $0x1f8] sm:$0xff] %vm3177, %v3625
  // Predicated region
  $region18: #{tpu_custom_call.1} parent=0 // pred_check
    _
  $region19: #{tpu_custom_call.1} parent=0 // pred_check_branch
    %3691 = sbr.rel (0) target = $region21
  $region20: #{tpu_custom_call.1} parent=0 // pred_region
    _
  $region21: #{tpu_custom_call.1} parent=0 // pred_fallthru
    _
  // Predicated region
  $region22: #{tpu_custom_call.1} parent=0 // pred_check
    _
  $region23: #{tpu_custom_call.1} parent=0 // pred_check_branch
    %3693 = sbr.rel (0) target = $region25
  $region24: #{tpu_custom_call.1} parent=0 // pred_region
    _
  $region25: #{tpu_custom_call.1} parent=0 // pred_fallthru
    _

</llo_original>
